<compile_context>
chip_gen: v5e
topology: v5e:2x2
jax: 0.10.0
libtpu: 0.0.40
codegen_flags: <defaults>
</compile_context>

<pallas_src>
import numpy as np
import jax
import jax.numpy as jnp
from jax.experimental import pallas as pl
from jax.experimental.pallas import tpu as pltpu

# ----------------------------- config (small shapes) -----------------------------
IMG_SIZE = 64          # -> 4x4 = 16 patches (module default is 224)
PATCH = 16
C_IN = 3
FEAT_DIM = 1024        # ResNet-101 C4 output channels (fixed by nn.Linear(1024, ...))
EMBED_DIM = 128        # module default is 512; kept small but lane-friendly
LN_EPS = 1e-5          # nn.LayerNorm default


# ------------------------- 2D sin-cos position embedding -------------------------
def _get_1d_sincos_pos_embed_from_grid(embed_dim, pos):
    omega = np.arange(embed_dim // 2, dtype=np.float64)
    omega /= embed_dim / 2.0
    omega = 1.0 / 10000 ** omega
    pos = pos.reshape(-1)
    out = np.einsum("m,d->md", pos, omega)
    return np.concatenate([np.sin(out), np.cos(out)], axis=1)


def _get_2d_sincos_pos_embed_from_grid(embed_dim, grid):
    emb_h = _get_1d_sincos_pos_embed_from_grid(embed_dim // 2, grid[0])
    emb_w = _get_1d_sincos_pos_embed_from_grid(embed_dim // 2, grid[1])
    return np.concatenate([emb_h, emb_w], axis=1)


def get_2d_sincos_pos_embed(embed_dim, grid_size, cls_token=False):
    grid_h = np.arange(grid_size, dtype=np.float32)
    grid_w = np.arange(grid_size, dtype=np.float32)
    grid = np.meshgrid(grid_w, grid_h)          # w goes first (MAE convention)
    grid = np.stack(grid, axis=0).reshape([2, 1, grid_size, grid_size])
    pos_embed = _get_2d_sincos_pos_embed_from_grid(embed_dim, grid)
    if cls_token:
        pos_embed = np.concatenate([np.zeros([1, embed_dim]), pos_embed], axis=0)
    return pos_embed.astype(np.float32)


# --------------------------------- Pallas kernel ---------------------------------
def visembed_kernel(xp_ref, ws_ref, bs_ref, wp_ref, pos_ref, gamma_ref, beta_ref,
                    o_ref, feat_ref):
    """One TM-row tile of the flattened (B*N) patch rows per grid step.

    xp_ref   : (TM, K)       bf16  patchified pixels
    ws_ref   : (K, 1024)     bf16  stem (patch-conv) weight
    bs_ref   : (1, 1024)     f32   stem bias
    wp_ref   : (1024, D)     f32   proj weight
    pos_ref  : (TM, D)       f32   per-row sin-cos pos embed (+ folded proj bias)
    gamma_ref: (1, D)              LayerNorm weight (== 1.0 per _init_weights)
    beta_ref : (1, D)              LayerNorm bias   (== 0.0 per _init_weights)
    o_ref    : (TM, D)
    feat_ref : (TM, 1024)    f32   VMEM scratch for the intermediate features
    """
    # --- patch-embed stand-in: bf16 matmul (MXU, f32 accumulate) + bias + ReLU ---
    feat = jnp.dot(xp_ref[...], ws_ref[...], preferred_element_type=jnp.float32)
    feat_ref[...] = jnp.maximum(feat + bs_ref[...], 0.0)        # stage in VMEM

    # --- proj(x) + (pos_embed[:, 1:, :] + proj bias) ---
    y = jnp.dot(feat_ref[...], wp_ref[...], preferred_element_type=jnp.float32)
    y = y + pos_ref[...]                                        # (TM, D)

    # --- LayerNorm (biased variance, eps = 1e-5); dropout(p=0.0) is identity ---
    mean = jnp.mean(y, axis=-1, keepdims=True)
    yc = y - mean
    var = jnp.mean(yc * yc, axis=-1, keepdims=True)
    yn = yc * jax.lax.rsqrt(var + LN_EPS)
    o_ref[...] = yn * gamma_ref[...] + beta_ref[...]


def vis_embed(x_nchw, params, *, tm=None):
    """x_nchw: (B, C, H, W) float32  ->  (B, N, EMBED_DIM) float32."""
    B, C, H, W = x_nchw.shape
    assert H == IMG_SIZE and W == IMG_SIZE, (
        f"Input image size ({H}*{W}) doesn't match model ({IMG_SIZE}*{IMG_SIZE}).")
    gh, gw = H // PATCH, W // PATCH
    N = gh * gw
    K = C * PATCH * PATCH
    M = B * N

    # M-tile size: 256 fills the 256-wide v6e/v7x MXU; 128 matches v5e's MXU
    # and the small demo shapes.  M is padded up to a TM multiple.
    if tm is None:
        tm = 256 if M >= 256 else 128
    m_pad = pl.cdiv(M, tm) * tm

    # im2col patchify (pure layout glue): (B,C,H,W) -> (B*N, C*ph*pw), bf16.
    xp = x_nchw.reshape(B, C, gh, PATCH, gw, PATCH)
    xp = xp.transpose(0, 2, 4, 1, 3, 5).reshape(M, K).astype(jnp.bfloat16)
    xp = jnp.pad(xp, ((0, m_pad - M), (0, 0)))

    # Fold the proj bias into the pos embedding, tile per batch, pad to m_pad.
    pos = (params["pos"] + params["b_proj"]).astype(jnp.float32)        # (N, D)
    pos_flat = jnp.pad(jnp.tile(pos, (B, 1)), ((0, m_pad - M), (0, 0)))  # (m_pad, D)

    ws, bs, wp = params["w_stem"], params["b_stem"], params["w_proj"]
    gamma, beta = params["ln_gamma"], params["ln_beta"]

    # NOTE(v7x): the grid-invariant weight inputs (ws/bs/wp/gamma/beta) could be
    # marked pipeline_mode=pl.Buffered(1) to reclaim their double-buffer
    # footprint; at these shapes (~2.5 MiB of weights) VMEM has ample headroom.
    out = pl.pallas_call(
        visembed_kernel,
        out_shape=jax.ShapeDtypeStruct((m_pad, EMBED_DIM), jnp.float32),
        grid=(m_pad // tm,),
        in_specs=[
            pl.BlockSpec((tm, K), lambda i: (i, 0)),            # xp (bf16)
            pl.BlockSpec((K, FEAT_DIM), lambda i: (0, 0)),      # w_stem (bf16)
            pl.BlockSpec((1, FEAT_DIM), lambda i: (0, 0)),      # b_stem
            pl.BlockSpec((FEAT_DIM, EMBED_DIM), lambda i: (0, 0)),  # w_proj
            pl.BlockSpec((tm, EMBED_DIM), lambda i: (i, 0)),    # pos (+ b_proj)
            pl.BlockSpec((1, EMBED_DIM), lambda i: (0, 0)),     # ln gamma
            pl.BlockSpec((1, EMBED_DIM), lambda i: (0, 0)),     # ln beta
        ],
        out_specs=pl.BlockSpec((tm, EMBED_DIM), lambda i: (i, 0)),
        scratch_shapes=[pltpu.VMEM((tm, FEAT_DIM), jnp.float32)],
        compiler_params=pltpu.CompilerParams(
            dimension_semantics=("parallel",)),
    )(xp, ws, bs, wp, pos_flat, gamma, beta)

    # Drop padded rows (they hold finite garbage) and restore (B, N, D).
    return out[:M].reshape(B, N, EMBED_DIM)


# ----------------------------- plain-JAX reference -------------------------------
def vis_embed_ref(x_nchw, params):
    B, C, H, W = x_nchw.shape
    gh, gw = H // PATCH, W // PATCH
    N = gh * gw
    xp = x_nchw.reshape(B, C, gh, PATCH, gw, PATCH)
    xp = xp.transpose(0, 2, 4, 1, 3, 5).reshape(B, N, -1).astype(jnp.bfloat16)
    feat = jnp.einsum("bnk,kf->bnf", xp, params["w_stem"],
                      preferred_element_type=jnp.float32)
    feat = jnp.maximum(feat + params["b_stem"], 0.0)
    y = jnp.einsum("bnf,fd->bnd", feat, params["w_proj"],
                   preferred_element_type=jnp.float32)
    y = y + params["b_proj"] + params["pos"][None]
    mean = jnp.mean(y, axis=-1, keepdims=True)
    var = jnp.mean((y - mean) ** 2, axis=-1, keepdims=True)
    yn = (y - mean) * jax.lax.rsqrt(var + LN_EPS)
    return yn * params["ln_gamma"] + params["ln_beta"]


# ------------------------------------ main ---------------------------------------
if __name__ == "__main__":
    key = jax.random.PRNGKey(0)
    k_x, k_ws, k_bs, k_wp, k_bp = jax.random.split(key, 5)

    B = 2
    gh = IMG_SIZE // PATCH
    N = gh * gh
    K = C_IN * PATCH * PATCH

    # Deterministic parameter init (PyTorch-Linear-style uniform bounds).
    bound_s = 1.0 / np.sqrt(K)
    bound_p = 1.0 / np.sqrt(FEAT_DIM)
    params = {
        # stem weight stored in bf16 (stand-in for the frozen ResNet trunk)
        "w_stem": jax.random.uniform(k_ws, (K, FEAT_DIM), jnp.float32,
                                     -bound_s, bound_s).astype(jnp.bfloat16),
        "b_stem": jax.random.uniform(k_bs, (1, FEAT_DIM), jnp.float32, -bound_s, bound_s),
        "w_proj": jax.random.uniform(k_wp, (FEAT_DIM, EMBED_DIM), jnp.float32, -bound_p, bound_p),
        "b_proj": jax.random.uniform(k_bp, (1, EMBED_DIM), jnp.float32, -bound_p, bound_p),
        # pos_embed[:, 1:, :] -> drop the cls-token row.
        "pos": jnp.asarray(get_2d_sincos_pos_embed(EMBED_DIM, gh, cls_token=True)[1:]),
        "ln_gamma": jnp.ones((1, EMBED_DIM), jnp.float32),   # _init_weights: constant 1.0
        "ln_beta": jnp.zeros((1, EMBED_DIM), jnp.float32),   # _init_weights: constant 0.0
    }

    x = jax.random.normal(k_x, (B, C_IN, IMG_SIZE, IMG_SIZE), jnp.float32)

    out = jax.block_until_ready(vis_embed(x, params))
    ref = jax.block_until_ready(vis_embed_ref(x, params))

    assert out.shape == (B, N, EMBED_DIM), out.shape
    # Slightly looser tolerance than the all-f32 version: the stem matmul is
    # now bf16-in / f32-accumulate in both kernel and reference.
    np.testing.assert_allclose(np.asarray(out), np.asarray(ref), rtol=1e-3, atol=1e-3)
    print("KERNEL_OK")
</pallas_src>

<mosaic_0001>
module attributes {stable_mosaic.version = 11 : i64} {
  func.func @visembed_kernel(%arg0: i32, %arg1: memref<128x768xbf16, #tpu.memory_space<vmem>>, %arg2: memref<768x1024xbf16, #tpu.memory_space<vmem>>, %arg3: memref<1x1024xf32, #tpu.memory_space<vmem>>, %arg4: memref<1024x128xf32, #tpu.memory_space<vmem>>, %arg5: memref<128x128xf32, #tpu.memory_space<vmem>>, %arg6: memref<1x128xf32, #tpu.memory_space<vmem>>, %arg7: memref<1x128xf32, #tpu.memory_space<vmem>>, %arg8: memref<128x128xf32, #tpu.memory_space<vmem>>, %arg9: memref<128x1024xf32, #tpu.memory_space<vmem>>) attributes {dimension_semantics = [#tpu.dimension_semantics<parallel>], iteration_bounds = array<i64: 1>, scalar_prefetch = 0 : i64, scratch_operands = 1 : i64, tpu.core_type = #tpu.core_type<tc>, window_params = [{transform_indices = @transform_0, window_bounds = array<i64: 128, 768>}, {pipeline_mode = #tpu.pipeline_mode<synchronous>, transform_indices = @transform_1, window_bounds = array<i64: 768, 1024>}, {pipeline_mode = #tpu.pipeline_mode<synchronous>, transform_indices = @transform_2, window_bounds = array<i64: 1, 1024>}, {pipeline_mode = #tpu.pipeline_mode<synchronous>, transform_indices = @transform_3, window_bounds = array<i64: 1024, 128>}, {transform_indices = @transform_4, window_bounds = array<i64: 128, 128>}, {pipeline_mode = #tpu.pipeline_mode<synchronous>, transform_indices = @transform_5, window_bounds = array<i64: 1, 128>}, {pipeline_mode = #tpu.pipeline_mode<synchronous>, transform_indices = @transform_6, window_bounds = array<i64: 1, 128>}, {transform_indices = @transform_7, window_bounds = array<i64: 128, 128>}]} {
    %c0 = arith.constant 0 : index
    %c0_0 = arith.constant 0 : index
    %0 = vector.load %arg1[%c0, %c0_0] : memref<128x768xbf16, #tpu.memory_space<vmem>>, vector<128x768xbf16>
    %c0_1 = arith.constant 0 : index
    %c0_2 = arith.constant 0 : index
    %1 = vector.load %arg2[%c0_1, %c0_2] : memref<768x1024xbf16, #tpu.memory_space<vmem>>, vector<768x1024xbf16>
    %cst = arith.constant dense<0.000000e+00> : vector<128x1024xf32>
    %2 = tpu.matmul %0, %1, %cst {dimension_numbers = #tpu.dot_dimension_numbers<[1], [0], [0], [1], [0, 0, 1, 1], [], []>} : vector<128x768xbf16>, vector<768x1024xbf16>, vector<128x1024xf32> -> vector<128x1024xf32>
    %c0_3 = arith.constant 0 : index
    %c0_4 = arith.constant 0 : index
    %3 = vector.load %arg3[%c0_3, %c0_4] : memref<1x1024xf32, #tpu.memory_space<vmem>>, vector<1x1024xf32>
    %4 = vector.broadcast %3 : vector<1x1024xf32> to vector<128x1024xf32>
    %5 = arith.addf %2, %4 : vector<128x1024xf32>
    %cst_5 = arith.constant 0.000000e+00 : f32
    %6 = vector.broadcast %cst_5 : f32 to vector<128x1024xf32>
    %7 = arith.maximumf %5, %6 : vector<128x1024xf32>
    %c0_6 = arith.constant 0 : index
    %c0_7 = arith.constant 0 : index
    %8 = vector.load %arg9[%c0_6, %c0_7] : memref<128x1024xf32, #tpu.memory_space<vmem>>, vector<128x1024xf32>
    tpu.vector_store %arg9[%c0_6, %c0_7], %7 {strides = array<i32>} : memref<128x1024xf32, #tpu.memory_space<vmem>>, vector<128x1024xf32>,
    %c0_8 = arith.constant 0 : index
    %c0_9 = arith.constant 0 : index
    %9 = vector.load %arg9[%c0_8, %c0_9] : memref<128x1024xf32, #tpu.memory_space<vmem>>, vector<128x1024xf32>
    %c0_10 = arith.constant 0 : index
    %c0_11 = arith.constant 0 : index
    %10 = vector.load %arg4[%c0_10, %c0_11] : memref<1024x128xf32, #tpu.memory_space<vmem>>, vector<1024x128xf32>
    %cst_12 = arith.constant dense<0.000000e+00> : vector<128x128xf32>
    %11 = tpu.matmul %9, %10, %cst_12 {dimension_numbers = #tpu.dot_dimension_numbers<[1], [0], [0], [1], [0, 0, 1, 1], [], []>} : vector<128x1024xf32>, vector<1024x128xf32>, vector<128x128xf32> -> vector<128x128xf32>
    %c0_13 = arith.constant 0 : index
    %c0_14 = arith.constant 0 : index
    %12 = vector.load %arg5[%c0_13, %c0_14] : memref<128x128xf32, #tpu.memory_space<vmem>>, vector<128x128xf32>
    %13 = arith.addf %11, %12 : vector<128x128xf32>
    %cst_15 = arith.constant dense<0.000000e+00> : vector<128xf32>
    %14 = vector.multi_reduction <add>, %13, %cst_15 [1] : vector<128x128xf32> to vector<128xf32>
    %15 = vector.shape_cast %14 : vector<128xf32> to vector<128x1xf32>
    %cst_16 = arith.constant 1.280000e+02 : f32
    %16 = vector.broadcast %cst_16 : f32 to vector<128x1xf32>
    %17 = arith.divf %15, %16 : vector<128x1xf32>
    %18 = vector.broadcast %17 : vector<128x1xf32> to vector<128x128xf32>
    %19 = arith.subf %13, %18 : vector<128x128xf32>
    %20 = arith.mulf %19, %19 : vector<128x128xf32>
    %cst_17 = arith.constant dense<0.000000e+00> : vector<128xf32>
    %21 = vector.multi_reduction <add>, %20, %cst_17 [1] : vector<128x128xf32> to vector<128xf32>
    %22 = vector.shape_cast %21 : vector<128xf32> to vector<128x1xf32>
    %cst_18 = arith.constant 1.280000e+02 : f32
    %23 = vector.broadcast %cst_18 : f32 to vector<128x1xf32>
    %24 = arith.divf %22, %23 : vector<128x1xf32>
    %cst_19 = arith.constant 9.99999974E-6 : f32
    %25 = vector.broadcast %cst_19 : f32 to vector<128x1xf32>
    %26 = arith.addf %24, %25 : vector<128x1xf32>
    %27 = math.rsqrt %26 : vector<128x1xf32>
    %28 = vector.broadcast %27 : vector<128x1xf32> to vector<128x128xf32>
    %29 = arith.mulf %19, %28 : vector<128x128xf32>
    %c0_20 = arith.constant 0 : index
    %c0_21 = arith.constant 0 : index
    %30 = vector.load %arg6[%c0_20, %c0_21] : memref<1x128xf32, #tpu.memory_space<vmem>>, vector<1x128xf32>
    %31 = vector.broadcast %30 : vector<1x128xf32> to vector<128x128xf32>
    %32 = arith.mulf %29, %31 : vector<128x128xf32>
    %c0_22 = arith.constant 0 : index
    %c0_23 = arith.constant 0 : index
    %33 = vector.load %arg7[%c0_22, %c0_23] : memref<1x128xf32, #tpu.memory_space<vmem>>, vector<1x128xf32>
    %34 = vector.broadcast %33 : vector<1x128xf32> to vector<128x128xf32>
    %35 = arith.addf %32, %34 : vector<128x128xf32>
    %c0_24 = arith.constant 0 : index
    %c0_25 = arith.constant 0 : index
    %36 = vector.load %arg8[%c0_24, %c0_25] : memref<128x128xf32, #tpu.memory_space<vmem>>, vector<128x128xf32>
    tpu.vector_store %arg8[%c0_24, %c0_25], %35 {strides = array<i32>} : memref<128x128xf32, #tpu.memory_space<vmem>>, vector<128x128xf32>,
    return
  }
  func.func @transform_0(%arg0: i32) -> (i32, i32) {
    %c0_i32 = arith.constant 0 : i32
    %c0_i32_0 = arith.constant 0 : i32
    return %arg0, %c0_i32 : i32, i32
  }
  func.func @transform_1(%arg0: i32) -> (i32, i32) {
    %c0_i32 = arith.constant 0 : i32
    %c0_i32_0 = arith.constant 0 : i32
    %c0_i32_1 = arith.constant 0 : i32
    return %c0_i32, %c0_i32_0 : i32, i32
  }
  func.func @transform_2(%arg0: i32) -> (i32, i32) {
    %c0_i32 = arith.constant 0 : i32
    %c0_i32_0 = arith.constant 0 : i32
    %c0_i32_1 = arith.constant 0 : i32
    return %c0_i32, %c0_i32_0 : i32, i32
  }
  func.func @transform_3(%arg0: i32) -> (i32, i32) {
    %c0_i32 = arith.constant 0 : i32
    %c0_i32_0 = arith.constant 0 : i32
    %c0_i32_1 = arith.constant 0 : i32
    return %c0_i32, %c0_i32_0 : i32, i32
  }
  func.func @transform_4(%arg0: i32) -> (i32, i32) {
    %c0_i32 = arith.constant 0 : i32
    %c0_i32_0 = arith.constant 0 : i32
    return %arg0, %c0_i32 : i32, i32
  }
  func.func @transform_5(%arg0: i32) -> (i32, i32) {
    %c0_i32 = arith.constant 0 : i32
    %c0_i32_0 = arith.constant 0 : i32
    %c0_i32_1 = arith.constant 0 : i32
    return %c0_i32, %c0_i32_0 : i32, i32
  }
  func.func @transform_6(%arg0: i32) -> (i32, i32) {
    %c0_i32 = arith.constant 0 : i32
    %c0_i32_0 = arith.constant 0 : i32
    %c0_i32_1 = arith.constant 0 : i32
    return %c0_i32, %c0_i32_0 : i32, i32
  }
  func.func @transform_7(%arg0: i32) -> (i32, i32) {
    %c0_i32 = arith.constant 0 : i32
    %c0_i32_0 = arith.constant 0 : i32
    return %arg0, %c0_i32 : i32, i32
  }
}

</mosaic_0001>

<llo_original>
// kernel: tpu_custom_call.1
$region0: #{tpu_custom_call.1}
  #allocation0 [shape = 'u32[]', space=smem, size = 0x4, offset = 0x4, fixed_abs, tag = 'smem constant byte address 0x4 - core index']
  #allocation1 [shape = 'u32[72,128]{1,0:T(1,128)}', space=vmem, size = 0x9000, scoped, tag = 'internal scratch']
  #allocation2 [shape = 'f32[128,1024]{1,0:T(8,128)}', space=vmem, size = 0x80000, scoped, tag = 'scratch operand']
  %s0 = inlined_call_operand.hbm [shape: bf16[128,768], index: 0, kind: input, shape index: {}]
  %s1 = inlined_call_operand.hbm [shape: bf16[768,1024], index: 1, kind: input, shape index: {}]
  %s2 = inlined_call_operand.hbm [shape: f32[1,1024], index: 2, kind: input, shape index: {}]
  %s3 = inlined_call_operand.hbm [shape: f32[1024,128], index: 3, kind: input, shape index: {}]
  %s4 = inlined_call_operand.hbm [shape: f32[128,128], index: 4, kind: input, shape index: {}]
  %s5 = inlined_call_operand.hbm [shape: f32[1,128], index: 5, kind: input, shape index: {}]
  %s6 = inlined_call_operand.hbm [shape: f32[1,128], index: 6, kind: input, shape index: {}]
  %s7 = inlined_call_operand.hbm [shape: f32[128,128], index: 7, kind: output, shape index: {}]
  %s8 = sld [smem:[#allocation0]]
  $region66: #{tpu_custom_call.1} parent=0
    _
  %s10 = ssub.s32 1, %s8
  %s11 = scalar_select 0, %s10, %s8
  $region1: #{tpu_custom_call.1} parent=0
    #allocation3 [shape = 'u8[196608]{0}', space=vmem, size = 0x30000, scoped, tag = 'input window, operand 0, single buffered']
    #allocation4 [shape = 's32[1]{0}', space=sflag, size = 0x4, scoped, tag = 'scoped memory for tpu_custom_call.1']
    #allocation5 [shape = 's32[1]{0}', space=sflag, size = 0x4, scoped, tag = 'scoped memory for tpu_custom_call.1']
    #allocation6 [shape = 'u8[1572864]{0}', space=vmem, size = 0x180000, scoped, tag = 'input window, operand 1, single buffered']
    #allocation7 [shape = 's32[1]{0}', space=sflag, size = 0x4, scoped, tag = 'scoped memory for tpu_custom_call.1']
    #allocation8 [shape = 'u8[4096]{0}', space=vmem, size = 0x1000, scoped, tag = 'input window, operand 2, single buffered']
    #allocation9 [shape = 'u8[524288]{0}', space=vmem, size = 0x80000, scoped, tag = 'input window, operand 3, single buffered']
    #allocation10 [shape = 's32[1]{0}', space=sflag, size = 0x4, scoped, tag = 'scoped memory for tpu_custom_call.1']
    #allocation11 [shape = 'u8[65536]{0}', space=vmem, size = 0x10000, scoped, tag = 'input window, operand 4, single buffered']
    #allocation12 [shape = 'u8[512]{0}', space=vmem, size = 0x400, scoped, tag = 'input window, operand 5, single buffered']
    #allocation13 [shape = 's32[1]{0}', space=sflag, size = 0x4, scoped, tag = 'scoped memory for tpu_custom_call.1']
    #allocation14 [shape = 'u8[512]{0}', space=vmem, size = 0x400, scoped, tag = 'input window, operand 6, single buffered']
    #allocation15 [shape = 'u8[65536]{0}', space=vmem, size = 0x10000, scoped, tag = 'output window, operand 0, single buffered']
    %12 = vsyncpa [#allocation4], 0
    %13 = vsyncpa [#allocation7], 0
    %14 = vsyncpa [#allocation10], 0
    %15 = vsyncpa [#allocation13], 0
    %16 = vsyncpa [#allocation5], 0
    // Predicated region
    $region2: #{tpu_custom_call.1} parent=1 // pred_check
      _
    $region3: #{tpu_custom_call.1} parent=1 // pred_check_branch
      %18 = sbr.rel (0) target = $region5
    $region4: #{tpu_custom_call.1} parent=1 // pred_region
      %20 = vsyncadd [#allocation4], 0
      %s21 = sshll.u32 %s0, 4
      %s22 = int_to_ptr.hbm [resolvable:$true] %s21
      %s23 = sshll.u32 [#allocation3], 4
      %s24 = int_to_ptr.vmem [resolvable:$true] %s23
      %29 = dma.hbm_to_vmem [thread:$0]  %s22, 6144, %s24, [#allocation4], 384, 384, 24
    $region5: #{tpu_custom_call.1} parent=1 // pred_fallthru
      _
    // Predicated region
    $region6: #{tpu_custom_call.1} parent=1 // pred_check
      _
    $region7: #{tpu_custom_call.1} parent=1 // pred_check_branch
      %31 = sbr.rel (0) target = $region9
    $region8: #{tpu_custom_call.1} parent=1 // pred_region
      %33 = vsyncadd [#allocation7], 0
      %s34 = sshll.u32 %s1, 4
      %s35 = int_to_ptr.hbm [resolvable:$true] %s34
      %s36 = sshll.u32 [#allocation6], 4
      %s37 = int_to_ptr.vmem [resolvable:$true] %s36
      %42 = dma.hbm_to_vmem [thread:$0]  %s35, 49152, %s37, [#allocation7], 512, 512, 32
    $region9: #{tpu_custom_call.1} parent=1 // pred_fallthru
      _
    // Predicated region
    $region10: #{tpu_custom_call.1} parent=1 // pred_check
      _
    $region11: #{tpu_custom_call.1} parent=1 // pred_check_branch
      %44 = sbr.rel (0) target = $region13
    $region12: #{tpu_custom_call.1} parent=1 // pred_region
      %46 = vsyncadd [#allocation7], 0
      %s48 = sshll.u32 %s2, 4
      %s49 = int_to_ptr.hbm [resolvable:$true] %s48
      %s50 = sshll.u32 [#allocation8], 4
      %s51 = int_to_ptr.vmem [resolvable:$true] %s50
      %53 = dma.hbm_to_vmem [thread:$0]  %s49, 128, %s51, [#allocation7]
    $region13: #{tpu_custom_call.1} parent=1 // pred_fallthru
      _
    // Predicated region
    $region14: #{tpu_custom_call.1} parent=1 // pred_check
      _
    $region15: #{tpu_custom_call.1} parent=1 // pred_check_branch
      %55 = sbr.rel (0) target = $region17
    $region16: #{tpu_custom_call.1} parent=1 // pred_region
      %57 = vsyncadd [#allocation10], 0
      %s58 = sshll.u32 %s3, 4
      %s59 = int_to_ptr.hbm [resolvable:$true] %s58
      %s60 = sshll.u32 [#allocation9], 4
      %s61 = int_to_ptr.vmem [resolvable:$true] %s60
      %66 = dma.hbm_to_vmem [thread:$0]  %s59, 16384, %s61, [#allocation10], 128, 128, 8
    $region17: #{tpu_custom_call.1} parent=1 // pred_fallthru
      _
    // Predicated region
    $region18: #{tpu_custom_call.1} parent=1 // pred_check
      _
    $region19: #{tpu_custom_call.1} parent=1 // pred_check_branch
      %68 = sbr.rel (0) target = $region21
    $region20: #{tpu_custom_call.1} parent=1 // pred_region
      %70 = vsyncadd [#allocation10], 0
      %s71 = sshll.u32 %s4, 4
      %s72 = int_to_ptr.hbm [resolvable:$true] %s71
      %s73 = sshll.u32 [#allocation11], 4
      %s74 = int_to_ptr.vmem [resolvable:$true] %s73
      %79 = dma.hbm_to_vmem [thread:$0]  %s72, 2048, %s74, [#allocation10], 128, 128, 8
    $region21: #{tpu_custom_call.1} parent=1 // pred_fallthru
      _
    // Predicated region
    $region22: #{tpu_custom_call.1} parent=1 // pred_check
      _
    $region23: #{tpu_custom_call.1} parent=1 // pred_check_branch
      %81 = sbr.rel (0) target = $region25
    $region24: #{tpu_custom_call.1} parent=1 // pred_region
      %83 = vsyncadd [#allocation13], 0
      %s85 = sshll.u32 %s5, 4
      %s86 = int_to_ptr.hbm [resolvable:$true] %s85
      %s87 = sshll.u32 [#allocation12], 4
      %s88 = int_to_ptr.vmem [resolvable:$true] %s87
      %90 = dma.hbm_to_vmem [thread:$0]  %s86, 16, %s88, [#allocation13]
    $region25: #{tpu_custom_call.1} parent=1 // pred_fallthru
      _
    // Predicated region
    $region26: #{tpu_custom_call.1} parent=1 // pred_check
      _
    $region27: #{tpu_custom_call.1} parent=1 // pred_check_branch
      %92 = sbr.rel (0) target = $region29
    $region28: #{tpu_custom_call.1} parent=1 // pred_region
      %94 = vsyncadd [#allocation13], 0
      %s96 = sshll.u32 %s6, 4
      %s97 = int_to_ptr.hbm [resolvable:$true] %s96
      %s98 = sshll.u32 [#allocation14], 4
      %s99 = int_to_ptr.vmem [resolvable:$true] %s98
      %101 = dma.hbm_to_vmem [thread:$0]  %s97, 16, %s99, [#allocation13]
    $region29: #{tpu_custom_call.1} parent=1 // pred_fallthru
      _
    // Predicated region
    $region30: #{tpu_custom_call.1} parent=1 // pred_check
      _
    $region31: #{tpu_custom_call.1} parent=1 // pred_check_branch
      %103 = sbr.rel (0) target = $region33
    $region32: #{tpu_custom_call.1} parent=1 // pred_region
      %105 = dma.done [#allocation4], 6144
    $region33: #{tpu_custom_call.1} parent=1 // pred_fallthru
      _
    // Predicated region
    $region34: #{tpu_custom_call.1} parent=1 // pred_check
      _
    $region35: #{tpu_custom_call.1} parent=1 // pred_check_branch
      %107 = sbr.rel (0) target = $region37
    $region36: #{tpu_custom_call.1} parent=1 // pred_region
      %109 = dma.done [#allocation7], 49152
    $region37: #{tpu_custom_call.1} parent=1 // pred_fallthru
      _
    // Predicated region
    $region38: #{tpu_custom_call.1} parent=1 // pred_check
      _
    $region39: #{tpu_custom_call.1} parent=1 // pred_check_branch
      %111 = sbr.rel (0) target = $region41
    $region40: #{tpu_custom_call.1} parent=1 // pred_region
      %113 = dma.done [#allocation7], 128
    $region41: #{tpu_custom_call.1} parent=1 // pred_fallthru
      _
    // Predicated region
    $region42: #{tpu_custom_call.1} parent=1 // pred_check
      _
    $region43: #{tpu_custom_call.1} parent=1 // pred_check_branch
      %115 = sbr.rel (0) target = $region45
    $region44: #{tpu_custom_call.1} parent=1 // pred_region
      %117 = dma.done [#allocation10], 16384
    $region45: #{tpu_custom_call.1} parent=1 // pred_fallthru
      _
    // Predicated region
    $region46: #{tpu_custom_call.1} parent=1 // pred_check
      _
    $region47: #{tpu_custom_call.1} parent=1 // pred_check_branch
      %119 = sbr.rel (0) target = $region49
    $region48: #{tpu_custom_call.1} parent=1 // pred_region
      %121 = dma.done [#allocation10], 2048
    $region49: #{tpu_custom_call.1} parent=1 // pred_fallthru
      _
    // Predicated region
    $region50: #{tpu_custom_call.1} parent=1 // pred_check
      _
    $region51: #{tpu_custom_call.1} parent=1 // pred_check_branch
      %123 = sbr.rel (0) target = $region53
    $region52: #{tpu_custom_call.1} parent=1 // pred_region
      %125 = dma.done [#allocation13], 16
    $region53: #{tpu_custom_call.1} parent=1 // pred_fallthru
      _
    // Predicated region
    $region54: #{tpu_custom_call.1} parent=1 // pred_check
      _
    $region55: #{tpu_custom_call.1} parent=1 // pred_check_branch
      %127 = sbr.rel (0) target = $region57
    $region56: #{tpu_custom_call.1} parent=1 // pred_region
      %129 = dma.done [#allocation13], 16
    $region57: #{tpu_custom_call.1} parent=1 // pred_fallthru
      _
    %v130 = vld [vmem:[#allocation3] sm:$0xff]
    %v131 = vld [vmem:[#allocation3 + $0x8] sm:$0xff]
    %v132 = vld [vmem:[#allocation3 + $0x10] sm:$0xff]
    %v133 = vld [vmem:[#allocation3 + $0x18] sm:$0xff]
    %v134 = vld [vmem:[#allocation3 + $0x20] sm:$0xff]
    %v135 = vld [vmem:[#allocation3 + $0x28] sm:$0xff]
    %v136 = vld [vmem:[#allocation3 + $0x30] sm:$0xff]
    %v137 = vld [vmem:[#allocation3 + $0x38] sm:$0xff]
    %v138 = vld [vmem:[#allocation3 + $0x40] sm:$0xff]
    %v139 = vld [vmem:[#allocation3 + $0x48] sm:$0xff]
    %v140 = vld [vmem:[#allocation3 + $0x50] sm:$0xff]
    %v141 = vld [vmem:[#allocation3 + $0x58] sm:$0xff]
    %v142 = vld [vmem:[#allocation3 + $0x60] sm:$0xff]
    %v143 = vld [vmem:[#allocation3 + $0x68] sm:$0xff]
    %v144 = vld [vmem:[#allocation3 + $0x70] sm:$0xff]
    %v145 = vld [vmem:[#allocation3 + $0x78] sm:$0xff]
    %v146 = vld [vmem:[#allocation3 + $0x80] sm:$0xff]
    %v147 = vld [vmem:[#allocation3 + $0x88] sm:$0xff]
    %v148 = vld [vmem:[#allocation3 + $0x90] sm:$0xff]
    %v149 = vld [vmem:[#allocation3 + $0x98] sm:$0xff]
    %v150 = vld [vmem:[#allocation3 + $0xa0] sm:$0xff]
    %v151 = vld [vmem:[#allocation3 + $0xa8] sm:$0xff]
    %v152 = vld [vmem:[#allocation3 + $0xb0] sm:$0xff]
    %v153 = vld [vmem:[#allocation3 + $0xb8] sm:$0xff]
    %v154 = vld [vmem:[#allocation3 + $0xc0] sm:$0xff]
    %v155 = vld [vmem:[#allocation3 + $0xc8] sm:$0xff]
    %v156 = vld [vmem:[#allocation3 + $0xd0] sm:$0xff]
    %v157 = vld [vmem:[#allocation3 + $0xd8] sm:$0xff]
    %v158 = vld [vmem:[#allocation3 + $0xe0] sm:$0xff]
    %v159 = vld [vmem:[#allocation3 + $0xe8] sm:$0xff]
    %v160 = vld [vmem:[#allocation3 + $0xf0] sm:$0xff]
    %v161 = vld [vmem:[#allocation3 + $0xf8] sm:$0xff]
    %v162 = vld [vmem:[#allocation3 + $0x100] sm:$0xff]
    %v163 = vld [vmem:[#allocation3 + $0x108] sm:$0xff]
    %v164 = vld [vmem:[#allocation3 + $0x110] sm:$0xff]
    %v165 = vld [vmem:[#allocation3 + $0x118] sm:$0xff]
    %v166 = vld [vmem:[#allocation3 + $0x120] sm:$0xff]
    %v167 = vld [vmem:[#allocation3 + $0x128] sm:$0xff]
    %v168 = vld [vmem:[#allocation3 + $0x130] sm:$0xff]
    %v169 = vld [vmem:[#allocation3 + $0x138] sm:$0xff]
    %v170 = vld [vmem:[#allocation3 + $0x140] sm:$0xff]
    %v171 = vld [vmem:[#allocation3 + $0x148] sm:$0xff]
    %v172 = vld [vmem:[#allocation3 + $0x150] sm:$0xff]
    %v173 = vld [vmem:[#allocation3 + $0x158] sm:$0xff]
    %v174 = vld [vmem:[#allocation3 + $0x160] sm:$0xff]
    %v175 = vld [vmem:[#allocation3 + $0x168] sm:$0xff]
    %v176 = vld [vmem:[#allocation3 + $0x170] sm:$0xff]
    %v177 = vld [vmem:[#allocation3 + $0x178] sm:$0xff]
    %v178 = vld [vmem:[#allocation6] sm:$0xff]
    %v179 = vld [vmem:[#allocation6 + $0x8] sm:$0xff]
    %v180 = vld [vmem:[#allocation6 + $0x10] sm:$0xff]
    %v181 = vld [vmem:[#allocation6 + $0x18] sm:$0xff]
    %v182 = vld [vmem:[#allocation6 + $0x20] sm:$0xff]
    %v183 = vld [vmem:[#allocation6 + $0x28] sm:$0xff]
    %v184 = vld [vmem:[#allocation6 + $0x30] sm:$0xff]
    %v185 = vld [vmem:[#allocation6 + $0x38] sm:$0xff]
    %v186 = vld [vmem:[#allocation6 + $0x40] sm:$0xff]
    %v187 = vld [vmem:[#allocation6 + $0x48] sm:$0xff]
    %v188 = vld [vmem:[#allocation6 + $0x50] sm:$0xff]
    %v189 = vld [vmem:[#allocation6 + $0x58] sm:$0xff]
    %v190 = vld [vmem:[#allocation6 + $0x60] sm:$0xff]
    %v191 = vld [vmem:[#allocation6 + $0x68] sm:$0xff]
    %v192 = vld [vmem:[#allocation6 + $0x70] sm:$0xff]
    %v193 = vld [vmem:[#allocation6 + $0x78] sm:$0xff]
    %v194 = vld [vmem:[#allocation6 + $0x80] sm:$0xff]
    %v195 = vld [vmem:[#allocation6 + $0x88] sm:$0xff]
    %v196 = vld [vmem:[#allocation6 + $0x90] sm:$0xff]
    %v197 = vld [vmem:[#allocation6 + $0x98] sm:$0xff]
    %v198 = vld [vmem:[#allocation6 + $0xa0] sm:$0xff]
    %v199 = vld [vmem:[#allocation6 + $0xa8] sm:$0xff]
    %v200 = vld [vmem:[#allocation6 + $0xb0] sm:$0xff]
    %v201 = vld [vmem:[#allocation6 + $0xb8] sm:$0xff]
    %v202 = vld [vmem:[#allocation6 + $0xc0] sm:$0xff]
    %v203 = vld [vmem:[#allocation6 + $0xc8] sm:$0xff]
    %v204 = vld [vmem:[#allocation6 + $0xd0] sm:$0xff]
    %v205 = vld [vmem:[#allocation6 + $0xd8] sm:$0xff]
    %v206 = vld [vmem:[#allocation6 + $0xe0] sm:$0xff]
    %v207 = vld [vmem:[#allocation6 + $0xe8] sm:$0xff]
    %v208 = vld [vmem:[#allocation6 + $0xf0] sm:$0xff]
    %v209 = vld [vmem:[#allocation6 + $0xf8] sm:$0xff]
    %v210 = vld [vmem:[#allocation6 + $0x100] sm:$0xff]
    %v211 = vld [vmem:[#allocation6 + $0x108] sm:$0xff]
    %v212 = vld [vmem:[#allocation6 + $0x110] sm:$0xff]
    %v213 = vld [vmem:[#allocation6 + $0x118] sm:$0xff]
    %v214 = vld [vmem:[#allocation6 + $0x120] sm:$0xff]
    %v215 = vld [vmem:[#allocation6 + $0x128] sm:$0xff]
    %v216 = vld [vmem:[#allocation6 + $0x130] sm:$0xff]
    %v217 = vld [vmem:[#allocation6 + $0x138] sm:$0xff]
    %v218 = vld [vmem:[#allocation6 + $0x140] sm:$0xff]
    %v219 = vld [vmem:[#allocation6 + $0x148] sm:$0xff]
    %v220 = vld [vmem:[#allocation6 + $0x150] sm:$0xff]
    %v221 = vld [vmem:[#allocation6 + $0x158] sm:$0xff]
    %v222 = vld [vmem:[#allocation6 + $0x160] sm:$0xff]
    %v223 = vld [vmem:[#allocation6 + $0x168] sm:$0xff]
    %v224 = vld [vmem:[#allocation6 + $0x170] sm:$0xff]
    %v225 = vld [vmem:[#allocation6 + $0x178] sm:$0xff]
    %v226 = vld [vmem:[#allocation6 + $0x180] sm:$0xff]
    %v227 = vld [vmem:[#allocation6 + $0x188] sm:$0xff]
    %v228 = vld [vmem:[#allocation6 + $0x190] sm:$0xff]
    %v229 = vld [vmem:[#allocation6 + $0x198] sm:$0xff]
    %v230 = vld [vmem:[#allocation6 + $0x1a0] sm:$0xff]
    %v231 = vld [vmem:[#allocation6 + $0x1a8] sm:$0xff]
    %v232 = vld [vmem:[#allocation6 + $0x1b0] sm:$0xff]
    %v233 = vld [vmem:[#allocation6 + $0x1b8] sm:$0xff]
    %v234 = vld [vmem:[#allocation6 + $0x1c0] sm:$0xff]
    %v235 = vld [vmem:[#allocation6 + $0x1c8] sm:$0xff]
    %v236 = vld [vmem:[#allocation6 + $0x1d0] sm:$0xff]
    %v237 = vld [vmem:[#allocation6 + $0x1d8] sm:$0xff]
    %v238 = vld [vmem:[#allocation6 + $0x1e0] sm:$0xff]
    %v239 = vld [vmem:[#allocation6 + $0x1e8] sm:$0xff]
    %v240 = vld [vmem:[#allocation6 + $0x1f0] sm:$0xff]
    %v241 = vld [vmem:[#allocation6 + $0x1f8] sm:$0xff]
    %v242 = vld [vmem:[#allocation6 + $0x200] sm:$0xff]
    %v243 = vld [vmem:[#allocation6 + $0x208] sm:$0xff]
    %v244 = vld [vmem:[#allocation6 + $0x210] sm:$0xff]
    %v245 = vld [vmem:[#allocation6 + $0x218] sm:$0xff]
    %v246 = vld [vmem:[#allocation6 + $0x220] sm:$0xff]
    %v247 = vld [vmem:[#allocation6 + $0x228] sm:$0xff]
    %v248 = vld [vmem:[#allocation6 + $0x230] sm:$0xff]
    %v249 = vld [vmem:[#allocation6 + $0x238] sm:$0xff]
    %v250 = vld [vmem:[#allocation6 + $0x240] sm:$0xff]
    %v251 = vld [vmem:[#allocation6 + $0x248] sm:$0xff]
    %v252 = vld [vmem:[#allocation6 + $0x250] sm:$0xff]
    %v253 = vld [vmem:[#allocation6 + $0x258] sm:$0xff]
    %v254 = vld [vmem:[#allocation6 + $0x260] sm:$0xff]
    %v255 = vld [vmem:[#allocation6 + $0x268] sm:$0xff]
    %v256 = vld [vmem:[#allocation6 + $0x270] sm:$0xff]
    %v257 = vld [vmem:[#allocation6 + $0x278] sm:$0xff]
    %v258 = vld [vmem:[#allocation6 + $0x280] sm:$0xff]
    %v259 = vld [vmem:[#allocation6 + $0x288] sm:$0xff]
    %v260 = vld [vmem:[#allocation6 + $0x290] sm:$0xff]
    %v261 = vld [vmem:[#allocation6 + $0x298] sm:$0xff]
    %v262 = vld [vmem:[#allocation6 + $0x2a0] sm:$0xff]
    %v263 = vld [vmem:[#allocation6 + $0x2a8] sm:$0xff]
    %v264 = vld [vmem:[#allocation6 + $0x2b0] sm:$0xff]
    %v265 = vld [vmem:[#allocation6 + $0x2b8] sm:$0xff]
    %v266 = vld [vmem:[#allocation6 + $0x2c0] sm:$0xff]
    %v267 = vld [vmem:[#allocation6 + $0x2c8] sm:$0xff]
    %v268 = vld [vmem:[#allocation6 + $0x2d0] sm:$0xff]
    %v269 = vld [vmem:[#allocation6 + $0x2d8] sm:$0xff]
    %v270 = vld [vmem:[#allocation6 + $0x2e0] sm:$0xff]
    %v271 = vld [vmem:[#allocation6 + $0x2e8] sm:$0xff]
    %v272 = vld [vmem:[#allocation6 + $0x2f0] sm:$0xff]
    %v273 = vld [vmem:[#allocation6 + $0x2f8] sm:$0xff]
    %v274 = vld [vmem:[#allocation6 + $0x300] sm:$0xff]
    %v275 = vld [vmem:[#allocation6 + $0x308] sm:$0xff]
    %v276 = vld [vmem:[#allocation6 + $0x310] sm:$0xff]
    %v277 = vld [vmem:[#allocation6 + $0x318] sm:$0xff]
    %v278 = vld [vmem:[#allocation6 + $0x320] sm:$0xff]
    %v279 = vld [vmem:[#allocation6 + $0x328] sm:$0xff]
    %v280 = vld [vmem:[#allocation6 + $0x330] sm:$0xff]
    %v281 = vld [vmem:[#allocation6 + $0x338] sm:$0xff]
    %v282 = vld [vmem:[#allocation6 + $0x340] sm:$0xff]
    %v283 = vld [vmem:[#allocation6 + $0x348] sm:$0xff]
    %v284 = vld [vmem:[#allocation6 + $0x350] sm:$0xff]
    %v285 = vld [vmem:[#allocation6 + $0x358] sm:$0xff]
    %v286 = vld [vmem:[#allocation6 + $0x360] sm:$0xff]
    %v287 = vld [vmem:[#allocation6 + $0x368] sm:$0xff]
    %v288 = vld [vmem:[#allocation6 + $0x370] sm:$0xff]
    %v289 = vld [vmem:[#allocation6 + $0x378] sm:$0xff]
    %v290 = vld [vmem:[#allocation6 + $0x380] sm:$0xff]
    %v291 = vld [vmem:[#allocation6 + $0x388] sm:$0xff]
    %v292 = vld [vmem:[#allocation6 + $0x390] sm:$0xff]
    %v293 = vld [vmem:[#allocation6 + $0x398] sm:$0xff]
    %v294 = vld [vmem:[#allocation6 + $0x3a0] sm:$0xff]
    %v295 = vld [vmem:[#allocation6 + $0x3a8] sm:$0xff]
    %v296 = vld [vmem:[#allocation6 + $0x3b0] sm:$0xff]
    %v297 = vld [vmem:[#allocation6 + $0x3b8] sm:$0xff]
    %v298 = vld [vmem:[#allocation6 + $0x3c0] sm:$0xff]
    %v299 = vld [vmem:[#allocation6 + $0x3c8] sm:$0xff]
    %v300 = vld [vmem:[#allocation6 + $0x3d0] sm:$0xff]
    %v301 = vld [vmem:[#allocation6 + $0x3d8] sm:$0xff]
    %v302 = vld [vmem:[#allocation6 + $0x3e0] sm:$0xff]
    %v303 = vld [vmem:[#allocation6 + $0x3e8] sm:$0xff]
    %v304 = vld [vmem:[#allocation6 + $0x3f0] sm:$0xff]
    %v305 = vld [vmem:[#allocation6 + $0x3f8] sm:$0xff]
    %v306 = vld [vmem:[#allocation6 + $0x400] sm:$0xff]
    %v307 = vld [vmem:[#allocation6 + $0x408] sm:$0xff]
    %v308 = vld [vmem:[#allocation6 + $0x410] sm:$0xff]
    %v309 = vld [vmem:[#allocation6 + $0x418] sm:$0xff]
    %v310 = vld [vmem:[#allocation6 + $0x420] sm:$0xff]
    %v311 = vld [vmem:[#allocation6 + $0x428] sm:$0xff]
    %v312 = vld [vmem:[#allocation6 + $0x430] sm:$0xff]
    %v313 = vld [vmem:[#allocation6 + $0x438] sm:$0xff]
    %v314 = vld [vmem:[#allocation6 + $0x440] sm:$0xff]
    %v315 = vld [vmem:[#allocation6 + $0x448] sm:$0xff]
    %v316 = vld [vmem:[#allocation6 + $0x450] sm:$0xff]
    %v317 = vld [vmem:[#allocation6 + $0x458] sm:$0xff]
    %v318 = vld [vmem:[#allocation6 + $0x460] sm:$0xff]
    %v319 = vld [vmem:[#allocation6 + $0x468] sm:$0xff]
    %v320 = vld [vmem:[#allocation6 + $0x470] sm:$0xff]
    %v321 = vld [vmem:[#allocation6 + $0x478] sm:$0xff]
    %v322 = vld [vmem:[#allocation6 + $0x480] sm:$0xff]
    %v323 = vld [vmem:[#allocation6 + $0x488] sm:$0xff]
    %v324 = vld [vmem:[#allocation6 + $0x490] sm:$0xff]
    %v325 = vld [vmem:[#allocation6 + $0x498] sm:$0xff]
    %v326 = vld [vmem:[#allocation6 + $0x4a0] sm:$0xff]
    %v327 = vld [vmem:[#allocation6 + $0x4a8] sm:$0xff]
    %v328 = vld [vmem:[#allocation6 + $0x4b0] sm:$0xff]
    %v329 = vld [vmem:[#allocation6 + $0x4b8] sm:$0xff]
    %v330 = vld [vmem:[#allocation6 + $0x4c0] sm:$0xff]
    %v331 = vld [vmem:[#allocation6 + $0x4c8] sm:$0xff]
    %v332 = vld [vmem:[#allocation6 + $0x4d0] sm:$0xff]
    %v333 = vld [vmem:[#allocation6 + $0x4d8] sm:$0xff]
    %v334 = vld [vmem:[#allocation6 + $0x4e0] sm:$0xff]
    %v335 = vld [vmem:[#allocation6 + $0x4e8] sm:$0xff]
    %v336 = vld [vmem:[#allocation6 + $0x4f0] sm:$0xff]
    %v337 = vld [vmem:[#allocation6 + $0x4f8] sm:$0xff]
    %v338 = vld [vmem:[#allocation6 + $0x500] sm:$0xff]
    %v339 = vld [vmem:[#allocation6 + $0x508] sm:$0xff]
    %v340 = vld [vmem:[#allocation6 + $0x510] sm:$0xff]
    %v341 = vld [vmem:[#allocation6 + $0x518] sm:$0xff]
    %v342 = vld [vmem:[#allocation6 + $0x520] sm:$0xff]
    %v343 = vld [vmem:[#allocation6 + $0x528] sm:$0xff]
    %v344 = vld [vmem:[#allocation6 + $0x530] sm:$0xff]
    %v345 = vld [vmem:[#allocation6 + $0x538] sm:$0xff]
    %v346 = vld [vmem:[#allocation6 + $0x540] sm:$0xff]
    %v347 = vld [vmem:[#allocation6 + $0x548] sm:$0xff]
    %v348 = vld [vmem:[#allocation6 + $0x550] sm:$0xff]
    %v349 = vld [vmem:[#allocation6 + $0x558] sm:$0xff]
    %v350 = vld [vmem:[#allocation6 + $0x560] sm:$0xff]
    %v351 = vld [vmem:[#allocation6 + $0x568] sm:$0xff]
    %v352 = vld [vmem:[#allocation6 + $0x570] sm:$0xff]
    %v353 = vld [vmem:[#allocation6 + $0x578] sm:$0xff]
    %v354 = vld [vmem:[#allocation6 + $0x580] sm:$0xff]
    %v355 = vld [vmem:[#allocation6 + $0x588] sm:$0xff]
    %v356 = vld [vmem:[#allocation6 + $0x590] sm:$0xff]
    %v357 = vld [vmem:[#allocation6 + $0x598] sm:$0xff]
    %v358 = vld [vmem:[#allocation6 + $0x5a0] sm:$0xff]
    %v359 = vld [vmem:[#allocation6 + $0x5a8] sm:$0xff]
    %v360 = vld [vmem:[#allocation6 + $0x5b0] sm:$0xff]
    %v361 = vld [vmem:[#allocation6 + $0x5b8] sm:$0xff]
    %v362 = vld [vmem:[#allocation6 + $0x5c0] sm:$0xff]
    %v363 = vld [vmem:[#allocation6 + $0x5c8] sm:$0xff]
    %v364 = vld [vmem:[#allocation6 + $0x5d0] sm:$0xff]
    %v365 = vld [vmem:[#allocation6 + $0x5d8] sm:$0xff]
    %v366 = vld [vmem:[#allocation6 + $0x5e0] sm:$0xff]
    %v367 = vld [vmem:[#allocation6 + $0x5e8] sm:$0xff]
    %v368 = vld [vmem:[#allocation6 + $0x5f0] sm:$0xff]
    %v369 = vld [vmem:[#allocation6 + $0x5f8] sm:$0xff]
    %v370 = vld [vmem:[#allocation6 + $0x600] sm:$0xff]
    %v371 = vld [vmem:[#allocation6 + $0x608] sm:$0xff]
    %v372 = vld [vmem:[#allocation6 + $0x610] sm:$0xff]
    %v373 = vld [vmem:[#allocation6 + $0x618] sm:$0xff]
    %v374 = vld [vmem:[#allocation6 + $0x620] sm:$0xff]
    %v375 = vld [vmem:[#allocation6 + $0x628] sm:$0xff]
    %v376 = vld [vmem:[#allocation6 + $0x630] sm:$0xff]
    %v377 = vld [vmem:[#allocation6 + $0x638] sm:$0xff]
    %v378 = vld [vmem:[#allocation6 + $0x640] sm:$0xff]
    %v379 = vld [vmem:[#allocation6 + $0x648] sm:$0xff]
    %v380 = vld [vmem:[#allocation6 + $0x650] sm:$0xff]
    %v381 = vld [vmem:[#allocation6 + $0x658] sm:$0xff]
    %v382 = vld [vmem:[#allocation6 + $0x660] sm:$0xff]
    %v383 = vld [vmem:[#allocation6 + $0x668] sm:$0xff]
    %v384 = vld [vmem:[#allocation6 + $0x670] sm:$0xff]
    %v385 = vld [vmem:[#allocation6 + $0x678] sm:$0xff]
    %v386 = vld [vmem:[#allocation6 + $0x680] sm:$0xff]
    %v387 = vld [vmem:[#allocation6 + $0x688] sm:$0xff]
    %v388 = vld [vmem:[#allocation6 + $0x690] sm:$0xff]
    %v389 = vld [vmem:[#allocation6 + $0x698] sm:$0xff]
    %v390 = vld [vmem:[#allocation6 + $0x6a0] sm:$0xff]
    %v391 = vld [vmem:[#allocation6 + $0x6a8] sm:$0xff]
    %v392 = vld [vmem:[#allocation6 + $0x6b0] sm:$0xff]
    %v393 = vld [vmem:[#allocation6 + $0x6b8] sm:$0xff]
    %v394 = vld [vmem:[#allocation6 + $0x6c0] sm:$0xff]
    %v395 = vld [vmem:[#allocation6 + $0x6c8] sm:$0xff]
    %v396 = vld [vmem:[#allocation6 + $0x6d0] sm:$0xff]
    %v397 = vld [vmem:[#allocation6 + $0x6d8] sm:$0xff]
    %v398 = vld [vmem:[#allocation6 + $0x6e0] sm:$0xff]
    %v399 = vld [vmem:[#allocation6 + $0x6e8] sm:$0xff]
    %v400 = vld [vmem:[#allocation6 + $0x6f0] sm:$0xff]
    %v401 = vld [vmem:[#allocation6 + $0x6f8] sm:$0xff]
    %v402 = vld [vmem:[#allocation6 + $0x700] sm:$0xff]
    %v403 = vld [vmem:[#allocation6 + $0x708] sm:$0xff]
    %v404 = vld [vmem:[#allocation6 + $0x710] sm:$0xff]
    %v405 = vld [vmem:[#allocation6 + $0x718] sm:$0xff]
    %v406 = vld [vmem:[#allocation6 + $0x720] sm:$0xff]
    %v407 = vld [vmem:[#allocation6 + $0x728] sm:$0xff]
    %v408 = vld [vmem:[#allocation6 + $0x730] sm:$0xff]
    %v409 = vld [vmem:[#allocation6 + $0x738] sm:$0xff]
    %v410 = vld [vmem:[#allocation6 + $0x740] sm:$0xff]
    %v411 = vld [vmem:[#allocation6 + $0x748] sm:$0xff]
    %v412 = vld [vmem:[#allocation6 + $0x750] sm:$0xff]
    %v413 = vld [vmem:[#allocation6 + $0x758] sm:$0xff]
    %v414 = vld [vmem:[#allocation6 + $0x760] sm:$0xff]
    %v415 = vld [vmem:[#allocation6 + $0x768] sm:$0xff]
    %v416 = vld [vmem:[#allocation6 + $0x770] sm:$0xff]
    %v417 = vld [vmem:[#allocation6 + $0x778] sm:$0xff]
    %v418 = vld [vmem:[#allocation6 + $0x780] sm:$0xff]
    %v419 = vld [vmem:[#allocation6 + $0x788] sm:$0xff]
    %v420 = vld [vmem:[#allocation6 + $0x790] sm:$0xff]
    %v421 = vld [vmem:[#allocation6 + $0x798] sm:$0xff]
    %v422 = vld [vmem:[#allocation6 + $0x7a0] sm:$0xff]
    %v423 = vld [vmem:[#allocation6 + $0x7a8] sm:$0xff]
    %v424 = vld [vmem:[#allocation6 + $0x7b0] sm:$0xff]
    %v425 = vld [vmem:[#allocation6 + $0x7b8] sm:$0xff]
    %v426 = vld [vmem:[#allocation6 + $0x7c0] sm:$0xff]
    %v427 = vld [vmem:[#allocation6 + $0x7c8] sm:$0xff]
    %v428 = vld [vmem:[#allocation6 + $0x7d0] sm:$0xff]
    %v429 = vld [vmem:[#allocation6 + $0x7d8] sm:$0xff]
    %v430 = vld [vmem:[#allocation6 + $0x7e0] sm:$0xff]
    %v431 = vld [vmem:[#allocation6 + $0x7e8] sm:$0xff]
    %v432 = vld [vmem:[#allocation6 + $0x7f0] sm:$0xff]
    %v433 = vld [vmem:[#allocation6 + $0x7f8] sm:$0xff]
    %v434 = vld [vmem:[#allocation6 + $0x800] sm:$0xff]
    %v435 = vld [vmem:[#allocation6 + $0x808] sm:$0xff]
    %v436 = vld [vmem:[#allocation6 + $0x810] sm:$0xff]
    %v437 = vld [vmem:[#allocation6 + $0x818] sm:$0xff]
    %v438 = vld [vmem:[#allocation6 + $0x820] sm:$0xff]
    %v439 = vld [vmem:[#allocation6 + $0x828] sm:$0xff]
    %v440 = vld [vmem:[#allocation6 + $0x830] sm:$0xff]
    %v441 = vld [vmem:[#allocation6 + $0x838] sm:$0xff]
    %v442 = vld [vmem:[#allocation6 + $0x840] sm:$0xff]
    %v443 = vld [vmem:[#allocation6 + $0x848] sm:$0xff]
    %v444 = vld [vmem:[#allocation6 + $0x850] sm:$0xff]
    %v445 = vld [vmem:[#allocation6 + $0x858] sm:$0xff]
    %v446 = vld [vmem:[#allocation6 + $0x860] sm:$0xff]
    %v447 = vld [vmem:[#allocation6 + $0x868] sm:$0xff]
    %v448 = vld [vmem:[#allocation6 + $0x870] sm:$0xff]
    %v449 = vld [vmem:[#allocation6 + $0x878] sm:$0xff]
    %v450 = vld [vmem:[#allocation6 + $0x880] sm:$0xff]
    %v451 = vld [vmem:[#allocation6 + $0x888] sm:$0xff]
    %v452 = vld [vmem:[#allocation6 + $0x890] sm:$0xff]
    %v453 = vld [vmem:[#allocation6 + $0x898] sm:$0xff]
    %v454 = vld [vmem:[#allocation6 + $0x8a0] sm:$0xff]
    %v455 = vld [vmem:[#allocation6 + $0x8a8] sm:$0xff]
    %v456 = vld [vmem:[#allocation6 + $0x8b0] sm:$0xff]
    %v457 = vld [vmem:[#allocation6 + $0x8b8] sm:$0xff]
    %v458 = vld [vmem:[#allocation6 + $0x8c0] sm:$0xff]
    %v459 = vld [vmem:[#allocation6 + $0x8c8] sm:$0xff]
    %v460 = vld [vmem:[#allocation6 + $0x8d0] sm:$0xff]
    %v461 = vld [vmem:[#allocation6 + $0x8d8] sm:$0xff]
    %v462 = vld [vmem:[#allocation6 + $0x8e0] sm:$0xff]
    %v463 = vld [vmem:[#allocation6 + $0x8e8] sm:$0xff]
    %v464 = vld [vmem:[#allocation6 + $0x8f0] sm:$0xff]
    %v465 = vld [vmem:[#allocation6 + $0x8f8] sm:$0xff]
    %v466 = vld [vmem:[#allocation6 + $0x900] sm:$0xff]
    %v467 = vld [vmem:[#allocation6 + $0x908] sm:$0xff]
    %v468 = vld [vmem:[#allocation6 + $0x910] sm:$0xff]
    %v469 = vld [vmem:[#allocation6 + $0x918] sm:$0xff]
    %v470 = vld [vmem:[#allocation6 + $0x920] sm:$0xff]
    %v471 = vld [vmem:[#allocation6 + $0x928] sm:$0xff]
    %v472 = vld [vmem:[#allocation6 + $0x930] sm:$0xff]
    %v473 = vld [vmem:[#allocation6 + $0x938] sm:$0xff]
    %v474 = vld [vmem:[#allocation6 + $0x940] sm:$0xff]
    %v475 = vld [vmem:[#allocation6 + $0x948] sm:$0xff]
    %v476 = vld [vmem:[#allocation6 + $0x950] sm:$0xff]
    %v477 = vld [vmem:[#allocation6 + $0x958] sm:$0xff]
    %v478 = vld [vmem:[#allocation6 + $0x960] sm:$0xff]
    %v479 = vld [vmem:[#allocation6 + $0x968] sm:$0xff]
    %v480 = vld [vmem:[#allocation6 + $0x970] sm:$0xff]
    %v481 = vld [vmem:[#allocation6 + $0x978] sm:$0xff]
    %v482 = vld [vmem:[#allocation6 + $0x980] sm:$0xff]
    %v483 = vld [vmem:[#allocation6 + $0x988] sm:$0xff]
    %v484 = vld [vmem:[#allocation6 + $0x990] sm:$0xff]
    %v485 = vld [vmem:[#allocation6 + $0x998] sm:$0xff]
    %v486 = vld [vmem:[#allocation6 + $0x9a0] sm:$0xff]
    %v487 = vld [vmem:[#allocation6 + $0x9a8] sm:$0xff]
    %v488 = vld [vmem:[#allocation6 + $0x9b0] sm:$0xff]
    %v489 = vld [vmem:[#allocation6 + $0x9b8] sm:$0xff]
    %v490 = vld [vmem:[#allocation6 + $0x9c0] sm:$0xff]
    %v491 = vld [vmem:[#allocation6 + $0x9c8] sm:$0xff]
    %v492 = vld [vmem:[#allocation6 + $0x9d0] sm:$0xff]
    %v493 = vld [vmem:[#allocation6 + $0x9d8] sm:$0xff]
    %v494 = vld [vmem:[#allocation6 + $0x9e0] sm:$0xff]
    %v495 = vld [vmem:[#allocation6 + $0x9e8] sm:$0xff]
    %v496 = vld [vmem:[#allocation6 + $0x9f0] sm:$0xff]
    %v497 = vld [vmem:[#allocation6 + $0x9f8] sm:$0xff]
    %v498 = vld [vmem:[#allocation6 + $0xa00] sm:$0xff]
    %v499 = vld [vmem:[#allocation6 + $0xa08] sm:$0xff]
    %v500 = vld [vmem:[#allocation6 + $0xa10] sm:$0xff]
    %v501 = vld [vmem:[#allocation6 + $0xa18] sm:$0xff]
    %v502 = vld [vmem:[#allocation6 + $0xa20] sm:$0xff]
    %v503 = vld [vmem:[#allocation6 + $0xa28] sm:$0xff]
    %v504 = vld [vmem:[#allocation6 + $0xa30] sm:$0xff]
    %v505 = vld [vmem:[#allocation6 + $0xa38] sm:$0xff]
    %v506 = vld [vmem:[#allocation6 + $0xa40] sm:$0xff]
    %v507 = vld [vmem:[#allocation6 + $0xa48] sm:$0xff]
    %v508 = vld [vmem:[#allocation6 + $0xa50] sm:$0xff]
    %v509 = vld [vmem:[#allocation6 + $0xa58] sm:$0xff]
    %v510 = vld [vmem:[#allocation6 + $0xa60] sm:$0xff]
    %v511 = vld [vmem:[#allocation6 + $0xa68] sm:$0xff]
    %v512 = vld [vmem:[#allocation6 + $0xa70] sm:$0xff]
    %v513 = vld [vmem:[#allocation6 + $0xa78] sm:$0xff]
    %v514 = vld [vmem:[#allocation6 + $0xa80] sm:$0xff]
    %v515 = vld [vmem:[#allocation6 + $0xa88] sm:$0xff]
    %v516 = vld [vmem:[#allocation6 + $0xa90] sm:$0xff]
    %v517 = vld [vmem:[#allocation6 + $0xa98] sm:$0xff]
    %v518 = vld [vmem:[#allocation6 + $0xaa0] sm:$0xff]
    %v519 = vld [vmem:[#allocation6 + $0xaa8] sm:$0xff]
    %v520 = vld [vmem:[#allocation6 + $0xab0] sm:$0xff]
    %v521 = vld [vmem:[#allocation6 + $0xab8] sm:$0xff]
    %v522 = vld [vmem:[#allocation6 + $0xac0] sm:$0xff]
    %v523 = vld [vmem:[#allocation6 + $0xac8] sm:$0xff]
    %v524 = vld [vmem:[#allocation6 + $0xad0] sm:$0xff]
    %v525 = vld [vmem:[#allocation6 + $0xad8] sm:$0xff]
    %v526 = vld [vmem:[#allocation6 + $0xae0] sm:$0xff]
    %v527 = vld [vmem:[#allocation6 + $0xae8] sm:$0xff]
    %v528 = vld [vmem:[#allocation6 + $0xaf0] sm:$0xff]
    %v529 = vld [vmem:[#allocation6 + $0xaf8] sm:$0xff]
    %v530 = vld [vmem:[#allocation6 + $0xb00] sm:$0xff]
    %v531 = vld [vmem:[#allocation6 + $0xb08] sm:$0xff]
    %v532 = vld [vmem:[#allocation6 + $0xb10] sm:$0xff]
    %v533 = vld [vmem:[#allocation6 + $0xb18] sm:$0xff]
    %v534 = vld [vmem:[#allocation6 + $0xb20] sm:$0xff]
    %v535 = vld [vmem:[#allocation6 + $0xb28] sm:$0xff]
    %v536 = vld [vmem:[#allocation6 + $0xb30] sm:$0xff]
    %v537 = vld [vmem:[#allocation6 + $0xb38] sm:$0xff]
    %v538 = vld [vmem:[#allocation6 + $0xb40] sm:$0xff]
    %v539 = vld [vmem:[#allocation6 + $0xb48] sm:$0xff]
    %v540 = vld [vmem:[#allocation6 + $0xb50] sm:$0xff]
    %v541 = vld [vmem:[#allocation6 + $0xb58] sm:$0xff]
    %v542 = vld [vmem:[#allocation6 + $0xb60] sm:$0xff]
    %v543 = vld [vmem:[#allocation6 + $0xb68] sm:$0xff]
    %v544 = vld [vmem:[#allocation6 + $0xb70] sm:$0xff]
    %v545 = vld [vmem:[#allocation6 + $0xb78] sm:$0xff]
    %v546 = vld [vmem:[#allocation6 + $0xb80] sm:$0xff]
    %v547 = vld [vmem:[#allocation6 + $0xb88] sm:$0xff]
    %v548 = vld [vmem:[#allocation6 + $0xb90] sm:$0xff]
    %v549 = vld [vmem:[#allocation6 + $0xb98] sm:$0xff]
    %v550 = vld [vmem:[#allocation6 + $0xba0] sm:$0xff]
    %v551 = vld [vmem:[#allocation6 + $0xba8] sm:$0xff]
    %v552 = vld [vmem:[#allocation6 + $0xbb0] sm:$0xff]
    %v553 = vld [vmem:[#allocation6 + $0xbb8] sm:$0xff]
    %v554 = vld [vmem:[#allocation6 + $0xbc0] sm:$0xff]
    %v555 = vld [vmem:[#allocation6 + $0xbc8] sm:$0xff]
    %v556 = vld [vmem:[#allocation6 + $0xbd0] sm:$0xff]
    %v557 = vld [vmem:[#allocation6 + $0xbd8] sm:$0xff]
    %v558 = vld [vmem:[#allocation6 + $0xbe0] sm:$0xff]
    %v559 = vld [vmem:[#allocation6 + $0xbe8] sm:$0xff]
    %v560 = vld [vmem:[#allocation6 + $0xbf0] sm:$0xff]
    %v561 = vld [vmem:[#allocation6 + $0xbf8] sm:$0xff]
    %v562 = vld [vmem:[#allocation8] sm:$0xff]
    %v564 = vperm.slane %v562, 0
    %v565 = vperm.slane %v562, 1
    %v566 = vperm.slane %v562, 2
    %v567 = vperm.slane %v562, 3
    %v568 = vperm.slane %v562, 4
    %v569 = vperm.slane %v562, 5
    %v570 = vperm.slane %v562, 6
    %v571 = vperm.slane %v562, 7
    %v628 = vunpack.c.l.b16 %v130
    %v629 = vunpack.c.h.b16 %v130
    %v630 = vunpack.c.l.b16 %v131
    %v631 = vunpack.c.h.b16 %v131
    %v632 = vunpack.c.l.b16 %v132
    %v633 = vunpack.c.h.b16 %v132
    %v634 = vunpack.c.l.b16 %v133
    %v635 = vunpack.c.h.b16 %v133
    %v636 = vunpack.c.l.b16 %v134
    %v637 = vunpack.c.h.b16 %v134
    %v638 = vunpack.c.l.b16 %v135
    %v639 = vunpack.c.h.b16 %v135
    %v640 = vunpack.c.l.b16 %v136
    %v641 = vunpack.c.h.b16 %v136
    %v642 = vunpack.c.l.b16 %v137
    %v643 = vunpack.c.h.b16 %v137
    %v644 = vunpack.c.l.b16 %v138
    %v645 = vunpack.c.h.b16 %v138
    %v646 = vunpack.c.l.b16 %v139
    %v647 = vunpack.c.h.b16 %v139
    %v648 = vunpack.c.l.b16 %v140
    %v649 = vunpack.c.h.b16 %v140
    %v650 = vunpack.c.l.b16 %v141
    %v651 = vunpack.c.h.b16 %v141
    %v652 = vunpack.c.l.b16 %v142
    %v653 = vunpack.c.h.b16 %v142
    %v654 = vunpack.c.l.b16 %v143
    %v655 = vunpack.c.h.b16 %v143
    %v656 = vunpack.c.l.b16 %v144
    %v657 = vunpack.c.h.b16 %v144
    %v658 = vunpack.c.l.b16 %v145
    %v659 = vunpack.c.h.b16 %v145
    %v660 = vunpack.c.l.b16 %v146
    %v661 = vunpack.c.h.b16 %v146
    %v662 = vunpack.c.l.b16 %v147
    %v663 = vunpack.c.h.b16 %v147
    %v664 = vunpack.c.l.b16 %v148
    %v665 = vunpack.c.h.b16 %v148
    %v666 = vunpack.c.l.b16 %v149
    %v667 = vunpack.c.h.b16 %v149
    %v668 = vunpack.c.l.b16 %v150
    %v669 = vunpack.c.h.b16 %v150
    %v670 = vunpack.c.l.b16 %v151
    %v671 = vunpack.c.h.b16 %v151
    %v672 = vunpack.c.l.b16 %v152
    %v673 = vunpack.c.h.b16 %v152
    %v674 = vunpack.c.l.b16 %v153
    %v675 = vunpack.c.h.b16 %v153
    %v676 = vunpack.c.l.b16 %v154
    %v677 = vunpack.c.h.b16 %v154
    %v678 = vunpack.c.l.b16 %v155
    %v679 = vunpack.c.h.b16 %v155
    %v680 = vunpack.c.l.b16 %v156
    %v681 = vunpack.c.h.b16 %v156
    %v682 = vunpack.c.l.b16 %v157
    %v683 = vunpack.c.h.b16 %v157
    %v684 = vunpack.c.l.b16 %v158
    %v685 = vunpack.c.h.b16 %v158
    %v686 = vunpack.c.l.b16 %v159
    %v687 = vunpack.c.h.b16 %v159
    %v688 = vunpack.c.l.b16 %v160
    %v689 = vunpack.c.h.b16 %v160
    %v690 = vunpack.c.l.b16 %v161
    %v691 = vunpack.c.h.b16 %v161
    %v692 = vunpack.c.l.b16 %v162
    %v693 = vunpack.c.h.b16 %v162
    %v694 = vunpack.c.l.b16 %v163
    %v695 = vunpack.c.h.b16 %v163
    %v696 = vunpack.c.l.b16 %v164
    %v697 = vunpack.c.h.b16 %v164
    %v698 = vunpack.c.l.b16 %v165
    %v699 = vunpack.c.h.b16 %v165
    %v700 = vunpack.c.l.b16 %v166
    %v701 = vunpack.c.h.b16 %v166
    %v702 = vunpack.c.l.b16 %v167
    %v703 = vunpack.c.h.b16 %v167
    %v704 = vunpack.c.l.b16 %v168
    %v705 = vunpack.c.h.b16 %v168
    %v706 = vunpack.c.l.b16 %v169
    %v707 = vunpack.c.h.b16 %v169
    %v708 = vunpack.c.l.b16 %v170
    %v709 = vunpack.c.h.b16 %v170
    %v710 = vunpack.c.l.b16 %v171
    %v711 = vunpack.c.h.b16 %v171
    %v712 = vunpack.c.l.b16 %v172
    %v713 = vunpack.c.h.b16 %v172
    %v714 = vunpack.c.l.b16 %v173
    %v715 = vunpack.c.h.b16 %v173
    %v716 = vunpack.c.l.b16 %v174
    %v717 = vunpack.c.h.b16 %v174
    %v718 = vunpack.c.l.b16 %v175
    %v719 = vunpack.c.h.b16 %v175
    %v720 = vunpack.c.l.b16 %v176
    %v721 = vunpack.c.h.b16 %v176
    %v722 = vunpack.c.l.b16 %v177
    %v723 = vunpack.c.h.b16 %v177
    %v724 = vpack.c.b16 %v634, %v628
    %v725 = vpack.c.b16 %v635, %v629
    %v726 = vpack.c.b16 %v636, %v630
    %v727 = vpack.c.b16 %v637, %v631
    %v728 = vpack.c.b16 %v638, %v632
    %v729 = vpack.c.b16 %v639, %v633
    %v730 = vpack.c.b16 %v646, %v640
    %v731 = vpack.c.b16 %v647, %v641
    %v732 = vpack.c.b16 %v648, %v642
    %v733 = vpack.c.b16 %v649, %v643
    %v734 = vpack.c.b16 %v650, %v644
    %v735 = vpack.c.b16 %v651, %v645
    %v736 = vpack.c.b16 %v658, %v652
    %v737 = vpack.c.b16 %v659, %v653
    %v738 = vpack.c.b16 %v660, %v654
    %v739 = vpack.c.b16 %v661, %v655
    %v740 = vpack.c.b16 %v662, %v656
    %v741 = vpack.c.b16 %v663, %v657
    %v742 = vpack.c.b16 %v670, %v664
    %v743 = vpack.c.b16 %v671, %v665
    %v744 = vpack.c.b16 %v672, %v666
    %v745 = vpack.c.b16 %v673, %v667
    %v746 = vpack.c.b16 %v674, %v668
    %v747 = vpack.c.b16 %v675, %v669
    %v748 = vpack.c.b16 %v682, %v676
    %v749 = vpack.c.b16 %v683, %v677
    %v750 = vpack.c.b16 %v684, %v678
    %v751 = vpack.c.b16 %v685, %v679
    %v752 = vpack.c.b16 %v686, %v680
    %v753 = vpack.c.b16 %v687, %v681
    %v754 = vpack.c.b16 %v694, %v688
    %v755 = vpack.c.b16 %v695, %v689
    %v756 = vpack.c.b16 %v696, %v690
    %v757 = vpack.c.b16 %v697, %v691
    %v758 = vpack.c.b16 %v698, %v692
    %v759 = vpack.c.b16 %v699, %v693
    %v760 = vpack.c.b16 %v706, %v700
    %v761 = vpack.c.b16 %v707, %v701
    %v762 = vpack.c.b16 %v708, %v702
    %v763 = vpack.c.b16 %v709, %v703
    %v764 = vpack.c.b16 %v710, %v704
    %v765 = vpack.c.b16 %v711, %v705
    %v766 = vpack.c.b16 %v718, %v712
    %v767 = vpack.c.b16 %v719, %v713
    %v768 = vpack.c.b16 %v720, %v714
    %v769 = vpack.c.b16 %v721, %v715
    %v770 = vpack.c.b16 %v722, %v716
    %v771 = vpack.c.b16 %v723, %v717
    %v1204 = vunpack.c.l.b16 %v178
    %v1205 = vunpack.c.h.b16 %v178
    %v1206 = vunpack.c.l.b16 %v179
    %v1207 = vunpack.c.h.b16 %v179
    %v1208 = vunpack.c.l.b16 %v180
    %v1209 = vunpack.c.h.b16 %v180
    %v1210 = vunpack.c.l.b16 %v181
    %v1211 = vunpack.c.h.b16 %v181
    %v1212 = vunpack.c.l.b16 %v182
    %v1213 = vunpack.c.h.b16 %v182
    %v1214 = vunpack.c.l.b16 %v183
    %v1215 = vunpack.c.h.b16 %v183
    %v1216 = vunpack.c.l.b16 %v184
    %v1217 = vunpack.c.h.b16 %v184
    %v1218 = vunpack.c.l.b16 %v185
    %v1219 = vunpack.c.h.b16 %v185
    %v1220 = vunpack.c.l.b16 %v186
    %v1221 = vunpack.c.h.b16 %v186
    %v1222 = vunpack.c.l.b16 %v187
    %v1223 = vunpack.c.h.b16 %v187
    %v1224 = vunpack.c.l.b16 %v188
    %v1225 = vunpack.c.h.b16 %v188
    %v1226 = vunpack.c.l.b16 %v189
    %v1227 = vunpack.c.h.b16 %v189
    %v1228 = vunpack.c.l.b16 %v190
    %v1229 = vunpack.c.h.b16 %v190
    %v1230 = vunpack.c.l.b16 %v191
    %v1231 = vunpack.c.h.b16 %v191
    %v1232 = vunpack.c.l.b16 %v192
    %v1233 = vunpack.c.h.b16 %v192
    %v1234 = vunpack.c.l.b16 %v193
    %v1235 = vunpack.c.h.b16 %v193
    %v1236 = vunpack.c.l.b16 %v194
    %v1237 = vunpack.c.h.b16 %v194
    %v1238 = vunpack.c.l.b16 %v195
    %v1239 = vunpack.c.h.b16 %v195
    %v1240 = vunpack.c.l.b16 %v196
    %v1241 = vunpack.c.h.b16 %v196
    %v1242 = vunpack.c.l.b16 %v197
    %v1243 = vunpack.c.h.b16 %v197
    %v1244 = vunpack.c.l.b16 %v198
    %v1245 = vunpack.c.h.b16 %v198
    %v1246 = vunpack.c.l.b16 %v199
    %v1247 = vunpack.c.h.b16 %v199
    %v1248 = vunpack.c.l.b16 %v200
    %v1249 = vunpack.c.h.b16 %v200
    %v1250 = vunpack.c.l.b16 %v201
    %v1251 = vunpack.c.h.b16 %v201
    %v1252 = vunpack.c.l.b16 %v202
    %v1253 = vunpack.c.h.b16 %v202
    %v1254 = vunpack.c.l.b16 %v203
    %v1255 = vunpack.c.h.b16 %v203
    %v1256 = vunpack.c.l.b16 %v204
    %v1257 = vunpack.c.h.b16 %v204
    %v1258 = vunpack.c.l.b16 %v205
    %v1259 = vunpack.c.h.b16 %v205
    %v1260 = vunpack.c.l.b16 %v206
    %v1261 = vunpack.c.h.b16 %v206
    %v1262 = vunpack.c.l.b16 %v207
    %v1263 = vunpack.c.h.b16 %v207
    %v1264 = vunpack.c.l.b16 %v208
    %v1265 = vunpack.c.h.b16 %v208
    %v1266 = vunpack.c.l.b16 %v209
    %v1267 = vunpack.c.h.b16 %v209
    %v1268 = vunpack.c.l.b16 %v210
    %v1269 = vunpack.c.h.b16 %v210
    %v1270 = vunpack.c.l.b16 %v211
    %v1271 = vunpack.c.h.b16 %v211
    %v1272 = vunpack.c.l.b16 %v212
    %v1273 = vunpack.c.h.b16 %v212
    %v1274 = vunpack.c.l.b16 %v213
    %v1275 = vunpack.c.h.b16 %v213
    %v1276 = vunpack.c.l.b16 %v214
    %v1277 = vunpack.c.h.b16 %v214
    %v1278 = vunpack.c.l.b16 %v215
    %v1279 = vunpack.c.h.b16 %v215
    %v1280 = vunpack.c.l.b16 %v216
    %v1281 = vunpack.c.h.b16 %v216
    %v1282 = vunpack.c.l.b16 %v217
    %v1283 = vunpack.c.h.b16 %v217
    %v1284 = vunpack.c.l.b16 %v218
    %v1285 = vunpack.c.h.b16 %v218
    %v1286 = vunpack.c.l.b16 %v219
    %v1287 = vunpack.c.h.b16 %v219
    %v1288 = vunpack.c.l.b16 %v220
    %v1289 = vunpack.c.h.b16 %v220
    %v1290 = vunpack.c.l.b16 %v221
    %v1291 = vunpack.c.h.b16 %v221
    %v1292 = vunpack.c.l.b16 %v222
    %v1293 = vunpack.c.h.b16 %v222
    %v1294 = vunpack.c.l.b16 %v223
    %v1295 = vunpack.c.h.b16 %v223
    %v1296 = vunpack.c.l.b16 %v224
    %v1297 = vunpack.c.h.b16 %v224
    %v1298 = vunpack.c.l.b16 %v225
    %v1299 = vunpack.c.h.b16 %v225
    %v1300 = vunpack.c.l.b16 %v226
    %v1301 = vunpack.c.h.b16 %v226
    %v1302 = vunpack.c.l.b16 %v227
    %v1303 = vunpack.c.h.b16 %v227
    %v1304 = vunpack.c.l.b16 %v228
    %v1305 = vunpack.c.h.b16 %v228
    %v1306 = vunpack.c.l.b16 %v229
    %v1307 = vunpack.c.h.b16 %v229
    %v1308 = vunpack.c.l.b16 %v230
    %v1309 = vunpack.c.h.b16 %v230
    %v1310 = vunpack.c.l.b16 %v231
    %v1311 = vunpack.c.h.b16 %v231
    %v1312 = vunpack.c.l.b16 %v232
    %v1313 = vunpack.c.h.b16 %v232
    %v1314 = vunpack.c.l.b16 %v233
    %v1315 = vunpack.c.h.b16 %v233
    %v1316 = vunpack.c.l.b16 %v234
    %v1317 = vunpack.c.h.b16 %v234
    %v1318 = vunpack.c.l.b16 %v235
    %v1319 = vunpack.c.h.b16 %v235
    %v1320 = vunpack.c.l.b16 %v236
    %v1321 = vunpack.c.h.b16 %v236
    %v1322 = vunpack.c.l.b16 %v237
    %v1323 = vunpack.c.h.b16 %v237
    %v1324 = vunpack.c.l.b16 %v238
    %v1325 = vunpack.c.h.b16 %v238
    %v1326 = vunpack.c.l.b16 %v239
    %v1327 = vunpack.c.h.b16 %v239
    %v1328 = vunpack.c.l.b16 %v240
    %v1329 = vunpack.c.h.b16 %v240
    %v1330 = vunpack.c.l.b16 %v241
    %v1331 = vunpack.c.h.b16 %v241
    %v1332 = vunpack.c.l.b16 %v242
    %v1333 = vunpack.c.h.b16 %v242
    %v1334 = vunpack.c.l.b16 %v243
    %v1335 = vunpack.c.h.b16 %v243
    %v1336 = vunpack.c.l.b16 %v244
    %v1337 = vunpack.c.h.b16 %v244
    %v1338 = vunpack.c.l.b16 %v245
    %v1339 = vunpack.c.h.b16 %v245
    %v1340 = vunpack.c.l.b16 %v246
    %v1341 = vunpack.c.h.b16 %v246
    %v1342 = vunpack.c.l.b16 %v247
    %v1343 = vunpack.c.h.b16 %v247
    %v1344 = vunpack.c.l.b16 %v248
    %v1345 = vunpack.c.h.b16 %v248
    %v1346 = vunpack.c.l.b16 %v249
    %v1347 = vunpack.c.h.b16 %v249
    %v1348 = vunpack.c.l.b16 %v250
    %v1349 = vunpack.c.h.b16 %v250
    %v1350 = vunpack.c.l.b16 %v251
    %v1351 = vunpack.c.h.b16 %v251
    %v1352 = vunpack.c.l.b16 %v252
    %v1353 = vunpack.c.h.b16 %v252
    %v1354 = vunpack.c.l.b16 %v253
    %v1355 = vunpack.c.h.b16 %v253
    %v1356 = vunpack.c.l.b16 %v254
    %v1357 = vunpack.c.h.b16 %v254
    %v1358 = vunpack.c.l.b16 %v255
    %v1359 = vunpack.c.h.b16 %v255
    %v1360 = vunpack.c.l.b16 %v256
    %v1361 = vunpack.c.h.b16 %v256
    %v1362 = vunpack.c.l.b16 %v257
    %v1363 = vunpack.c.h.b16 %v257
    %v1364 = vunpack.c.l.b16 %v258
    %v1365 = vunpack.c.h.b16 %v258
    %v1366 = vunpack.c.l.b16 %v259
    %v1367 = vunpack.c.h.b16 %v259
    %v1368 = vunpack.c.l.b16 %v260
    %v1369 = vunpack.c.h.b16 %v260
    %v1370 = vunpack.c.l.b16 %v261
    %v1371 = vunpack.c.h.b16 %v261
    %v1372 = vunpack.c.l.b16 %v262
    %v1373 = vunpack.c.h.b16 %v262
    %v1374 = vunpack.c.l.b16 %v263
    %v1375 = vunpack.c.h.b16 %v263
    %v1376 = vunpack.c.l.b16 %v264
    %v1377 = vunpack.c.h.b16 %v264
    %v1378 = vunpack.c.l.b16 %v265
    %v1379 = vunpack.c.h.b16 %v265
    %v1380 = vunpack.c.l.b16 %v266
    %v1381 = vunpack.c.h.b16 %v266
    %v1382 = vunpack.c.l.b16 %v267
    %v1383 = vunpack.c.h.b16 %v267
    %v1384 = vunpack.c.l.b16 %v268
    %v1385 = vunpack.c.h.b16 %v268
    %v1386 = vunpack.c.l.b16 %v269
    %v1387 = vunpack.c.h.b16 %v269
    %v1388 = vunpack.c.l.b16 %v270
    %v1389 = vunpack.c.h.b16 %v270
    %v1390 = vunpack.c.l.b16 %v271
    %v1391 = vunpack.c.h.b16 %v271
    %v1392 = vunpack.c.l.b16 %v272
    %v1393 = vunpack.c.h.b16 %v272
    %v1394 = vunpack.c.l.b16 %v273
    %v1395 = vunpack.c.h.b16 %v273
    %v1396 = vunpack.c.l.b16 %v274
    %v1397 = vunpack.c.h.b16 %v274
    %v1398 = vunpack.c.l.b16 %v275
    %v1399 = vunpack.c.h.b16 %v275
    %v1400 = vunpack.c.l.b16 %v276
    %v1401 = vunpack.c.h.b16 %v276
    %v1402 = vunpack.c.l.b16 %v277
    %v1403 = vunpack.c.h.b16 %v277
    %v1404 = vunpack.c.l.b16 %v278
    %v1405 = vunpack.c.h.b16 %v278
    %v1406 = vunpack.c.l.b16 %v279
    %v1407 = vunpack.c.h.b16 %v279
    %v1408 = vunpack.c.l.b16 %v280
    %v1409 = vunpack.c.h.b16 %v280
    %v1410 = vunpack.c.l.b16 %v281
    %v1411 = vunpack.c.h.b16 %v281
    %v1412 = vunpack.c.l.b16 %v282
    %v1413 = vunpack.c.h.b16 %v282
    %v1414 = vunpack.c.l.b16 %v283
    %v1415 = vunpack.c.h.b16 %v283
    %v1416 = vunpack.c.l.b16 %v284
    %v1417 = vunpack.c.h.b16 %v284
    %v1418 = vunpack.c.l.b16 %v285
    %v1419 = vunpack.c.h.b16 %v285
    %v1420 = vunpack.c.l.b16 %v286
    %v1421 = vunpack.c.h.b16 %v286
    %v1422 = vunpack.c.l.b16 %v287
    %v1423 = vunpack.c.h.b16 %v287
    %v1424 = vunpack.c.l.b16 %v288
    %v1425 = vunpack.c.h.b16 %v288
    %v1426 = vunpack.c.l.b16 %v289
    %v1427 = vunpack.c.h.b16 %v289
    %v1428 = vunpack.c.l.b16 %v290
    %v1429 = vunpack.c.h.b16 %v290
    %v1430 = vunpack.c.l.b16 %v291
    %v1431 = vunpack.c.h.b16 %v291
    %v1432 = vunpack.c.l.b16 %v292
    %v1433 = vunpack.c.h.b16 %v292
    %v1434 = vunpack.c.l.b16 %v293
    %v1435 = vunpack.c.h.b16 %v293
    %v1436 = vunpack.c.l.b16 %v294
    %v1437 = vunpack.c.h.b16 %v294
    %v1438 = vunpack.c.l.b16 %v295
    %v1439 = vunpack.c.h.b16 %v295
    %v1440 = vunpack.c.l.b16 %v296
    %v1441 = vunpack.c.h.b16 %v296
    %v1442 = vunpack.c.l.b16 %v297
    %v1443 = vunpack.c.h.b16 %v297
    %v1444 = vunpack.c.l.b16 %v298
    %v1445 = vunpack.c.h.b16 %v298
    %v1446 = vunpack.c.l.b16 %v299
    %v1447 = vunpack.c.h.b16 %v299
    %v1448 = vunpack.c.l.b16 %v300
    %v1449 = vunpack.c.h.b16 %v300
    %v1450 = vunpack.c.l.b16 %v301
    %v1451 = vunpack.c.h.b16 %v301
    %v1452 = vunpack.c.l.b16 %v302
    %v1453 = vunpack.c.h.b16 %v302
    %v1454 = vunpack.c.l.b16 %v303
    %v1455 = vunpack.c.h.b16 %v303
    %v1456 = vunpack.c.l.b16 %v304
    %v1457 = vunpack.c.h.b16 %v304
    %v1458 = vunpack.c.l.b16 %v305
    %v1459 = vunpack.c.h.b16 %v305
    %v1460 = vunpack.c.l.b16 %v306
    %v1461 = vunpack.c.h.b16 %v306
    %v1462 = vunpack.c.l.b16 %v307
    %v1463 = vunpack.c.h.b16 %v307
    %v1464 = vunpack.c.l.b16 %v308
    %v1465 = vunpack.c.h.b16 %v308
    %v1466 = vunpack.c.l.b16 %v309
    %v1467 = vunpack.c.h.b16 %v309
    %v1468 = vunpack.c.l.b16 %v310
    %v1469 = vunpack.c.h.b16 %v310
    %v1470 = vunpack.c.l.b16 %v311
    %v1471 = vunpack.c.h.b16 %v311
    %v1472 = vunpack.c.l.b16 %v312
    %v1473 = vunpack.c.h.b16 %v312
    %v1474 = vunpack.c.l.b16 %v313
    %v1475 = vunpack.c.h.b16 %v313
    %v1476 = vunpack.c.l.b16 %v314
    %v1477 = vunpack.c.h.b16 %v314
    %v1478 = vunpack.c.l.b16 %v315
    %v1479 = vunpack.c.h.b16 %v315
    %v1480 = vunpack.c.l.b16 %v316
    %v1481 = vunpack.c.h.b16 %v316
    %v1482 = vunpack.c.l.b16 %v317
    %v1483 = vunpack.c.h.b16 %v317
    %v1484 = vunpack.c.l.b16 %v318
    %v1485 = vunpack.c.h.b16 %v318
    %v1486 = vunpack.c.l.b16 %v319
    %v1487 = vunpack.c.h.b16 %v319
    %v1488 = vunpack.c.l.b16 %v320
    %v1489 = vunpack.c.h.b16 %v320
    %v1490 = vunpack.c.l.b16 %v321
    %v1491 = vunpack.c.h.b16 %v321
    %v1492 = vunpack.c.l.b16 %v322
    %v1493 = vunpack.c.h.b16 %v322
    %v1494 = vunpack.c.l.b16 %v323
    %v1495 = vunpack.c.h.b16 %v323
    %v1496 = vunpack.c.l.b16 %v324
    %v1497 = vunpack.c.h.b16 %v324
    %v1498 = vunpack.c.l.b16 %v325
    %v1499 = vunpack.c.h.b16 %v325
    %v1500 = vunpack.c.l.b16 %v326
    %v1501 = vunpack.c.h.b16 %v326
    %v1502 = vunpack.c.l.b16 %v327
    %v1503 = vunpack.c.h.b16 %v327
    %v1504 = vunpack.c.l.b16 %v328
    %v1505 = vunpack.c.h.b16 %v328
    %v1506 = vunpack.c.l.b16 %v329
    %v1507 = vunpack.c.h.b16 %v329
    %v1508 = vunpack.c.l.b16 %v330
    %v1509 = vunpack.c.h.b16 %v330
    %v1510 = vunpack.c.l.b16 %v331
    %v1511 = vunpack.c.h.b16 %v331
    %v1512 = vunpack.c.l.b16 %v332
    %v1513 = vunpack.c.h.b16 %v332
    %v1514 = vunpack.c.l.b16 %v333
    %v1515 = vunpack.c.h.b16 %v333
    %v1516 = vunpack.c.l.b16 %v334
    %v1517 = vunpack.c.h.b16 %v334
    %v1518 = vunpack.c.l.b16 %v335
    %v1519 = vunpack.c.h.b16 %v335
    %v1520 = vunpack.c.l.b16 %v336
    %v1521 = vunpack.c.h.b16 %v336
    %v1522 = vunpack.c.l.b16 %v337
    %v1523 = vunpack.c.h.b16 %v337
    %v1524 = vunpack.c.l.b16 %v338
    %v1525 = vunpack.c.h.b16 %v338
    %v1526 = vunpack.c.l.b16 %v339
    %v1527 = vunpack.c.h.b16 %v339
    %v1528 = vunpack.c.l.b16 %v340
    %v1529 = vunpack.c.h.b16 %v340
    %v1530 = vunpack.c.l.b16 %v341
    %v1531 = vunpack.c.h.b16 %v341
    %v1532 = vunpack.c.l.b16 %v342
    %v1533 = vunpack.c.h.b16 %v342
    %v1534 = vunpack.c.l.b16 %v343
    %v1535 = vunpack.c.h.b16 %v343
    %v1536 = vunpack.c.l.b16 %v344
    %v1537 = vunpack.c.h.b16 %v344
    %v1538 = vunpack.c.l.b16 %v345
    %v1539 = vunpack.c.h.b16 %v345
    %v1540 = vunpack.c.l.b16 %v346
    %v1541 = vunpack.c.h.b16 %v346
    %v1542 = vunpack.c.l.b16 %v347
    %v1543 = vunpack.c.h.b16 %v347
    %v1544 = vunpack.c.l.b16 %v348
    %v1545 = vunpack.c.h.b16 %v348
    %v1546 = vunpack.c.l.b16 %v349
    %v1547 = vunpack.c.h.b16 %v349
    %v1548 = vunpack.c.l.b16 %v350
    %v1549 = vunpack.c.h.b16 %v350
    %v1550 = vunpack.c.l.b16 %v351
    %v1551 = vunpack.c.h.b16 %v351
    %v1552 = vunpack.c.l.b16 %v352
    %v1553 = vunpack.c.h.b16 %v352
    %v1554 = vunpack.c.l.b16 %v353
    %v1555 = vunpack.c.h.b16 %v353
    %v1556 = vunpack.c.l.b16 %v354
    %v1557 = vunpack.c.h.b16 %v354
    %v1558 = vunpack.c.l.b16 %v355
    %v1559 = vunpack.c.h.b16 %v355
    %v1560 = vunpack.c.l.b16 %v356
    %v1561 = vunpack.c.h.b16 %v356
    %v1562 = vunpack.c.l.b16 %v357
    %v1563 = vunpack.c.h.b16 %v357
    %v1564 = vunpack.c.l.b16 %v358
    %v1565 = vunpack.c.h.b16 %v358
    %v1566 = vunpack.c.l.b16 %v359
    %v1567 = vunpack.c.h.b16 %v359
    %v1568 = vunpack.c.l.b16 %v360
    %v1569 = vunpack.c.h.b16 %v360
    %v1570 = vunpack.c.l.b16 %v361
    %v1571 = vunpack.c.h.b16 %v361
    %v1572 = vunpack.c.l.b16 %v362
    %v1573 = vunpack.c.h.b16 %v362
    %v1574 = vunpack.c.l.b16 %v363
    %v1575 = vunpack.c.h.b16 %v363
    %v1576 = vunpack.c.l.b16 %v364
    %v1577 = vunpack.c.h.b16 %v364
    %v1578 = vunpack.c.l.b16 %v365
    %v1579 = vunpack.c.h.b16 %v365
    %v1580 = vunpack.c.l.b16 %v366
    %v1581 = vunpack.c.h.b16 %v366
    %v1582 = vunpack.c.l.b16 %v367
    %v1583 = vunpack.c.h.b16 %v367
    %v1584 = vunpack.c.l.b16 %v368
    %v1585 = vunpack.c.h.b16 %v368
    %v1586 = vunpack.c.l.b16 %v369
    %v1587 = vunpack.c.h.b16 %v369
    %v1588 = vunpack.c.l.b16 %v370
    %v1589 = vunpack.c.h.b16 %v370
    %v1590 = vunpack.c.l.b16 %v371
    %v1591 = vunpack.c.h.b16 %v371
    %v1592 = vunpack.c.l.b16 %v372
    %v1593 = vunpack.c.h.b16 %v372
    %v1594 = vunpack.c.l.b16 %v373
    %v1595 = vunpack.c.h.b16 %v373
    %v1596 = vunpack.c.l.b16 %v374
    %v1597 = vunpack.c.h.b16 %v374
    %v1598 = vunpack.c.l.b16 %v375
    %v1599 = vunpack.c.h.b16 %v375
    %v1600 = vunpack.c.l.b16 %v376
    %v1601 = vunpack.c.h.b16 %v376
    %v1602 = vunpack.c.l.b16 %v377
    %v1603 = vunpack.c.h.b16 %v377
    %v1604 = vunpack.c.l.b16 %v378
    %v1605 = vunpack.c.h.b16 %v378
    %v1606 = vunpack.c.l.b16 %v379
    %v1607 = vunpack.c.h.b16 %v379
    %v1608 = vunpack.c.l.b16 %v380
    %v1609 = vunpack.c.h.b16 %v380
    %v1610 = vunpack.c.l.b16 %v381
    %v1611 = vunpack.c.h.b16 %v381
    %v1612 = vunpack.c.l.b16 %v382
    %v1613 = vunpack.c.h.b16 %v382
    %v1614 = vunpack.c.l.b16 %v383
    %v1615 = vunpack.c.h.b16 %v383
    %v1616 = vunpack.c.l.b16 %v384
    %v1617 = vunpack.c.h.b16 %v384
    %v1618 = vunpack.c.l.b16 %v385
    %v1619 = vunpack.c.h.b16 %v385
    %v1620 = vunpack.c.l.b16 %v386
    %v1621 = vunpack.c.h.b16 %v386
    %v1622 = vunpack.c.l.b16 %v387
    %v1623 = vunpack.c.h.b16 %v387
    %v1624 = vunpack.c.l.b16 %v388
    %v1625 = vunpack.c.h.b16 %v388
    %v1626 = vunpack.c.l.b16 %v389
    %v1627 = vunpack.c.h.b16 %v389
    %v1628 = vunpack.c.l.b16 %v390
    %v1629 = vunpack.c.h.b16 %v390
    %v1630 = vunpack.c.l.b16 %v391
    %v1631 = vunpack.c.h.b16 %v391
    %v1632 = vunpack.c.l.b16 %v392
    %v1633 = vunpack.c.h.b16 %v392
    %v1634 = vunpack.c.l.b16 %v393
    %v1635 = vunpack.c.h.b16 %v393
    %v1636 = vunpack.c.l.b16 %v394
    %v1637 = vunpack.c.h.b16 %v394
    %v1638 = vunpack.c.l.b16 %v395
    %v1639 = vunpack.c.h.b16 %v395
    %v1640 = vunpack.c.l.b16 %v396
    %v1641 = vunpack.c.h.b16 %v396
    %v1642 = vunpack.c.l.b16 %v397
    %v1643 = vunpack.c.h.b16 %v397
    %v1644 = vunpack.c.l.b16 %v398
    %v1645 = vunpack.c.h.b16 %v398
    %v1646 = vunpack.c.l.b16 %v399
    %v1647 = vunpack.c.h.b16 %v399
    %v1648 = vunpack.c.l.b16 %v400
    %v1649 = vunpack.c.h.b16 %v400
    %v1650 = vunpack.c.l.b16 %v401
    %v1651 = vunpack.c.h.b16 %v401
    %v1652 = vunpack.c.l.b16 %v402
    %v1653 = vunpack.c.h.b16 %v402
    %v1654 = vunpack.c.l.b16 %v403
    %v1655 = vunpack.c.h.b16 %v403
    %v1656 = vunpack.c.l.b16 %v404
    %v1657 = vunpack.c.h.b16 %v404
    %v1658 = vunpack.c.l.b16 %v405
    %v1659 = vunpack.c.h.b16 %v405
    %v1660 = vunpack.c.l.b16 %v406
    %v1661 = vunpack.c.h.b16 %v406
    %v1662 = vunpack.c.l.b16 %v407
    %v1663 = vunpack.c.h.b16 %v407
    %v1664 = vunpack.c.l.b16 %v408
    %v1665 = vunpack.c.h.b16 %v408
    %v1666 = vunpack.c.l.b16 %v409
    %v1667 = vunpack.c.h.b16 %v409
    %v1668 = vunpack.c.l.b16 %v410
    %v1669 = vunpack.c.h.b16 %v410
    %v1670 = vunpack.c.l.b16 %v411
    %v1671 = vunpack.c.h.b16 %v411
    %v1672 = vunpack.c.l.b16 %v412
    %v1673 = vunpack.c.h.b16 %v412
    %v1674 = vunpack.c.l.b16 %v413
    %v1675 = vunpack.c.h.b16 %v413
    %v1676 = vunpack.c.l.b16 %v414
    %v1677 = vunpack.c.h.b16 %v414
    %v1678 = vunpack.c.l.b16 %v415
    %v1679 = vunpack.c.h.b16 %v415
    %v1680 = vunpack.c.l.b16 %v416
    %v1681 = vunpack.c.h.b16 %v416
    %v1682 = vunpack.c.l.b16 %v417
    %v1683 = vunpack.c.h.b16 %v417
    %v1684 = vunpack.c.l.b16 %v418
    %v1685 = vunpack.c.h.b16 %v418
    %v1686 = vunpack.c.l.b16 %v419
    %v1687 = vunpack.c.h.b16 %v419
    %v1688 = vunpack.c.l.b16 %v420
    %v1689 = vunpack.c.h.b16 %v420
    %v1690 = vunpack.c.l.b16 %v421
    %v1691 = vunpack.c.h.b16 %v421
    %v1692 = vunpack.c.l.b16 %v422
    %v1693 = vunpack.c.h.b16 %v422
    %v1694 = vunpack.c.l.b16 %v423
    %v1695 = vunpack.c.h.b16 %v423
    %v1696 = vunpack.c.l.b16 %v424
    %v1697 = vunpack.c.h.b16 %v424
    %v1698 = vunpack.c.l.b16 %v425
    %v1699 = vunpack.c.h.b16 %v425
    %v1700 = vunpack.c.l.b16 %v426
    %v1701 = vunpack.c.h.b16 %v426
    %v1702 = vunpack.c.l.b16 %v427
    %v1703 = vunpack.c.h.b16 %v427
    %v1704 = vunpack.c.l.b16 %v428
    %v1705 = vunpack.c.h.b16 %v428
    %v1706 = vunpack.c.l.b16 %v429
    %v1707 = vunpack.c.h.b16 %v429
    %v1708 = vunpack.c.l.b16 %v430
    %v1709 = vunpack.c.h.b16 %v430
    %v1710 = vunpack.c.l.b16 %v431
    %v1711 = vunpack.c.h.b16 %v431
    %v1712 = vunpack.c.l.b16 %v432
    %v1713 = vunpack.c.h.b16 %v432
    %v1714 = vunpack.c.l.b16 %v433
    %v1715 = vunpack.c.h.b16 %v433
    %v1716 = vunpack.c.l.b16 %v434
    %v1717 = vunpack.c.h.b16 %v434
    %v1718 = vunpack.c.l.b16 %v435
    %v1719 = vunpack.c.h.b16 %v435
    %v1720 = vunpack.c.l.b16 %v436
    %v1721 = vunpack.c.h.b16 %v436
    %v1722 = vunpack.c.l.b16 %v437
    %v1723 = vunpack.c.h.b16 %v437
    %v1724 = vunpack.c.l.b16 %v438
    %v1725 = vunpack.c.h.b16 %v438
    %v1726 = vunpack.c.l.b16 %v439
    %v1727 = vunpack.c.h.b16 %v439
    %v1728 = vunpack.c.l.b16 %v440
    %v1729 = vunpack.c.h.b16 %v440
    %v1730 = vunpack.c.l.b16 %v441
    %v1731 = vunpack.c.h.b16 %v441
    %v1732 = vunpack.c.l.b16 %v442
    %v1733 = vunpack.c.h.b16 %v442
    %v1734 = vunpack.c.l.b16 %v443
    %v1735 = vunpack.c.h.b16 %v443
    %v1736 = vunpack.c.l.b16 %v444
    %v1737 = vunpack.c.h.b16 %v444
    %v1738 = vunpack.c.l.b16 %v445
    %v1739 = vunpack.c.h.b16 %v445
    %v1740 = vunpack.c.l.b16 %v446
    %v1741 = vunpack.c.h.b16 %v446
    %v1742 = vunpack.c.l.b16 %v447
    %v1743 = vunpack.c.h.b16 %v447
    %v1744 = vunpack.c.l.b16 %v448
    %v1745 = vunpack.c.h.b16 %v448
    %v1746 = vunpack.c.l.b16 %v449
    %v1747 = vunpack.c.h.b16 %v449
    %v1748 = vunpack.c.l.b16 %v450
    %v1749 = vunpack.c.h.b16 %v450
    %v1750 = vunpack.c.l.b16 %v451
    %v1751 = vunpack.c.h.b16 %v451
    %v1752 = vunpack.c.l.b16 %v452
    %v1753 = vunpack.c.h.b16 %v452
    %v1754 = vunpack.c.l.b16 %v453
    %v1755 = vunpack.c.h.b16 %v453
    %v1756 = vunpack.c.l.b16 %v454
    %v1757 = vunpack.c.h.b16 %v454
    %v1758 = vunpack.c.l.b16 %v455
    %v1759 = vunpack.c.h.b16 %v455
    %v1760 = vunpack.c.l.b16 %v456
    %v1761 = vunpack.c.h.b16 %v456
    %v1762 = vunpack.c.l.b16 %v457
    %v1763 = vunpack.c.h.b16 %v457
    %v1764 = vunpack.c.l.b16 %v458
    %v1765 = vunpack.c.h.b16 %v458
    %v1766 = vunpack.c.l.b16 %v459
    %v1767 = vunpack.c.h.b16 %v459
    %v1768 = vunpack.c.l.b16 %v460
    %v1769 = vunpack.c.h.b16 %v460
    %v1770 = vunpack.c.l.b16 %v461
    %v1771 = vunpack.c.h.b16 %v461
    %v1772 = vunpack.c.l.b16 %v462
    %v1773 = vunpack.c.h.b16 %v462
    %v1774 = vunpack.c.l.b16 %v463
    %v1775 = vunpack.c.h.b16 %v463
    %v1776 = vunpack.c.l.b16 %v464
    %v1777 = vunpack.c.h.b16 %v464
    %v1778 = vunpack.c.l.b16 %v465
    %v1779 = vunpack.c.h.b16 %v465
    %v1780 = vunpack.c.l.b16 %v466
    %v1781 = vunpack.c.h.b16 %v466
    %v1782 = vunpack.c.l.b16 %v467
    %v1783 = vunpack.c.h.b16 %v467
    %v1784 = vunpack.c.l.b16 %v468
    %v1785 = vunpack.c.h.b16 %v468
    %v1786 = vunpack.c.l.b16 %v469
    %v1787 = vunpack.c.h.b16 %v469
    %v1788 = vunpack.c.l.b16 %v470
    %v1789 = vunpack.c.h.b16 %v470
    %v1790 = vunpack.c.l.b16 %v471
    %v1791 = vunpack.c.h.b16 %v471
    %v1792 = vunpack.c.l.b16 %v472
    %v1793 = vunpack.c.h.b16 %v472
    %v1794 = vunpack.c.l.b16 %v473
    %v1795 = vunpack.c.h.b16 %v473
    %v1796 = vunpack.c.l.b16 %v474
    %v1797 = vunpack.c.h.b16 %v474
    %v1798 = vunpack.c.l.b16 %v475
    %v1799 = vunpack.c.h.b16 %v475
    %v1800 = vunpack.c.l.b16 %v476
    %v1801 = vunpack.c.h.b16 %v476
    %v1802 = vunpack.c.l.b16 %v477
    %v1803 = vunpack.c.h.b16 %v477
    %v1804 = vunpack.c.l.b16 %v478
    %v1805 = vunpack.c.h.b16 %v478
    %v1806 = vunpack.c.l.b16 %v479
    %v1807 = vunpack.c.h.b16 %v479
    %v1808 = vunpack.c.l.b16 %v480
    %v1809 = vunpack.c.h.b16 %v480
    %v1810 = vunpack.c.l.b16 %v481
    %v1811 = vunpack.c.h.b16 %v481
    %v1812 = vunpack.c.l.b16 %v482
    %v1813 = vunpack.c.h.b16 %v482
    %v1814 = vunpack.c.l.b16 %v483
    %v1815 = vunpack.c.h.b16 %v483
    %v1816 = vunpack.c.l.b16 %v484
    %v1817 = vunpack.c.h.b16 %v484
    %v1818 = vunpack.c.l.b16 %v485
    %v1819 = vunpack.c.h.b16 %v485
    %v1820 = vunpack.c.l.b16 %v486
    %v1821 = vunpack.c.h.b16 %v486
    %v1822 = vunpack.c.l.b16 %v487
    %v1823 = vunpack.c.h.b16 %v487
    %v1824 = vunpack.c.l.b16 %v488
    %v1825 = vunpack.c.h.b16 %v488
    %v1826 = vunpack.c.l.b16 %v489
    %v1827 = vunpack.c.h.b16 %v489
    %v1828 = vunpack.c.l.b16 %v490
    %v1829 = vunpack.c.h.b16 %v490
    %v1830 = vunpack.c.l.b16 %v491
    %v1831 = vunpack.c.h.b16 %v491
    %v1832 = vunpack.c.l.b16 %v492
    %v1833 = vunpack.c.h.b16 %v492
    %v1834 = vunpack.c.l.b16 %v493
    %v1835 = vunpack.c.h.b16 %v493
    %v1836 = vunpack.c.l.b16 %v494
    %v1837 = vunpack.c.h.b16 %v494
    %v1838 = vunpack.c.l.b16 %v495
    %v1839 = vunpack.c.h.b16 %v495
    %v1840 = vunpack.c.l.b16 %v496
    %v1841 = vunpack.c.h.b16 %v496
    %v1842 = vunpack.c.l.b16 %v497
    %v1843 = vunpack.c.h.b16 %v497
    %v1844 = vunpack.c.l.b16 %v498
    %v1845 = vunpack.c.h.b16 %v498
    %v1846 = vunpack.c.l.b16 %v499
    %v1847 = vunpack.c.h.b16 %v499
    %v1848 = vunpack.c.l.b16 %v500
    %v1849 = vunpack.c.h.b16 %v500
    %v1850 = vunpack.c.l.b16 %v501
    %v1851 = vunpack.c.h.b16 %v501
    %v1852 = vunpack.c.l.b16 %v502
    %v1853 = vunpack.c.h.b16 %v502
    %v1854 = vunpack.c.l.b16 %v503
    %v1855 = vunpack.c.h.b16 %v503
    %v1856 = vunpack.c.l.b16 %v504
    %v1857 = vunpack.c.h.b16 %v504
    %v1858 = vunpack.c.l.b16 %v505
    %v1859 = vunpack.c.h.b16 %v505
    %v1860 = vunpack.c.l.b16 %v506
    %v1861 = vunpack.c.h.b16 %v506
    %v1862 = vunpack.c.l.b16 %v507
    %v1863 = vunpack.c.h.b16 %v507
    %v1864 = vunpack.c.l.b16 %v508
    %v1865 = vunpack.c.h.b16 %v508
    %v1866 = vunpack.c.l.b16 %v509
    %v1867 = vunpack.c.h.b16 %v509
    %v1868 = vunpack.c.l.b16 %v510
    %v1869 = vunpack.c.h.b16 %v510
    %v1870 = vunpack.c.l.b16 %v511
    %v1871 = vunpack.c.h.b16 %v511
    %v1872 = vunpack.c.l.b16 %v512
    %v1873 = vunpack.c.h.b16 %v512
    %v1874 = vunpack.c.l.b16 %v513
    %v1875 = vunpack.c.h.b16 %v513
    %v1876 = vunpack.c.l.b16 %v514
    %v1877 = vunpack.c.h.b16 %v514
    %v1878 = vunpack.c.l.b16 %v515
    %v1879 = vunpack.c.h.b16 %v515
    %v1880 = vunpack.c.l.b16 %v516
    %v1881 = vunpack.c.h.b16 %v516
    %v1882 = vunpack.c.l.b16 %v517
    %v1883 = vunpack.c.h.b16 %v517
    %v1884 = vunpack.c.l.b16 %v518
    %v1885 = vunpack.c.h.b16 %v518
    %v1886 = vunpack.c.l.b16 %v519
    %v1887 = vunpack.c.h.b16 %v519
    %v1888 = vunpack.c.l.b16 %v520
    %v1889 = vunpack.c.h.b16 %v520
    %v1890 = vunpack.c.l.b16 %v521
    %v1891 = vunpack.c.h.b16 %v521
    %v1892 = vunpack.c.l.b16 %v522
    %v1893 = vunpack.c.h.b16 %v522
    %v1894 = vunpack.c.l.b16 %v523
    %v1895 = vunpack.c.h.b16 %v523
    %v1896 = vunpack.c.l.b16 %v524
    %v1897 = vunpack.c.h.b16 %v524
    %v1898 = vunpack.c.l.b16 %v525
    %v1899 = vunpack.c.h.b16 %v525
    %v1900 = vunpack.c.l.b16 %v526
    %v1901 = vunpack.c.h.b16 %v526
    %v1902 = vunpack.c.l.b16 %v527
    %v1903 = vunpack.c.h.b16 %v527
    %v1904 = vunpack.c.l.b16 %v528
    %v1905 = vunpack.c.h.b16 %v528
    %v1906 = vunpack.c.l.b16 %v529
    %v1907 = vunpack.c.h.b16 %v529
    %v1908 = vunpack.c.l.b16 %v530
    %v1909 = vunpack.c.h.b16 %v530
    %v1910 = vunpack.c.l.b16 %v531
    %v1911 = vunpack.c.h.b16 %v531
    %v1912 = vunpack.c.l.b16 %v532
    %v1913 = vunpack.c.h.b16 %v532
    %v1914 = vunpack.c.l.b16 %v533
    %v1915 = vunpack.c.h.b16 %v533
    %v1916 = vunpack.c.l.b16 %v534
    %v1917 = vunpack.c.h.b16 %v534
    %v1918 = vunpack.c.l.b16 %v535
    %v1919 = vunpack.c.h.b16 %v535
    %v1920 = vunpack.c.l.b16 %v536
    %v1921 = vunpack.c.h.b16 %v536
    %v1922 = vunpack.c.l.b16 %v537
    %v1923 = vunpack.c.h.b16 %v537
    %v1924 = vunpack.c.l.b16 %v538
    %v1925 = vunpack.c.h.b16 %v538
    %v1926 = vunpack.c.l.b16 %v539
    %v1927 = vunpack.c.h.b16 %v539
    %v1928 = vunpack.c.l.b16 %v540
    %v1929 = vunpack.c.h.b16 %v540
    %v1930 = vunpack.c.l.b16 %v541
    %v1931 = vunpack.c.h.b16 %v541
    %v1932 = vunpack.c.l.b16 %v542
    %v1933 = vunpack.c.h.b16 %v542
    %v1934 = vunpack.c.l.b16 %v543
    %v1935 = vunpack.c.h.b16 %v543
    %v1936 = vunpack.c.l.b16 %v544
    %v1937 = vunpack.c.h.b16 %v544
    %v1938 = vunpack.c.l.b16 %v545
    %v1939 = vunpack.c.h.b16 %v545
    %v1940 = vunpack.c.l.b16 %v546
    %v1941 = vunpack.c.h.b16 %v546
    %v1942 = vunpack.c.l.b16 %v547
    %v1943 = vunpack.c.h.b16 %v547
    %v1944 = vunpack.c.l.b16 %v548
    %v1945 = vunpack.c.h.b16 %v548
    %v1946 = vunpack.c.l.b16 %v549
    %v1947 = vunpack.c.h.b16 %v549
    %v1948 = vunpack.c.l.b16 %v550
    %v1949 = vunpack.c.h.b16 %v550
    %v1950 = vunpack.c.l.b16 %v551
    %v1951 = vunpack.c.h.b16 %v551
    %v1952 = vunpack.c.l.b16 %v552
    %v1953 = vunpack.c.h.b16 %v552
    %v1954 = vunpack.c.l.b16 %v553
    %v1955 = vunpack.c.h.b16 %v553
    %v1956 = vunpack.c.l.b16 %v554
    %v1957 = vunpack.c.h.b16 %v554
    %v1958 = vunpack.c.l.b16 %v555
    %v1959 = vunpack.c.h.b16 %v555
    %v1960 = vunpack.c.l.b16 %v556
    %v1961 = vunpack.c.h.b16 %v556
    %v1962 = vunpack.c.l.b16 %v557
    %v1963 = vunpack.c.h.b16 %v557
    %v1964 = vunpack.c.l.b16 %v558
    %v1965 = vunpack.c.h.b16 %v558
    %v1966 = vunpack.c.l.b16 %v559
    %v1967 = vunpack.c.h.b16 %v559
    %v1968 = vunpack.c.l.b16 %v560
    %v1969 = vunpack.c.h.b16 %v560
    %v1970 = vunpack.c.l.b16 %v561
    %v1971 = vunpack.c.h.b16 %v561
    %v1972 = vpack.c.b16 %v1212, %v1204
    %v1973 = vpack.c.b16 %v1213, %v1205
    %v1974 = vpack.c.b16 %v1214, %v1206
    %v1975 = vpack.c.b16 %v1215, %v1207
    %v1976 = vpack.c.b16 %v1216, %v1208
    %v1977 = vpack.c.b16 %v1217, %v1209
    %v1978 = vpack.c.b16 %v1218, %v1210
    %v1979 = vpack.c.b16 %v1219, %v1211
    %v1980 = vpack.c.b16 %v1228, %v1220
    %v1981 = vpack.c.b16 %v1229, %v1221
    %v1982 = vpack.c.b16 %v1230, %v1222
    %v1983 = vpack.c.b16 %v1231, %v1223
    %v1984 = vpack.c.b16 %v1232, %v1224
    %v1985 = vpack.c.b16 %v1233, %v1225
    %v1986 = vpack.c.b16 %v1234, %v1226
    %v1987 = vpack.c.b16 %v1235, %v1227
    %v1988 = vpack.c.b16 %v1244, %v1236
    %v1989 = vpack.c.b16 %v1245, %v1237
    %v1990 = vpack.c.b16 %v1246, %v1238
    %v1991 = vpack.c.b16 %v1247, %v1239
    %v1992 = vpack.c.b16 %v1248, %v1240
    %v1993 = vpack.c.b16 %v1249, %v1241
    %v1994 = vpack.c.b16 %v1250, %v1242
    %v1995 = vpack.c.b16 %v1251, %v1243
    %v1996 = vpack.c.b16 %v1260, %v1252
    %v1997 = vpack.c.b16 %v1261, %v1253
    %v1998 = vpack.c.b16 %v1262, %v1254
    %v1999 = vpack.c.b16 %v1263, %v1255
    %v2000 = vpack.c.b16 %v1264, %v1256
    %v2001 = vpack.c.b16 %v1265, %v1257
    %v2002 = vpack.c.b16 %v1266, %v1258
    %v2003 = vpack.c.b16 %v1267, %v1259
    %v2004 = vpack.c.b16 %v1276, %v1268
    %v2005 = vpack.c.b16 %v1277, %v1269
    %v2006 = vpack.c.b16 %v1278, %v1270
    %v2007 = vpack.c.b16 %v1279, %v1271
    %v2008 = vpack.c.b16 %v1280, %v1272
    %v2009 = vpack.c.b16 %v1281, %v1273
    %v2010 = vpack.c.b16 %v1282, %v1274
    %v2011 = vpack.c.b16 %v1283, %v1275
    %v2012 = vpack.c.b16 %v1292, %v1284
    %v2013 = vpack.c.b16 %v1293, %v1285
    %v2014 = vpack.c.b16 %v1294, %v1286
    %v2015 = vpack.c.b16 %v1295, %v1287
    %v2016 = vpack.c.b16 %v1296, %v1288
    %v2017 = vpack.c.b16 %v1297, %v1289
    %v2018 = vpack.c.b16 %v1298, %v1290
    %v2019 = vpack.c.b16 %v1299, %v1291
    %v2020 = vpack.c.b16 %v1308, %v1300
    %v2021 = vpack.c.b16 %v1309, %v1301
    %v2022 = vpack.c.b16 %v1310, %v1302
    %v2023 = vpack.c.b16 %v1311, %v1303
    %v2024 = vpack.c.b16 %v1312, %v1304
    %v2025 = vpack.c.b16 %v1313, %v1305
    %v2026 = vpack.c.b16 %v1314, %v1306
    %v2027 = vpack.c.b16 %v1315, %v1307
    %v2028 = vpack.c.b16 %v1324, %v1316
    %v2029 = vpack.c.b16 %v1325, %v1317
    %v2030 = vpack.c.b16 %v1326, %v1318
    %v2031 = vpack.c.b16 %v1327, %v1319
    %v2032 = vpack.c.b16 %v1328, %v1320
    %v2033 = vpack.c.b16 %v1329, %v1321
    %v2034 = vpack.c.b16 %v1330, %v1322
    %v2035 = vpack.c.b16 %v1331, %v1323
    %v2036 = vpack.c.b16 %v1340, %v1332
    %v2037 = vpack.c.b16 %v1341, %v1333
    %v2038 = vpack.c.b16 %v1342, %v1334
    %v2039 = vpack.c.b16 %v1343, %v1335
    %v2040 = vpack.c.b16 %v1344, %v1336
    %v2041 = vpack.c.b16 %v1345, %v1337
    %v2042 = vpack.c.b16 %v1346, %v1338
    %v2043 = vpack.c.b16 %v1347, %v1339
    %v2044 = vpack.c.b16 %v1356, %v1348
    %v2045 = vpack.c.b16 %v1357, %v1349
    %v2046 = vpack.c.b16 %v1358, %v1350
    %v2047 = vpack.c.b16 %v1359, %v1351
    %v2048 = vpack.c.b16 %v1360, %v1352
    %v2049 = vpack.c.b16 %v1361, %v1353
    %v2050 = vpack.c.b16 %v1362, %v1354
    %v2051 = vpack.c.b16 %v1363, %v1355
    %v2052 = vpack.c.b16 %v1372, %v1364
    %v2053 = vpack.c.b16 %v1373, %v1365
    %v2054 = vpack.c.b16 %v1374, %v1366
    %v2055 = vpack.c.b16 %v1375, %v1367
    %v2056 = vpack.c.b16 %v1376, %v1368
    %v2057 = vpack.c.b16 %v1377, %v1369
    %v2058 = vpack.c.b16 %v1378, %v1370
    %v2059 = vpack.c.b16 %v1379, %v1371
    %v2060 = vpack.c.b16 %v1388, %v1380
    %v2061 = vpack.c.b16 %v1389, %v1381
    %v2062 = vpack.c.b16 %v1390, %v1382
    %v2063 = vpack.c.b16 %v1391, %v1383
    %v2064 = vpack.c.b16 %v1392, %v1384
    %v2065 = vpack.c.b16 %v1393, %v1385
    %v2066 = vpack.c.b16 %v1394, %v1386
    %v2067 = vpack.c.b16 %v1395, %v1387
    %v2068 = vpack.c.b16 %v1404, %v1396
    %v2069 = vpack.c.b16 %v1405, %v1397
    %v2070 = vpack.c.b16 %v1406, %v1398
    %v2071 = vpack.c.b16 %v1407, %v1399
    %v2072 = vpack.c.b16 %v1408, %v1400
    %v2073 = vpack.c.b16 %v1409, %v1401
    %v2074 = vpack.c.b16 %v1410, %v1402
    %v2075 = vpack.c.b16 %v1411, %v1403
    %v2076 = vpack.c.b16 %v1420, %v1412
    %v2077 = vpack.c.b16 %v1421, %v1413
    %v2078 = vpack.c.b16 %v1422, %v1414
    %v2079 = vpack.c.b16 %v1423, %v1415
    %v2080 = vpack.c.b16 %v1424, %v1416
    %v2081 = vpack.c.b16 %v1425, %v1417
    %v2082 = vpack.c.b16 %v1426, %v1418
    %v2083 = vpack.c.b16 %v1427, %v1419
    %v2084 = vpack.c.b16 %v1436, %v1428
    %v2085 = vpack.c.b16 %v1437, %v1429
    %v2086 = vpack.c.b16 %v1438, %v1430
    %v2087 = vpack.c.b16 %v1439, %v1431
    %v2088 = vpack.c.b16 %v1440, %v1432
    %v2089 = vpack.c.b16 %v1441, %v1433
    %v2090 = vpack.c.b16 %v1442, %v1434
    %v2091 = vpack.c.b16 %v1443, %v1435
    %v2092 = vpack.c.b16 %v1452, %v1444
    %v2093 = vpack.c.b16 %v1453, %v1445
    %v2094 = vpack.c.b16 %v1454, %v1446
    %v2095 = vpack.c.b16 %v1455, %v1447
    %v2096 = vpack.c.b16 %v1456, %v1448
    %v2097 = vpack.c.b16 %v1457, %v1449
    %v2098 = vpack.c.b16 %v1458, %v1450
    %v2099 = vpack.c.b16 %v1459, %v1451
    %v2100 = vpack.c.b16 %v1468, %v1460
    %v2101 = vpack.c.b16 %v1469, %v1461
    %v2102 = vpack.c.b16 %v1470, %v1462
    %v2103 = vpack.c.b16 %v1471, %v1463
    %v2104 = vpack.c.b16 %v1472, %v1464
    %v2105 = vpack.c.b16 %v1473, %v1465
    %v2106 = vpack.c.b16 %v1474, %v1466
    %v2107 = vpack.c.b16 %v1475, %v1467
    %v2108 = vpack.c.b16 %v1484, %v1476
    %v2109 = vpack.c.b16 %v1485, %v1477
    %v2110 = vpack.c.b16 %v1486, %v1478
    %v2111 = vpack.c.b16 %v1487, %v1479
    %v2112 = vpack.c.b16 %v1488, %v1480
    %v2113 = vpack.c.b16 %v1489, %v1481
    %v2114 = vpack.c.b16 %v1490, %v1482
    %v2115 = vpack.c.b16 %v1491, %v1483
    %v2116 = vpack.c.b16 %v1500, %v1492
    %v2117 = vpack.c.b16 %v1501, %v1493
    %v2118 = vpack.c.b16 %v1502, %v1494
    %v2119 = vpack.c.b16 %v1503, %v1495
    %v2120 = vpack.c.b16 %v1504, %v1496
    %v2121 = vpack.c.b16 %v1505, %v1497
    %v2122 = vpack.c.b16 %v1506, %v1498
    %v2123 = vpack.c.b16 %v1507, %v1499
    %v2124 = vpack.c.b16 %v1516, %v1508
    %v2125 = vpack.c.b16 %v1517, %v1509
    %v2126 = vpack.c.b16 %v1518, %v1510
    %v2127 = vpack.c.b16 %v1519, %v1511
    %v2128 = vpack.c.b16 %v1520, %v1512
    %v2129 = vpack.c.b16 %v1521, %v1513
    %v2130 = vpack.c.b16 %v1522, %v1514
    %v2131 = vpack.c.b16 %v1523, %v1515
    %v2132 = vpack.c.b16 %v1532, %v1524
    %v2133 = vpack.c.b16 %v1533, %v1525
    %v2134 = vpack.c.b16 %v1534, %v1526
    %v2135 = vpack.c.b16 %v1535, %v1527
    %v2136 = vpack.c.b16 %v1536, %v1528
    %v2137 = vpack.c.b16 %v1537, %v1529
    %v2138 = vpack.c.b16 %v1538, %v1530
    %v2139 = vpack.c.b16 %v1539, %v1531
    %v2140 = vpack.c.b16 %v1548, %v1540
    %v2141 = vpack.c.b16 %v1549, %v1541
    %v2142 = vpack.c.b16 %v1550, %v1542
    %v2143 = vpack.c.b16 %v1551, %v1543
    %v2144 = vpack.c.b16 %v1552, %v1544
    %v2145 = vpack.c.b16 %v1553, %v1545
    %v2146 = vpack.c.b16 %v1554, %v1546
    %v2147 = vpack.c.b16 %v1555, %v1547
    %v2148 = vpack.c.b16 %v1564, %v1556
    %v2149 = vpack.c.b16 %v1565, %v1557
    %v2150 = vpack.c.b16 %v1566, %v1558
    %v2151 = vpack.c.b16 %v1567, %v1559
    %v2152 = vpack.c.b16 %v1568, %v1560
    %v2153 = vpack.c.b16 %v1569, %v1561
    %v2154 = vpack.c.b16 %v1570, %v1562
    %v2155 = vpack.c.b16 %v1571, %v1563
    %v2156 = vpack.c.b16 %v1580, %v1572
    %v2157 = vpack.c.b16 %v1581, %v1573
    %v2158 = vpack.c.b16 %v1582, %v1574
    %v2159 = vpack.c.b16 %v1583, %v1575
    %v2160 = vpack.c.b16 %v1584, %v1576
    %v2161 = vpack.c.b16 %v1585, %v1577
    %v2162 = vpack.c.b16 %v1586, %v1578
    %v2163 = vpack.c.b16 %v1587, %v1579
    %v2164 = vpack.c.b16 %v1596, %v1588
    %v2165 = vpack.c.b16 %v1597, %v1589
    %v2166 = vpack.c.b16 %v1598, %v1590
    %v2167 = vpack.c.b16 %v1599, %v1591
    %v2168 = vpack.c.b16 %v1600, %v1592
    %v2169 = vpack.c.b16 %v1601, %v1593
    %v2170 = vpack.c.b16 %v1602, %v1594
    %v2171 = vpack.c.b16 %v1603, %v1595
    %v2172 = vpack.c.b16 %v1612, %v1604
    %v2173 = vpack.c.b16 %v1613, %v1605
    %v2174 = vpack.c.b16 %v1614, %v1606
    %v2175 = vpack.c.b16 %v1615, %v1607
    %v2176 = vpack.c.b16 %v1616, %v1608
    %v2177 = vpack.c.b16 %v1617, %v1609
    %v2178 = vpack.c.b16 %v1618, %v1610
    %v2179 = vpack.c.b16 %v1619, %v1611
    %v2180 = vpack.c.b16 %v1628, %v1620
    %v2181 = vpack.c.b16 %v1629, %v1621
    %v2182 = vpack.c.b16 %v1630, %v1622
    %v2183 = vpack.c.b16 %v1631, %v1623
    %v2184 = vpack.c.b16 %v1632, %v1624
    %v2185 = vpack.c.b16 %v1633, %v1625
    %v2186 = vpack.c.b16 %v1634, %v1626
    %v2187 = vpack.c.b16 %v1635, %v1627
    %v2188 = vpack.c.b16 %v1644, %v1636
    %v2189 = vpack.c.b16 %v1645, %v1637
    %v2190 = vpack.c.b16 %v1646, %v1638
    %v2191 = vpack.c.b16 %v1647, %v1639
    %v2192 = vpack.c.b16 %v1648, %v1640
    %v2193 = vpack.c.b16 %v1649, %v1641
    %v2194 = vpack.c.b16 %v1650, %v1642
    %v2195 = vpack.c.b16 %v1651, %v1643
    %v2196 = vpack.c.b16 %v1660, %v1652
    %v2197 = vpack.c.b16 %v1661, %v1653
    %v2198 = vpack.c.b16 %v1662, %v1654
    %v2199 = vpack.c.b16 %v1663, %v1655
    %v2200 = vpack.c.b16 %v1664, %v1656
    %v2201 = vpack.c.b16 %v1665, %v1657
    %v2202 = vpack.c.b16 %v1666, %v1658
    %v2203 = vpack.c.b16 %v1667, %v1659
    %v2204 = vpack.c.b16 %v1676, %v1668
    %v2205 = vpack.c.b16 %v1677, %v1669
    %v2206 = vpack.c.b16 %v1678, %v1670
    %v2207 = vpack.c.b16 %v1679, %v1671
    %v2208 = vpack.c.b16 %v1680, %v1672
    %v2209 = vpack.c.b16 %v1681, %v1673
    %v2210 = vpack.c.b16 %v1682, %v1674
    %v2211 = vpack.c.b16 %v1683, %v1675
    %v2212 = vpack.c.b16 %v1692, %v1684
    %v2213 = vpack.c.b16 %v1693, %v1685
    %v2214 = vpack.c.b16 %v1694, %v1686
    %v2215 = vpack.c.b16 %v1695, %v1687
    %v2216 = vpack.c.b16 %v1696, %v1688
    %v2217 = vpack.c.b16 %v1697, %v1689
    %v2218 = vpack.c.b16 %v1698, %v1690
    %v2219 = vpack.c.b16 %v1699, %v1691
    %v2220 = vpack.c.b16 %v1708, %v1700
    %v2221 = vpack.c.b16 %v1709, %v1701
    %v2222 = vpack.c.b16 %v1710, %v1702
    %v2223 = vpack.c.b16 %v1711, %v1703
    %v2224 = vpack.c.b16 %v1712, %v1704
    %v2225 = vpack.c.b16 %v1713, %v1705
    %v2226 = vpack.c.b16 %v1714, %v1706
    %v2227 = vpack.c.b16 %v1715, %v1707
    %v2228 = vpack.c.b16 %v1724, %v1716
    %v2229 = vpack.c.b16 %v1725, %v1717
    %v2230 = vpack.c.b16 %v1726, %v1718
    %v2231 = vpack.c.b16 %v1727, %v1719
    %v2232 = vpack.c.b16 %v1728, %v1720
    %v2233 = vpack.c.b16 %v1729, %v1721
    %v2234 = vpack.c.b16 %v1730, %v1722
    %v2235 = vpack.c.b16 %v1731, %v1723
    %v2236 = vpack.c.b16 %v1740, %v1732
    %v2237 = vpack.c.b16 %v1741, %v1733
    %v2238 = vpack.c.b16 %v1742, %v1734
    %v2239 = vpack.c.b16 %v1743, %v1735
    %v2240 = vpack.c.b16 %v1744, %v1736
    %v2241 = vpack.c.b16 %v1745, %v1737
    %v2242 = vpack.c.b16 %v1746, %v1738
    %v2243 = vpack.c.b16 %v1747, %v1739
    %v2244 = vpack.c.b16 %v1756, %v1748
    %v2245 = vpack.c.b16 %v1757, %v1749
    %v2246 = vpack.c.b16 %v1758, %v1750
    %v2247 = vpack.c.b16 %v1759, %v1751
    %v2248 = vpack.c.b16 %v1760, %v1752
    %v2249 = vpack.c.b16 %v1761, %v1753
    %v2250 = vpack.c.b16 %v1762, %v1754
    %v2251 = vpack.c.b16 %v1763, %v1755
    %v2252 = vpack.c.b16 %v1772, %v1764
    %v2253 = vpack.c.b16 %v1773, %v1765
    %v2254 = vpack.c.b16 %v1774, %v1766
    %v2255 = vpack.c.b16 %v1775, %v1767
    %v2256 = vpack.c.b16 %v1776, %v1768
    %v2257 = vpack.c.b16 %v1777, %v1769
    %v2258 = vpack.c.b16 %v1778, %v1770
    %v2259 = vpack.c.b16 %v1779, %v1771
    %v2260 = vpack.c.b16 %v1788, %v1780
    %v2261 = vpack.c.b16 %v1789, %v1781
    %v2262 = vpack.c.b16 %v1790, %v1782
    %v2263 = vpack.c.b16 %v1791, %v1783
    %v2264 = vpack.c.b16 %v1792, %v1784
    %v2265 = vpack.c.b16 %v1793, %v1785
    %v2266 = vpack.c.b16 %v1794, %v1786
    %v2267 = vpack.c.b16 %v1795, %v1787
    %v2268 = vpack.c.b16 %v1804, %v1796
    %v2269 = vpack.c.b16 %v1805, %v1797
    %v2270 = vpack.c.b16 %v1806, %v1798
    %v2271 = vpack.c.b16 %v1807, %v1799
    %v2272 = vpack.c.b16 %v1808, %v1800
    %v2273 = vpack.c.b16 %v1809, %v1801
    %v2274 = vpack.c.b16 %v1810, %v1802
    %v2275 = vpack.c.b16 %v1811, %v1803
    %v2276 = vpack.c.b16 %v1820, %v1812
    %v2277 = vpack.c.b16 %v1821, %v1813
    %v2278 = vpack.c.b16 %v1822, %v1814
    %v2279 = vpack.c.b16 %v1823, %v1815
    %v2280 = vpack.c.b16 %v1824, %v1816
    %v2281 = vpack.c.b16 %v1825, %v1817
    %v2282 = vpack.c.b16 %v1826, %v1818
    %v2283 = vpack.c.b16 %v1827, %v1819
    %v2284 = vpack.c.b16 %v1836, %v1828
    %v2285 = vpack.c.b16 %v1837, %v1829
    %v2286 = vpack.c.b16 %v1838, %v1830
    %v2287 = vpack.c.b16 %v1839, %v1831
    %v2288 = vpack.c.b16 %v1840, %v1832
    %v2289 = vpack.c.b16 %v1841, %v1833
    %v2290 = vpack.c.b16 %v1842, %v1834
    %v2291 = vpack.c.b16 %v1843, %v1835
    %v2292 = vpack.c.b16 %v1852, %v1844
    %v2293 = vpack.c.b16 %v1853, %v1845
    %v2294 = vpack.c.b16 %v1854, %v1846
    %v2295 = vpack.c.b16 %v1855, %v1847
    %v2296 = vpack.c.b16 %v1856, %v1848
    %v2297 = vpack.c.b16 %v1857, %v1849
    %v2298 = vpack.c.b16 %v1858, %v1850
    %v2299 = vpack.c.b16 %v1859, %v1851
    %v2300 = vpack.c.b16 %v1868, %v1860
    %v2301 = vpack.c.b16 %v1869, %v1861
    %v2302 = vpack.c.b16 %v1870, %v1862
    %v2303 = vpack.c.b16 %v1871, %v1863
    %v2304 = vpack.c.b16 %v1872, %v1864
    %v2305 = vpack.c.b16 %v1873, %v1865
    %v2306 = vpack.c.b16 %v1874, %v1866
    %v2307 = vpack.c.b16 %v1875, %v1867
    %v2308 = vpack.c.b16 %v1884, %v1876
    %v2309 = vpack.c.b16 %v1885, %v1877
    %v2310 = vpack.c.b16 %v1886, %v1878
    %v2311 = vpack.c.b16 %v1887, %v1879
    %v2312 = vpack.c.b16 %v1888, %v1880
    %v2313 = vpack.c.b16 %v1889, %v1881
    %v2314 = vpack.c.b16 %v1890, %v1882
    %v2315 = vpack.c.b16 %v1891, %v1883
    %v2316 = vpack.c.b16 %v1900, %v1892
    %v2317 = vpack.c.b16 %v1901, %v1893
    %v2318 = vpack.c.b16 %v1902, %v1894
    %v2319 = vpack.c.b16 %v1903, %v1895
    %v2320 = vpack.c.b16 %v1904, %v1896
    %v2321 = vpack.c.b16 %v1905, %v1897
    %v2322 = vpack.c.b16 %v1906, %v1898
    %v2323 = vpack.c.b16 %v1907, %v1899
    %v2324 = vpack.c.b16 %v1916, %v1908
    %v2325 = vpack.c.b16 %v1917, %v1909
    %v2326 = vpack.c.b16 %v1918, %v1910
    %v2327 = vpack.c.b16 %v1919, %v1911
    %v2328 = vpack.c.b16 %v1920, %v1912
    %v2329 = vpack.c.b16 %v1921, %v1913
    %v2330 = vpack.c.b16 %v1922, %v1914
    %v2331 = vpack.c.b16 %v1923, %v1915
    %v2332 = vpack.c.b16 %v1932, %v1924
    %v2333 = vpack.c.b16 %v1933, %v1925
    %v2334 = vpack.c.b16 %v1934, %v1926
    %v2335 = vpack.c.b16 %v1935, %v1927
    %v2336 = vpack.c.b16 %v1936, %v1928
    %v2337 = vpack.c.b16 %v1937, %v1929
    %v2338 = vpack.c.b16 %v1938, %v1930
    %v2339 = vpack.c.b16 %v1939, %v1931
    %v2340 = vpack.c.b16 %v1948, %v1940
    %v2341 = vpack.c.b16 %v1949, %v1941
    %v2342 = vpack.c.b16 %v1950, %v1942
    %v2343 = vpack.c.b16 %v1951, %v1943
    %v2344 = vpack.c.b16 %v1952, %v1944
    %v2345 = vpack.c.b16 %v1953, %v1945
    %v2346 = vpack.c.b16 %v1954, %v1946
    %v2347 = vpack.c.b16 %v1955, %v1947
    %v2348 = vpack.c.b16 %v1964, %v1956
    %v2349 = vpack.c.b16 %v1965, %v1957
    %v2350 = vpack.c.b16 %v1966, %v1958
    %v2351 = vpack.c.b16 %v1967, %v1959
    %v2352 = vpack.c.b16 %v1968, %v1960
    %v2353 = vpack.c.b16 %v1969, %v1961
    %v2354 = vpack.c.b16 %v1970, %v1962
    %v2355 = vpack.c.b16 %v1971, %v1963
    %2740 = vmatpush.bf16.msra.mxu0 %v2028
    %2741 = vmatpush.bf16.msra.mxu0 %v2020
    %2742 = vmatpush.bf16.msra.mxu0 %v2012
    %2743 = vmatpush.bf16.msra.mxu0 %v2004
    %2744 = vmatpush.bf16.msra.mxu0 %v1996
    %2745 = vmatpush.bf16.msra.mxu0 %v1988
    %2746 = vmatpush.bf16.msra.mxu0 %v1980
    %2747 = vmatpush.bf16.msra.mxu0 %v1972
    %2748 = vmatmul.bf16.gmra.mxu0 %v724
    %v2749 = vpop.f32.mrf.mxu0
    %v2750 = vadd.f32 %v564, %v2749
    %v2751 = vpop.f32.mrf.mxu0
    %v2752 = vadd.f32 %v564, %v2751
    %2753 = vmatmul.bf16.gmra.mxu0 %v730
    %v2754 = vpop.f32.mrf.mxu0
    %v2755 = vadd.f32 %v564, %v2754
    %v2756 = vpop.f32.mrf.mxu0
    %v2757 = vadd.f32 %v564, %v2756
    %2758 = vmatmul.bf16.gmra.mxu0 %v736
    %v2759 = vpop.f32.mrf.mxu0
    %v2760 = vadd.f32 %v564, %v2759
    %v2761 = vpop.f32.mrf.mxu0
    %v2762 = vadd.f32 %v564, %v2761
    %2763 = vmatmul.bf16.gmra.mxu0 %v742
    %v2764 = vpop.f32.mrf.mxu0
    %v2765 = vadd.f32 %v564, %v2764
    %v2766 = vpop.f32.mrf.mxu0
    %v2767 = vadd.f32 %v564, %v2766
    %2768 = vmatmul.bf16.gmra.mxu0 %v748
    %v2769 = vpop.f32.mrf.mxu0
    %v2770 = vadd.f32 %v564, %v2769
    %v2771 = vpop.f32.mrf.mxu0
    %v2772 = vadd.f32 %v564, %v2771
    %2773 = vmatmul.bf16.gmra.mxu0 %v754
    %v2774 = vpop.f32.mrf.mxu0
    %v2775 = vadd.f32 %v564, %v2774
    %v2776 = vpop.f32.mrf.mxu0
    %v2777 = vadd.f32 %v564, %v2776
    %2778 = vmatmul.bf16.gmra.mxu0 %v760
    %v2779 = vpop.f32.mrf.mxu0
    %v2780 = vadd.f32 %v564, %v2779
    %v2781 = vpop.f32.mrf.mxu0
    %v2782 = vadd.f32 %v564, %v2781
    %2783 = vmatmul.bf16.gmra.mxu0 %v766
    %v2784 = vpop.f32.mrf.mxu0
    %v2785 = vadd.f32 %v564, %v2784
    %v2786 = vpop.f32.mrf.mxu0
    %v2787 = vadd.f32 %v564, %v2786
    %2788 = vdwg.mxu0
    %2789 = vmatpush.bf16.msra.mxu0 %v2092
    %2790 = vmatpush.bf16.msra.mxu0 %v2084
    %2791 = vmatpush.bf16.msra.mxu0 %v2076
    %2792 = vmatpush.bf16.msra.mxu0 %v2068
    %2793 = vmatpush.bf16.msra.mxu0 %v2060
    %2794 = vmatpush.bf16.msra.mxu0 %v2052
    %2795 = vmatpush.bf16.msra.mxu0 %v2044
    %2796 = vmatpush.bf16.msra.mxu0 %v2036
    %2797 = vmatmul.bf16.gmra.mxu0 %v725
    %v2798 = vpop.f32.mrf.mxu0
    %v2799 = vadd.f32 %v2750, %v2798
    %v2800 = vpop.f32.mrf.mxu0
    %v2801 = vadd.f32 %v2752, %v2800
    %2802 = vmatmul.bf16.gmra.mxu0 %v731
    %v2803 = vpop.f32.mrf.mxu0
    %v2804 = vadd.f32 %v2755, %v2803
    %v2805 = vpop.f32.mrf.mxu0
    %v2806 = vadd.f32 %v2757, %v2805
    %2807 = vmatmul.bf16.gmra.mxu0 %v737
    %v2808 = vpop.f32.mrf.mxu0
    %v2809 = vadd.f32 %v2760, %v2808
    %v2810 = vpop.f32.mrf.mxu0
    %v2811 = vadd.f32 %v2762, %v2810
    %2812 = vmatmul.bf16.gmra.mxu0 %v743
    %v2813 = vpop.f32.mrf.mxu0
    %v2814 = vadd.f32 %v2765, %v2813
    %v2815 = vpop.f32.mrf.mxu0
    %v2816 = vadd.f32 %v2767, %v2815
    %2817 = vmatmul.bf16.gmra.mxu0 %v749
    %v2818 = vpop.f32.mrf.mxu0
    %v2819 = vadd.f32 %v2770, %v2818
    %v2820 = vpop.f32.mrf.mxu0
    %v2821 = vadd.f32 %v2772, %v2820
    %2822 = vmatmul.bf16.gmra.mxu0 %v755
    %v2823 = vpop.f32.mrf.mxu0
    %v2824 = vadd.f32 %v2775, %v2823
    %v2825 = vpop.f32.mrf.mxu0
    %v2826 = vadd.f32 %v2777, %v2825
    %2827 = vmatmul.bf16.gmra.mxu0 %v761
    %v2828 = vpop.f32.mrf.mxu0
    %v2829 = vadd.f32 %v2780, %v2828
    %v2830 = vpop.f32.mrf.mxu0
    %v2831 = vadd.f32 %v2782, %v2830
    %2832 = vmatmul.bf16.gmra.mxu0 %v767
    %v2833 = vpop.f32.mrf.mxu0
    %v2834 = vadd.f32 %v2785, %v2833
    %v2835 = vpop.f32.mrf.mxu0
    %v2836 = vadd.f32 %v2787, %v2835
    %2837 = vdwg.mxu0
    %2838 = vmatpush.bf16.msra.mxu0 %v2156
    %2839 = vmatpush.bf16.msra.mxu0 %v2148
    %2840 = vmatpush.bf16.msra.mxu0 %v2140
    %2841 = vmatpush.bf16.msra.mxu0 %v2132
    %2842 = vmatpush.bf16.msra.mxu0 %v2124
    %2843 = vmatpush.bf16.msra.mxu0 %v2116
    %2844 = vmatpush.bf16.msra.mxu0 %v2108
    %2845 = vmatpush.bf16.msra.mxu0 %v2100
    %2846 = vmatmul.bf16.gmra.mxu0 %v726
    %v2847 = vpop.f32.mrf.mxu0
    %v2848 = vadd.f32 %v2799, %v2847
    %v2849 = vpop.f32.mrf.mxu0
    %v2850 = vadd.f32 %v2801, %v2849
    %2851 = vmatmul.bf16.gmra.mxu0 %v732
    %v2852 = vpop.f32.mrf.mxu0
    %v2853 = vadd.f32 %v2804, %v2852
    %v2854 = vpop.f32.mrf.mxu0
    %v2855 = vadd.f32 %v2806, %v2854
    %2856 = vmatmul.bf16.gmra.mxu0 %v738
    %v2857 = vpop.f32.mrf.mxu0
    %v2858 = vadd.f32 %v2809, %v2857
    %v2859 = vpop.f32.mrf.mxu0
    %v2860 = vadd.f32 %v2811, %v2859
    %2861 = vmatmul.bf16.gmra.mxu0 %v744
    %v2862 = vpop.f32.mrf.mxu0
    %v2863 = vadd.f32 %v2814, %v2862
    %v2864 = vpop.f32.mrf.mxu0
    %v2865 = vadd.f32 %v2816, %v2864
    %2866 = vmatmul.bf16.gmra.mxu0 %v750
    %v2867 = vpop.f32.mrf.mxu0
    %v2868 = vadd.f32 %v2819, %v2867
    %v2869 = vpop.f32.mrf.mxu0
    %v2870 = vadd.f32 %v2821, %v2869
    %2871 = vmatmul.bf16.gmra.mxu0 %v756
    %v2872 = vpop.f32.mrf.mxu0
    %v2873 = vadd.f32 %v2824, %v2872
    %v2874 = vpop.f32.mrf.mxu0
    %v2875 = vadd.f32 %v2826, %v2874
    %2876 = vmatmul.bf16.gmra.mxu0 %v762
    %v2877 = vpop.f32.mrf.mxu0
    %v2878 = vadd.f32 %v2829, %v2877
    %v2879 = vpop.f32.mrf.mxu0
    %v2880 = vadd.f32 %v2831, %v2879
    %2881 = vmatmul.bf16.gmra.mxu0 %v768
    %v2882 = vpop.f32.mrf.mxu0
    %v2883 = vadd.f32 %v2834, %v2882
    %v2884 = vpop.f32.mrf.mxu0
    %v2885 = vadd.f32 %v2836, %v2884
    %2886 = vdwg.mxu0
    %2887 = vmatpush.bf16.msra.mxu0 %v2220
    %2888 = vmatpush.bf16.msra.mxu0 %v2212
    %2889 = vmatpush.bf16.msra.mxu0 %v2204
    %2890 = vmatpush.bf16.msra.mxu0 %v2196
    %2891 = vmatpush.bf16.msra.mxu0 %v2188
    %2892 = vmatpush.bf16.msra.mxu0 %v2180
    %2893 = vmatpush.bf16.msra.mxu0 %v2172
    %2894 = vmatpush.bf16.msra.mxu0 %v2164
    %2895 = vmatmul.bf16.gmra.mxu0 %v727
    %v2896 = vpop.f32.mrf.mxu0
    %v2897 = vadd.f32 %v2848, %v2896
    %v2898 = vpop.f32.mrf.mxu0
    %v2899 = vadd.f32 %v2850, %v2898
    %2900 = vmatmul.bf16.gmra.mxu0 %v733
    %v2901 = vpop.f32.mrf.mxu0
    %v2902 = vadd.f32 %v2853, %v2901
    %v2903 = vpop.f32.mrf.mxu0
    %v2904 = vadd.f32 %v2855, %v2903
    %2905 = vmatmul.bf16.gmra.mxu0 %v739
    %v2906 = vpop.f32.mrf.mxu0
    %v2907 = vadd.f32 %v2858, %v2906
    %v2908 = vpop.f32.mrf.mxu0
    %v2909 = vadd.f32 %v2860, %v2908
    %2910 = vmatmul.bf16.gmra.mxu0 %v745
    %v2911 = vpop.f32.mrf.mxu0
    %v2912 = vadd.f32 %v2863, %v2911
    %v2913 = vpop.f32.mrf.mxu0
    %v2914 = vadd.f32 %v2865, %v2913
    %2915 = vmatmul.bf16.gmra.mxu0 %v751
    %v2916 = vpop.f32.mrf.mxu0
    %v2917 = vadd.f32 %v2868, %v2916
    %v2918 = vpop.f32.mrf.mxu0
    %v2919 = vadd.f32 %v2870, %v2918
    %2920 = vmatmul.bf16.gmra.mxu0 %v757
    %v2921 = vpop.f32.mrf.mxu0
    %v2922 = vadd.f32 %v2873, %v2921
    %v2923 = vpop.f32.mrf.mxu0
    %v2924 = vadd.f32 %v2875, %v2923
    %2925 = vmatmul.bf16.gmra.mxu0 %v763
    %v2926 = vpop.f32.mrf.mxu0
    %v2927 = vadd.f32 %v2878, %v2926
    %v2928 = vpop.f32.mrf.mxu0
    %v2929 = vadd.f32 %v2880, %v2928
    %2930 = vmatmul.bf16.gmra.mxu0 %v769
    %v2931 = vpop.f32.mrf.mxu0
    %v2932 = vadd.f32 %v2883, %v2931
    %v2933 = vpop.f32.mrf.mxu0
    %v2934 = vadd.f32 %v2885, %v2933
    %2935 = vdwg.mxu0
    %2936 = vmatpush.bf16.msra.mxu0 %v2284
    %2937 = vmatpush.bf16.msra.mxu0 %v2276
    %2938 = vmatpush.bf16.msra.mxu0 %v2268
    %2939 = vmatpush.bf16.msra.mxu0 %v2260
    %2940 = vmatpush.bf16.msra.mxu0 %v2252
    %2941 = vmatpush.bf16.msra.mxu0 %v2244
    %2942 = vmatpush.bf16.msra.mxu0 %v2236
    %2943 = vmatpush.bf16.msra.mxu0 %v2228
    %2944 = vmatmul.bf16.gmra.mxu0 %v728
    %v2945 = vpop.f32.mrf.mxu0
    %v2946 = vadd.f32 %v2897, %v2945
    %v2947 = vpop.f32.mrf.mxu0
    %v2948 = vadd.f32 %v2899, %v2947
    %2949 = vmatmul.bf16.gmra.mxu0 %v734
    %v2950 = vpop.f32.mrf.mxu0
    %v2951 = vadd.f32 %v2902, %v2950
    %v2952 = vpop.f32.mrf.mxu0
    %v2953 = vadd.f32 %v2904, %v2952
    %2954 = vmatmul.bf16.gmra.mxu0 %v740
    %v2955 = vpop.f32.mrf.mxu0
    %v2956 = vadd.f32 %v2907, %v2955
    %v2957 = vpop.f32.mrf.mxu0
    %v2958 = vadd.f32 %v2909, %v2957
    %2959 = vmatmul.bf16.gmra.mxu0 %v746
    %v2960 = vpop.f32.mrf.mxu0
    %v2961 = vadd.f32 %v2912, %v2960
    %v2962 = vpop.f32.mrf.mxu0
    %v2963 = vadd.f32 %v2914, %v2962
    %2964 = vmatmul.bf16.gmra.mxu0 %v752
    %v2965 = vpop.f32.mrf.mxu0
    %v2966 = vadd.f32 %v2917, %v2965
    %v2967 = vpop.f32.mrf.mxu0
    %v2968 = vadd.f32 %v2919, %v2967
    %2969 = vmatmul.bf16.gmra.mxu0 %v758
    %v2970 = vpop.f32.mrf.mxu0
    %v2971 = vadd.f32 %v2922, %v2970
    %v2972 = vpop.f32.mrf.mxu0
    %v2973 = vadd.f32 %v2924, %v2972
    %2974 = vmatmul.bf16.gmra.mxu0 %v764
    %v2975 = vpop.f32.mrf.mxu0
    %v2976 = vadd.f32 %v2927, %v2975
    %v2977 = vpop.f32.mrf.mxu0
    %v2978 = vadd.f32 %v2929, %v2977
    %2979 = vmatmul.bf16.gmra.mxu0 %v770
    %v2980 = vpop.f32.mrf.mxu0
    %v2981 = vadd.f32 %v2932, %v2980
    %v2982 = vpop.f32.mrf.mxu0
    %v2983 = vadd.f32 %v2934, %v2982
    %2984 = vdwg.mxu0
    %2985 = vmatpush.bf16.msra.mxu0 %v2348
    %2986 = vmatpush.bf16.msra.mxu0 %v2340
    %2987 = vmatpush.bf16.msra.mxu0 %v2332
    %2988 = vmatpush.bf16.msra.mxu0 %v2324
    %2989 = vmatpush.bf16.msra.mxu0 %v2316
    %2990 = vmatpush.bf16.msra.mxu0 %v2308
    %2991 = vmatpush.bf16.msra.mxu0 %v2300
    %2992 = vmatpush.bf16.msra.mxu0 %v2292
    %2993 = vmatmul.bf16.gmra.mxu0 %v729
    %v2994 = vpop.f32.mrf.mxu0
    %v2995 = vadd.f32 %v2946, %v2994
    %v2996 = vpop.f32.mrf.mxu0
    %v2997 = vadd.f32 %v2948, %v2996
    %2998 = vmatmul.bf16.gmra.mxu0 %v735
    %v2999 = vpop.f32.mrf.mxu0
    %v3000 = vadd.f32 %v2951, %v2999
    %v3001 = vpop.f32.mrf.mxu0
    %v3002 = vadd.f32 %v2953, %v3001
    %3003 = vmatmul.bf16.gmra.mxu0 %v741
    %v3004 = vpop.f32.mrf.mxu0
    %v3005 = vadd.f32 %v2956, %v3004
    %v3006 = vpop.f32.mrf.mxu0
    %v3007 = vadd.f32 %v2958, %v3006
    %3008 = vmatmul.bf16.gmra.mxu0 %v747
    %v3009 = vpop.f32.mrf.mxu0
    %v3010 = vadd.f32 %v2961, %v3009
    %v3011 = vpop.f32.mrf.mxu0
    %v3012 = vadd.f32 %v2963, %v3011
    %3013 = vmatmul.bf16.gmra.mxu0 %v753
    %v3014 = vpop.f32.mrf.mxu0
    %v3015 = vadd.f32 %v2966, %v3014
    %v3016 = vpop.f32.mrf.mxu0
    %v3017 = vadd.f32 %v2968, %v3016
    %3018 = vmatmul.bf16.gmra.mxu0 %v759
    %v3019 = vpop.f32.mrf.mxu0
    %v3020 = vadd.f32 %v2971, %v3019
    %v3021 = vpop.f32.mrf.mxu0
    %v3022 = vadd.f32 %v2973, %v3021
    %3023 = vmatmul.bf16.gmra.mxu0 %v765
    %v3024 = vpop.f32.mrf.mxu0
    %v3025 = vadd.f32 %v2976, %v3024
    %v3026 = vpop.f32.mrf.mxu0
    %v3027 = vadd.f32 %v2978, %v3026
    %3028 = vmatmul.bf16.gmra.mxu0 %v771
    %v3029 = vpop.f32.mrf.mxu0
    %v3030 = vadd.f32 %v2981, %v3029
    %v3031 = vpop.f32.mrf.mxu0
    %v3032 = vadd.f32 %v2983, %v3031
    %3033 = vdwg.mxu0
    %3034 = vmatpush.bf16.msra.mxu0 %v2029
    %3035 = vmatpush.bf16.msra.mxu0 %v2021
    %3036 = vmatpush.bf16.msra.mxu0 %v2013
    %3037 = vmatpush.bf16.msra.mxu0 %v2005
    %3038 = vmatpush.bf16.msra.mxu0 %v1997
    %3039 = vmatpush.bf16.msra.mxu0 %v1989
    %3040 = vmatpush.bf16.msra.mxu0 %v1981
    %3041 = vmatpush.bf16.msra.mxu0 %v1973
    %3042 = vmatmul.bf16.gmra.mxu0 %v724
    %v3043 = vpop.f32.mrf.mxu0
    %v3044 = vadd.f32 %v565, %v3043
    %v3045 = vpop.f32.mrf.mxu0
    %v3046 = vadd.f32 %v565, %v3045
    %3047 = vmatmul.bf16.gmra.mxu0 %v730
    %v3048 = vpop.f32.mrf.mxu0
    %v3049 = vadd.f32 %v565, %v3048
    %v3050 = vpop.f32.mrf.mxu0
    %v3051 = vadd.f32 %v565, %v3050
    %3052 = vmatmul.bf16.gmra.mxu0 %v736
    %v3053 = vpop.f32.mrf.mxu0
    %v3054 = vadd.f32 %v565, %v3053
    %v3055 = vpop.f32.mrf.mxu0
    %v3056 = vadd.f32 %v565, %v3055
    %3057 = vmatmul.bf16.gmra.mxu0 %v742
    %v3058 = vpop.f32.mrf.mxu0
    %v3059 = vadd.f32 %v565, %v3058
    %v3060 = vpop.f32.mrf.mxu0
    %v3061 = vadd.f32 %v565, %v3060
    %3062 = vmatmul.bf16.gmra.mxu0 %v748
    %v3063 = vpop.f32.mrf.mxu0
    %v3064 = vadd.f32 %v565, %v3063
    %v3065 = vpop.f32.mrf.mxu0
    %v3066 = vadd.f32 %v565, %v3065
    %3067 = vmatmul.bf16.gmra.mxu0 %v754
    %v3068 = vpop.f32.mrf.mxu0
    %v3069 = vadd.f32 %v565, %v3068
    %v3070 = vpop.f32.mrf.mxu0
    %v3071 = vadd.f32 %v565, %v3070
    %3072 = vmatmul.bf16.gmra.mxu0 %v760
    %v3073 = vpop.f32.mrf.mxu0
    %v3074 = vadd.f32 %v565, %v3073
    %v3075 = vpop.f32.mrf.mxu0
    %v3076 = vadd.f32 %v565, %v3075
    %3077 = vmatmul.bf16.gmra.mxu0 %v766
    %v3078 = vpop.f32.mrf.mxu0
    %v3079 = vadd.f32 %v565, %v3078
    %v3080 = vpop.f32.mrf.mxu0
    %v3081 = vadd.f32 %v565, %v3080
    %3082 = vdwg.mxu0
    %3083 = vmatpush.bf16.msra.mxu0 %v2093
    %3084 = vmatpush.bf16.msra.mxu0 %v2085
    %3085 = vmatpush.bf16.msra.mxu0 %v2077
    %3086 = vmatpush.bf16.msra.mxu0 %v2069
    %3087 = vmatpush.bf16.msra.mxu0 %v2061
    %3088 = vmatpush.bf16.msra.mxu0 %v2053
    %3089 = vmatpush.bf16.msra.mxu0 %v2045
    %3090 = vmatpush.bf16.msra.mxu0 %v2037
    %3091 = vmatmul.bf16.gmra.mxu0 %v725
    %v3092 = vpop.f32.mrf.mxu0
    %v3093 = vadd.f32 %v3044, %v3092
    %v3094 = vpop.f32.mrf.mxu0
    %v3095 = vadd.f32 %v3046, %v3094
    %3096 = vmatmul.bf16.gmra.mxu0 %v731
    %v3097 = vpop.f32.mrf.mxu0
    %v3098 = vadd.f32 %v3049, %v3097
    %v3099 = vpop.f32.mrf.mxu0
    %v3100 = vadd.f32 %v3051, %v3099
    %3101 = vmatmul.bf16.gmra.mxu0 %v737
    %v3102 = vpop.f32.mrf.mxu0
    %v3103 = vadd.f32 %v3054, %v3102
    %v3104 = vpop.f32.mrf.mxu0
    %v3105 = vadd.f32 %v3056, %v3104
    %3106 = vmatmul.bf16.gmra.mxu0 %v743
    %v3107 = vpop.f32.mrf.mxu0
    %v3108 = vadd.f32 %v3059, %v3107
    %v3109 = vpop.f32.mrf.mxu0
    %v3110 = vadd.f32 %v3061, %v3109
    %3111 = vmatmul.bf16.gmra.mxu0 %v749
    %v3112 = vpop.f32.mrf.mxu0
    %v3113 = vadd.f32 %v3064, %v3112
    %v3114 = vpop.f32.mrf.mxu0
    %v3115 = vadd.f32 %v3066, %v3114
    %3116 = vmatmul.bf16.gmra.mxu0 %v755
    %v3117 = vpop.f32.mrf.mxu0
    %v3118 = vadd.f32 %v3069, %v3117
    %v3119 = vpop.f32.mrf.mxu0
    %v3120 = vadd.f32 %v3071, %v3119
    %3121 = vmatmul.bf16.gmra.mxu0 %v761
    %v3122 = vpop.f32.mrf.mxu0
    %v3123 = vadd.f32 %v3074, %v3122
    %v3124 = vpop.f32.mrf.mxu0
    %v3125 = vadd.f32 %v3076, %v3124
    %3126 = vmatmul.bf16.gmra.mxu0 %v767
    %v3127 = vpop.f32.mrf.mxu0
    %v3128 = vadd.f32 %v3079, %v3127
    %v3129 = vpop.f32.mrf.mxu0
    %v3130 = vadd.f32 %v3081, %v3129
    %3131 = vdwg.mxu0
    %3132 = vmatpush.bf16.msra.mxu0 %v2157
    %3133 = vmatpush.bf16.msra.mxu0 %v2149
    %3134 = vmatpush.bf16.msra.mxu0 %v2141
    %3135 = vmatpush.bf16.msra.mxu0 %v2133
    %3136 = vmatpush.bf16.msra.mxu0 %v2125
    %3137 = vmatpush.bf16.msra.mxu0 %v2117
    %3138 = vmatpush.bf16.msra.mxu0 %v2109
    %3139 = vmatpush.bf16.msra.mxu0 %v2101
    %3140 = vmatmul.bf16.gmra.mxu0 %v726
    %v3141 = vpop.f32.mrf.mxu0
    %v3142 = vadd.f32 %v3093, %v3141
    %v3143 = vpop.f32.mrf.mxu0
    %v3144 = vadd.f32 %v3095, %v3143
    %3145 = vmatmul.bf16.gmra.mxu0 %v732
    %v3146 = vpop.f32.mrf.mxu0
    %v3147 = vadd.f32 %v3098, %v3146
    %v3148 = vpop.f32.mrf.mxu0
    %v3149 = vadd.f32 %v3100, %v3148
    %3150 = vmatmul.bf16.gmra.mxu0 %v738
    %v3151 = vpop.f32.mrf.mxu0
    %v3152 = vadd.f32 %v3103, %v3151
    %v3153 = vpop.f32.mrf.mxu0
    %v3154 = vadd.f32 %v3105, %v3153
    %3155 = vmatmul.bf16.gmra.mxu0 %v744
    %v3156 = vpop.f32.mrf.mxu0
    %v3157 = vadd.f32 %v3108, %v3156
    %v3158 = vpop.f32.mrf.mxu0
    %v3159 = vadd.f32 %v3110, %v3158
    %3160 = vmatmul.bf16.gmra.mxu0 %v750
    %v3161 = vpop.f32.mrf.mxu0
    %v3162 = vadd.f32 %v3113, %v3161
    %v3163 = vpop.f32.mrf.mxu0
    %v3164 = vadd.f32 %v3115, %v3163
    %3165 = vmatmul.bf16.gmra.mxu0 %v756
    %v3166 = vpop.f32.mrf.mxu0
    %v3167 = vadd.f32 %v3118, %v3166
    %v3168 = vpop.f32.mrf.mxu0
    %v3169 = vadd.f32 %v3120, %v3168
    %3170 = vmatmul.bf16.gmra.mxu0 %v762
    %v3171 = vpop.f32.mrf.mxu0
    %v3172 = vadd.f32 %v3123, %v3171
    %v3173 = vpop.f32.mrf.mxu0
    %v3174 = vadd.f32 %v3125, %v3173
    %3175 = vmatmul.bf16.gmra.mxu0 %v768
    %v3176 = vpop.f32.mrf.mxu0
    %v3177 = vadd.f32 %v3128, %v3176
    %v3178 = vpop.f32.mrf.mxu0
    %v3179 = vadd.f32 %v3130, %v3178
    %3180 = vdwg.mxu0
    %3181 = vmatpush.bf16.msra.mxu0 %v2221
    %3182 = vmatpush.bf16.msra.mxu0 %v2213
    %3183 = vmatpush.bf16.msra.mxu0 %v2205
    %3184 = vmatpush.bf16.msra.mxu0 %v2197
    %3185 = vmatpush.bf16.msra.mxu0 %v2189
    %3186 = vmatpush.bf16.msra.mxu0 %v2181
    %3187 = vmatpush.bf16.msra.mxu0 %v2173
    %3188 = vmatpush.bf16.msra.mxu0 %v2165
    %3189 = vmatmul.bf16.gmra.mxu0 %v727
    %v3190 = vpop.f32.mrf.mxu0
    %v3191 = vadd.f32 %v3142, %v3190
    %v3192 = vpop.f32.mrf.mxu0
    %v3193 = vadd.f32 %v3144, %v3192
    %3194 = vmatmul.bf16.gmra.mxu0 %v733
    %v3195 = vpop.f32.mrf.mxu0
    %v3196 = vadd.f32 %v3147, %v3195
    %v3197 = vpop.f32.mrf.mxu0
    %v3198 = vadd.f32 %v3149, %v3197
    %3199 = vmatmul.bf16.gmra.mxu0 %v739
    %v3200 = vpop.f32.mrf.mxu0
    %v3201 = vadd.f32 %v3152, %v3200
    %v3202 = vpop.f32.mrf.mxu0
    %v3203 = vadd.f32 %v3154, %v3202
    %3204 = vmatmul.bf16.gmra.mxu0 %v745
    %v3205 = vpop.f32.mrf.mxu0
    %v3206 = vadd.f32 %v3157, %v3205
    %v3207 = vpop.f32.mrf.mxu0
    %v3208 = vadd.f32 %v3159, %v3207
    %3209 = vmatmul.bf16.gmra.mxu0 %v751
    %v3210 = vpop.f32.mrf.mxu0
    %v3211 = vadd.f32 %v3162, %v3210
    %v3212 = vpop.f32.mrf.mxu0
    %v3213 = vadd.f32 %v3164, %v3212
    %3214 = vmatmul.bf16.gmra.mxu0 %v757
    %v3215 = vpop.f32.mrf.mxu0
    %v3216 = vadd.f32 %v3167, %v3215
    %v3217 = vpop.f32.mrf.mxu0
    %v3218 = vadd.f32 %v3169, %v3217
    %3219 = vmatmul.bf16.gmra.mxu0 %v763
    %v3220 = vpop.f32.mrf.mxu0
    %v3221 = vadd.f32 %v3172, %v3220
    %v3222 = vpop.f32.mrf.mxu0
    %v3223 = vadd.f32 %v3174, %v3222
    %3224 = vmatmul.bf16.gmra.mxu0 %v769
    %v3225 = vpop.f32.mrf.mxu0
    %v3226 = vadd.f32 %v3177, %v3225
    %v3227 = vpop.f32.mrf.mxu0
    %v3228 = vadd.f32 %v3179, %v3227
    %3229 = vdwg.mxu0
    %3230 = vmatpush.bf16.msra.mxu0 %v2285
    %3231 = vmatpush.bf16.msra.mxu0 %v2277
    %3232 = vmatpush.bf16.msra.mxu0 %v2269
    %3233 = vmatpush.bf16.msra.mxu0 %v2261
    %3234 = vmatpush.bf16.msra.mxu0 %v2253
    %3235 = vmatpush.bf16.msra.mxu0 %v2245
    %3236 = vmatpush.bf16.msra.mxu0 %v2237
    %3237 = vmatpush.bf16.msra.mxu0 %v2229
    %3238 = vmatmul.bf16.gmra.mxu0 %v728
    %v3239 = vpop.f32.mrf.mxu0
    %v3240 = vadd.f32 %v3191, %v3239
    %v3241 = vpop.f32.mrf.mxu0
    %v3242 = vadd.f32 %v3193, %v3241
    %3243 = vmatmul.bf16.gmra.mxu0 %v734
    %v3244 = vpop.f32.mrf.mxu0
    %v3245 = vadd.f32 %v3196, %v3244
    %v3246 = vpop.f32.mrf.mxu0
    %v3247 = vadd.f32 %v3198, %v3246
    %3248 = vmatmul.bf16.gmra.mxu0 %v740
    %v3249 = vpop.f32.mrf.mxu0
    %v3250 = vadd.f32 %v3201, %v3249
    %v3251 = vpop.f32.mrf.mxu0
    %v3252 = vadd.f32 %v3203, %v3251
    %3253 = vmatmul.bf16.gmra.mxu0 %v746
    %v3254 = vpop.f32.mrf.mxu0
    %v3255 = vadd.f32 %v3206, %v3254
    %v3256 = vpop.f32.mrf.mxu0
    %v3257 = vadd.f32 %v3208, %v3256
    %3258 = vmatmul.bf16.gmra.mxu0 %v752
    %v3259 = vpop.f32.mrf.mxu0
    %v3260 = vadd.f32 %v3211, %v3259
    %v3261 = vpop.f32.mrf.mxu0
    %v3262 = vadd.f32 %v3213, %v3261
    %3263 = vmatmul.bf16.gmra.mxu0 %v758
    %v3264 = vpop.f32.mrf.mxu0
    %v3265 = vadd.f32 %v3216, %v3264
    %v3266 = vpop.f32.mrf.mxu0
    %v3267 = vadd.f32 %v3218, %v3266
    %3268 = vmatmul.bf16.gmra.mxu0 %v764
    %v3269 = vpop.f32.mrf.mxu0
    %v3270 = vadd.f32 %v3221, %v3269
    %v3271 = vpop.f32.mrf.mxu0
    %v3272 = vadd.f32 %v3223, %v3271
    %3273 = vmatmul.bf16.gmra.mxu0 %v770
    %v3274 = vpop.f32.mrf.mxu0
    %v3275 = vadd.f32 %v3226, %v3274
    %v3276 = vpop.f32.mrf.mxu0
    %v3277 = vadd.f32 %v3228, %v3276
    %3278 = vdwg.mxu0
    %3279 = vmatpush.bf16.msra.mxu0 %v2349
    %3280 = vmatpush.bf16.msra.mxu0 %v2341
    %3281 = vmatpush.bf16.msra.mxu0 %v2333
    %3282 = vmatpush.bf16.msra.mxu0 %v2325
    %3283 = vmatpush.bf16.msra.mxu0 %v2317
    %3284 = vmatpush.bf16.msra.mxu0 %v2309
    %3285 = vmatpush.bf16.msra.mxu0 %v2301
    %3286 = vmatpush.bf16.msra.mxu0 %v2293
    %3287 = vmatmul.bf16.gmra.mxu0 %v729
    %v3288 = vpop.f32.mrf.mxu0
    %v3289 = vadd.f32 %v3240, %v3288
    %v3290 = vpop.f32.mrf.mxu0
    %v3291 = vadd.f32 %v3242, %v3290
    %3292 = vmatmul.bf16.gmra.mxu0 %v735
    %v3293 = vpop.f32.mrf.mxu0
    %v3294 = vadd.f32 %v3245, %v3293
    %v3295 = vpop.f32.mrf.mxu0
    %v3296 = vadd.f32 %v3247, %v3295
    %3297 = vmatmul.bf16.gmra.mxu0 %v741
    %v3298 = vpop.f32.mrf.mxu0
    %v3299 = vadd.f32 %v3250, %v3298
    %v3300 = vpop.f32.mrf.mxu0
    %v3301 = vadd.f32 %v3252, %v3300
    %3302 = vmatmul.bf16.gmra.mxu0 %v747
    %v3303 = vpop.f32.mrf.mxu0
    %v3304 = vadd.f32 %v3255, %v3303
    %v3305 = vpop.f32.mrf.mxu0
    %v3306 = vadd.f32 %v3257, %v3305
    %3307 = vmatmul.bf16.gmra.mxu0 %v753
    %v3308 = vpop.f32.mrf.mxu0
    %v3309 = vadd.f32 %v3260, %v3308
    %v3310 = vpop.f32.mrf.mxu0
    %v3311 = vadd.f32 %v3262, %v3310
    %3312 = vmatmul.bf16.gmra.mxu0 %v759
    %v3313 = vpop.f32.mrf.mxu0
    %v3314 = vadd.f32 %v3265, %v3313
    %v3315 = vpop.f32.mrf.mxu0
    %v3316 = vadd.f32 %v3267, %v3315
    %3317 = vmatmul.bf16.gmra.mxu0 %v765
    %v3318 = vpop.f32.mrf.mxu0
    %v3319 = vadd.f32 %v3270, %v3318
    %v3320 = vpop.f32.mrf.mxu0
    %v3321 = vadd.f32 %v3272, %v3320
    %3322 = vmatmul.bf16.gmra.mxu0 %v771
    %v3323 = vpop.f32.mrf.mxu0
    %v3324 = vadd.f32 %v3275, %v3323
    %v3325 = vpop.f32.mrf.mxu0
    %v3326 = vadd.f32 %v3277, %v3325
    %3327 = vdwg.mxu0
    %3328 = vmatpush.bf16.msra.mxu0 %v2030
    %3329 = vmatpush.bf16.msra.mxu0 %v2022
    %3330 = vmatpush.bf16.msra.mxu0 %v2014
    %3331 = vmatpush.bf16.msra.mxu0 %v2006
    %3332 = vmatpush.bf16.msra.mxu0 %v1998
    %3333 = vmatpush.bf16.msra.mxu0 %v1990
    %3334 = vmatpush.bf16.msra.mxu0 %v1982
    %3335 = vmatpush.bf16.msra.mxu0 %v1974
    %3336 = vmatmul.bf16.gmra.mxu0 %v724
    %v3337 = vpop.f32.mrf.mxu0
    %v3338 = vadd.f32 %v566, %v3337
    %v3339 = vpop.f32.mrf.mxu0
    %v3340 = vadd.f32 %v566, %v3339
    %3341 = vmatmul.bf16.gmra.mxu0 %v730
    %v3342 = vpop.f32.mrf.mxu0
    %v3343 = vadd.f32 %v566, %v3342
    %v3344 = vpop.f32.mrf.mxu0
    %v3345 = vadd.f32 %v566, %v3344
    %3346 = vmatmul.bf16.gmra.mxu0 %v736
    %v3347 = vpop.f32.mrf.mxu0
    %v3348 = vadd.f32 %v566, %v3347
    %v3349 = vpop.f32.mrf.mxu0
    %v3350 = vadd.f32 %v566, %v3349
    %3351 = vmatmul.bf16.gmra.mxu0 %v742
    %v3352 = vpop.f32.mrf.mxu0
    %v3353 = vadd.f32 %v566, %v3352
    %v3354 = vpop.f32.mrf.mxu0
    %v3355 = vadd.f32 %v566, %v3354
    %3356 = vmatmul.bf16.gmra.mxu0 %v748
    %v3357 = vpop.f32.mrf.mxu0
    %v3358 = vadd.f32 %v566, %v3357
    %v3359 = vpop.f32.mrf.mxu0
    %v3360 = vadd.f32 %v566, %v3359
    %3361 = vmatmul.bf16.gmra.mxu0 %v754
    %v3362 = vpop.f32.mrf.mxu0
    %v3363 = vadd.f32 %v566, %v3362
    %v3364 = vpop.f32.mrf.mxu0
    %v3365 = vadd.f32 %v566, %v3364
    %3366 = vmatmul.bf16.gmra.mxu0 %v760
    %v3367 = vpop.f32.mrf.mxu0
    %v3368 = vadd.f32 %v566, %v3367
    %v3369 = vpop.f32.mrf.mxu0
    %v3370 = vadd.f32 %v566, %v3369
    %3371 = vmatmul.bf16.gmra.mxu0 %v766
    %v3372 = vpop.f32.mrf.mxu0
    %v3373 = vadd.f32 %v566, %v3372
    %v3374 = vpop.f32.mrf.mxu0
    %v3375 = vadd.f32 %v566, %v3374
    %3376 = vdwg.mxu0
    %3377 = vmatpush.bf16.msra.mxu0 %v2094
    %3378 = vmatpush.bf16.msra.mxu0 %v2086
    %3379 = vmatpush.bf16.msra.mxu0 %v2078
    %3380 = vmatpush.bf16.msra.mxu0 %v2070
    %3381 = vmatpush.bf16.msra.mxu0 %v2062
    %3382 = vmatpush.bf16.msra.mxu0 %v2054
    %3383 = vmatpush.bf16.msra.mxu0 %v2046
    %3384 = vmatpush.bf16.msra.mxu0 %v2038
    %3385 = vmatmul.bf16.gmra.mxu0 %v725
    %v3386 = vpop.f32.mrf.mxu0
    %v3387 = vadd.f32 %v3338, %v3386
    %v3388 = vpop.f32.mrf.mxu0
    %v3389 = vadd.f32 %v3340, %v3388
    %3390 = vmatmul.bf16.gmra.mxu0 %v731
    %v3391 = vpop.f32.mrf.mxu0
    %v3392 = vadd.f32 %v3343, %v3391
    %v3393 = vpop.f32.mrf.mxu0
    %v3394 = vadd.f32 %v3345, %v3393
    %3395 = vmatmul.bf16.gmra.mxu0 %v737
    %v3396 = vpop.f32.mrf.mxu0
    %v3397 = vadd.f32 %v3348, %v3396
    %v3398 = vpop.f32.mrf.mxu0
    %v3399 = vadd.f32 %v3350, %v3398
    %3400 = vmatmul.bf16.gmra.mxu0 %v743
    %v3401 = vpop.f32.mrf.mxu0
    %v3402 = vadd.f32 %v3353, %v3401
    %v3403 = vpop.f32.mrf.mxu0
    %v3404 = vadd.f32 %v3355, %v3403
    %3405 = vmatmul.bf16.gmra.mxu0 %v749
    %v3406 = vpop.f32.mrf.mxu0
    %v3407 = vadd.f32 %v3358, %v3406
    %v3408 = vpop.f32.mrf.mxu0
    %v3409 = vadd.f32 %v3360, %v3408
    %3410 = vmatmul.bf16.gmra.mxu0 %v755
    %v3411 = vpop.f32.mrf.mxu0
    %v3412 = vadd.f32 %v3363, %v3411
    %v3413 = vpop.f32.mrf.mxu0
    %v3414 = vadd.f32 %v3365, %v3413
    %3415 = vmatmul.bf16.gmra.mxu0 %v761
    %v3416 = vpop.f32.mrf.mxu0
    %v3417 = vadd.f32 %v3368, %v3416
    %v3418 = vpop.f32.mrf.mxu0
    %v3419 = vadd.f32 %v3370, %v3418
    %3420 = vmatmul.bf16.gmra.mxu0 %v767
    %v3421 = vpop.f32.mrf.mxu0
    %v3422 = vadd.f32 %v3373, %v3421
    %v3423 = vpop.f32.mrf.mxu0
    %v3424 = vadd.f32 %v3375, %v3423
    %3425 = vdwg.mxu0
    %3426 = vmatpush.bf16.msra.mxu0 %v2158
    %3427 = vmatpush.bf16.msra.mxu0 %v2150
    %3428 = vmatpush.bf16.msra.mxu0 %v2142
    %3429 = vmatpush.bf16.msra.mxu0 %v2134
    %3430 = vmatpush.bf16.msra.mxu0 %v2126
    %3431 = vmatpush.bf16.msra.mxu0 %v2118
    %3432 = vmatpush.bf16.msra.mxu0 %v2110
    %3433 = vmatpush.bf16.msra.mxu0 %v2102
    %3434 = vmatmul.bf16.gmra.mxu0 %v726
    %v3435 = vpop.f32.mrf.mxu0
    %v3436 = vadd.f32 %v3387, %v3435
    %v3437 = vpop.f32.mrf.mxu0
    %v3438 = vadd.f32 %v3389, %v3437
    %3439 = vmatmul.bf16.gmra.mxu0 %v732
    %v3440 = vpop.f32.mrf.mxu0
    %v3441 = vadd.f32 %v3392, %v3440
    %v3442 = vpop.f32.mrf.mxu0
    %v3443 = vadd.f32 %v3394, %v3442
    %3444 = vmatmul.bf16.gmra.mxu0 %v738
    %v3445 = vpop.f32.mrf.mxu0
    %v3446 = vadd.f32 %v3397, %v3445
    %v3447 = vpop.f32.mrf.mxu0
    %v3448 = vadd.f32 %v3399, %v3447
    %3449 = vmatmul.bf16.gmra.mxu0 %v744
    %v3450 = vpop.f32.mrf.mxu0
    %v3451 = vadd.f32 %v3402, %v3450
    %v3452 = vpop.f32.mrf.mxu0
    %v3453 = vadd.f32 %v3404, %v3452
    %3454 = vmatmul.bf16.gmra.mxu0 %v750
    %v3455 = vpop.f32.mrf.mxu0
    %v3456 = vadd.f32 %v3407, %v3455
    %v3457 = vpop.f32.mrf.mxu0
    %v3458 = vadd.f32 %v3409, %v3457
    %3459 = vmatmul.bf16.gmra.mxu0 %v756
    %v3460 = vpop.f32.mrf.mxu0
    %v3461 = vadd.f32 %v3412, %v3460
    %v3462 = vpop.f32.mrf.mxu0
    %v3463 = vadd.f32 %v3414, %v3462
    %3464 = vmatmul.bf16.gmra.mxu0 %v762
    %v3465 = vpop.f32.mrf.mxu0
    %v3466 = vadd.f32 %v3417, %v3465
    %v3467 = vpop.f32.mrf.mxu0
    %v3468 = vadd.f32 %v3419, %v3467
    %3469 = vmatmul.bf16.gmra.mxu0 %v768
    %v3470 = vpop.f32.mrf.mxu0
    %v3471 = vadd.f32 %v3422, %v3470
    %v3472 = vpop.f32.mrf.mxu0
    %v3473 = vadd.f32 %v3424, %v3472
    %3474 = vdwg.mxu0
    %3475 = vmatpush.bf16.msra.mxu0 %v2222
    %3476 = vmatpush.bf16.msra.mxu0 %v2214
    %3477 = vmatpush.bf16.msra.mxu0 %v2206
    %3478 = vmatpush.bf16.msra.mxu0 %v2198
    %3479 = vmatpush.bf16.msra.mxu0 %v2190
    %3480 = vmatpush.bf16.msra.mxu0 %v2182
    %3481 = vmatpush.bf16.msra.mxu0 %v2174
    %3482 = vmatpush.bf16.msra.mxu0 %v2166
    %3483 = vmatmul.bf16.gmra.mxu0 %v727
    %v3484 = vpop.f32.mrf.mxu0
    %v3485 = vadd.f32 %v3436, %v3484
    %v3486 = vpop.f32.mrf.mxu0
    %v3487 = vadd.f32 %v3438, %v3486
    %3488 = vmatmul.bf16.gmra.mxu0 %v733
    %v3489 = vpop.f32.mrf.mxu0
    %v3490 = vadd.f32 %v3441, %v3489
    %v3491 = vpop.f32.mrf.mxu0
    %v3492 = vadd.f32 %v3443, %v3491
    %3493 = vmatmul.bf16.gmra.mxu0 %v739
    %v3494 = vpop.f32.mrf.mxu0
    %v3495 = vadd.f32 %v3446, %v3494
    %v3496 = vpop.f32.mrf.mxu0
    %v3497 = vadd.f32 %v3448, %v3496
    %3498 = vmatmul.bf16.gmra.mxu0 %v745
    %v3499 = vpop.f32.mrf.mxu0
    %v3500 = vadd.f32 %v3451, %v3499
    %v3501 = vpop.f32.mrf.mxu0
    %v3502 = vadd.f32 %v3453, %v3501
    %3503 = vmatmul.bf16.gmra.mxu0 %v751
    %v3504 = vpop.f32.mrf.mxu0
    %v3505 = vadd.f32 %v3456, %v3504
    %v3506 = vpop.f32.mrf.mxu0
    %v3507 = vadd.f32 %v3458, %v3506
    %3508 = vmatmul.bf16.gmra.mxu0 %v757
    %v3509 = vpop.f32.mrf.mxu0
    %v3510 = vadd.f32 %v3461, %v3509
    %v3511 = vpop.f32.mrf.mxu0
    %v3512 = vadd.f32 %v3463, %v3511
    %3513 = vmatmul.bf16.gmra.mxu0 %v763
    %v3514 = vpop.f32.mrf.mxu0
    %v3515 = vadd.f32 %v3466, %v3514
    %v3516 = vpop.f32.mrf.mxu0
    %v3517 = vadd.f32 %v3468, %v3516
    %3518 = vmatmul.bf16.gmra.mxu0 %v769
    %v3519 = vpop.f32.mrf.mxu0
    %v3520 = vadd.f32 %v3471, %v3519
    %v3521 = vpop.f32.mrf.mxu0
    %v3522 = vadd.f32 %v3473, %v3521
    %3523 = vdwg.mxu0
    %3524 = vmatpush.bf16.msra.mxu0 %v2286
    %3525 = vmatpush.bf16.msra.mxu0 %v2278
    %3526 = vmatpush.bf16.msra.mxu0 %v2270
    %3527 = vmatpush.bf16.msra.mxu0 %v2262
    %3528 = vmatpush.bf16.msra.mxu0 %v2254
    %3529 = vmatpush.bf16.msra.mxu0 %v2246
    %3530 = vmatpush.bf16.msra.mxu0 %v2238
    %3531 = vmatpush.bf16.msra.mxu0 %v2230
    %3532 = vmatmul.bf16.gmra.mxu0 %v728
    %v3533 = vpop.f32.mrf.mxu0
    %v3534 = vadd.f32 %v3485, %v3533
    %v3535 = vpop.f32.mrf.mxu0
    %v3536 = vadd.f32 %v3487, %v3535
    %3537 = vmatmul.bf16.gmra.mxu0 %v734
    %v3538 = vpop.f32.mrf.mxu0
    %v3539 = vadd.f32 %v3490, %v3538
    %v3540 = vpop.f32.mrf.mxu0
    %v3541 = vadd.f32 %v3492, %v3540
    %3542 = vmatmul.bf16.gmra.mxu0 %v740
    %v3543 = vpop.f32.mrf.mxu0
    %v3544 = vadd.f32 %v3495, %v3543
    %v3545 = vpop.f32.mrf.mxu0
    %v3546 = vadd.f32 %v3497, %v3545
    %3547 = vmatmul.bf16.gmra.mxu0 %v746
    %v3548 = vpop.f32.mrf.mxu0
    %v3549 = vadd.f32 %v3500, %v3548
    %v3550 = vpop.f32.mrf.mxu0
    %v3551 = vadd.f32 %v3502, %v3550
    %3552 = vmatmul.bf16.gmra.mxu0 %v752
    %v3553 = vpop.f32.mrf.mxu0
    %v3554 = vadd.f32 %v3505, %v3553
    %v3555 = vpop.f32.mrf.mxu0
    %v3556 = vadd.f32 %v3507, %v3555
    %3557 = vmatmul.bf16.gmra.mxu0 %v758
    %v3558 = vpop.f32.mrf.mxu0
    %v3559 = vadd.f32 %v3510, %v3558
    %v3560 = vpop.f32.mrf.mxu0
    %v3561 = vadd.f32 %v3512, %v3560
    %3562 = vmatmul.bf16.gmra.mxu0 %v764
    %v3563 = vpop.f32.mrf.mxu0
    %v3564 = vadd.f32 %v3515, %v3563
    %v3565 = vpop.f32.mrf.mxu0
    %v3566 = vadd.f32 %v3517, %v3565
    %3567 = vmatmul.bf16.gmra.mxu0 %v770
    %v3568 = vpop.f32.mrf.mxu0
    %v3569 = vadd.f32 %v3520, %v3568
    %v3570 = vpop.f32.mrf.mxu0
    %v3571 = vadd.f32 %v3522, %v3570
    %3572 = vdwg.mxu0
    %3573 = vmatpush.bf16.msra.mxu0 %v2350
    %3574 = vmatpush.bf16.msra.mxu0 %v2342
    %3575 = vmatpush.bf16.msra.mxu0 %v2334
    %3576 = vmatpush.bf16.msra.mxu0 %v2326
    %3577 = vmatpush.bf16.msra.mxu0 %v2318
    %3578 = vmatpush.bf16.msra.mxu0 %v2310
    %3579 = vmatpush.bf16.msra.mxu0 %v2302
    %3580 = vmatpush.bf16.msra.mxu0 %v2294
    %3581 = vmatmul.bf16.gmra.mxu0 %v729
    %v3582 = vpop.f32.mrf.mxu0
    %v3583 = vadd.f32 %v3534, %v3582
    %v3584 = vpop.f32.mrf.mxu0
    %v3585 = vadd.f32 %v3536, %v3584
    %3586 = vmatmul.bf16.gmra.mxu0 %v735
    %v3587 = vpop.f32.mrf.mxu0
    %v3588 = vadd.f32 %v3539, %v3587
    %v3589 = vpop.f32.mrf.mxu0
    %v3590 = vadd.f32 %v3541, %v3589
    %3591 = vmatmul.bf16.gmra.mxu0 %v741
    %v3592 = vpop.f32.mrf.mxu0
    %v3593 = vadd.f32 %v3544, %v3592
    %v3594 = vpop.f32.mrf.mxu0
    %v3595 = vadd.f32 %v3546, %v3594
    %3596 = vmatmul.bf16.gmra.mxu0 %v747
    %v3597 = vpop.f32.mrf.mxu0
    %v3598 = vadd.f32 %v3549, %v3597
    %v3599 = vpop.f32.mrf.mxu0
    %v3600 = vadd.f32 %v3551, %v3599
    %3601 = vmatmul.bf16.gmra.mxu0 %v753
    %v3602 = vpop.f32.mrf.mxu0
    %v3603 = vadd.f32 %v3554, %v3602
    %v3604 = vpop.f32.mrf.mxu0
    %v3605 = vadd.f32 %v3556, %v3604
    %3606 = vmatmul.bf16.gmra.mxu0 %v759
    %v3607 = vpop.f32.mrf.mxu0
    %v3608 = vadd.f32 %v3559, %v3607
    %v3609 = vpop.f32.mrf.mxu0
    %v3610 = vadd.f32 %v3561, %v3609
    %3611 = vmatmul.bf16.gmra.mxu0 %v765
    %v3612 = vpop.f32.mrf.mxu0
    %v3613 = vadd.f32 %v3564, %v3612
    %v3614 = vpop.f32.mrf.mxu0
    %v3615 = vadd.f32 %v3566, %v3614
    %3616 = vmatmul.bf16.gmra.mxu0 %v771
    %v3617 = vpop.f32.mrf.mxu0
    %v3618 = vadd.f32 %v3569, %v3617
    %v3619 = vpop.f32.mrf.mxu0
    %v3620 = vadd.f32 %v3571, %v3619
    %3621 = vdwg.mxu0
    %3622 = vmatpush.bf16.msra.mxu0 %v2031
    %3623 = vmatpush.bf16.msra.mxu0 %v2023
    %3624 = vmatpush.bf16.msra.mxu0 %v2015
    %3625 = vmatpush.bf16.msra.mxu0 %v2007
    %3626 = vmatpush.bf16.msra.mxu0 %v1999
    %3627 = vmatpush.bf16.msra.mxu0 %v1991
    %3628 = vmatpush.bf16.msra.mxu0 %v1983
    %3629 = vmatpush.bf16.msra.mxu0 %v1975
    %3630 = vmatmul.bf16.gmra.mxu0 %v724
    %v3631 = vpop.f32.mrf.mxu0
    %v3632 = vadd.f32 %v567, %v3631
    %v3633 = vpop.f32.mrf.mxu0
    %v3634 = vadd.f32 %v567, %v3633
    %3635 = vmatmul.bf16.gmra.mxu0 %v730
    %v3636 = vpop.f32.mrf.mxu0
    %v3637 = vadd.f32 %v567, %v3636
    %v3638 = vpop.f32.mrf.mxu0
    %v3639 = vadd.f32 %v567, %v3638
    %3640 = vmatmul.bf16.gmra.mxu0 %v736
    %v3641 = vpop.f32.mrf.mxu0
    %v3642 = vadd.f32 %v567, %v3641
    %v3643 = vpop.f32.mrf.mxu0
    %v3644 = vadd.f32 %v567, %v3643
    %3645 = vmatmul.bf16.gmra.mxu0 %v742
    %v3646 = vpop.f32.mrf.mxu0
    %v3647 = vadd.f32 %v567, %v3646
    %v3648 = vpop.f32.mrf.mxu0
    %v3649 = vadd.f32 %v567, %v3648
    %3650 = vmatmul.bf16.gmra.mxu0 %v748
    %v3651 = vpop.f32.mrf.mxu0
    %v3652 = vadd.f32 %v567, %v3651
    %v3653 = vpop.f32.mrf.mxu0
    %v3654 = vadd.f32 %v567, %v3653
    %3655 = vmatmul.bf16.gmra.mxu0 %v754
    %v3656 = vpop.f32.mrf.mxu0
    %v3657 = vadd.f32 %v567, %v3656
    %v3658 = vpop.f32.mrf.mxu0
    %v3659 = vadd.f32 %v567, %v3658
    %3660 = vmatmul.bf16.gmra.mxu0 %v760
    %v3661 = vpop.f32.mrf.mxu0
    %v3662 = vadd.f32 %v567, %v3661
    %v3663 = vpop.f32.mrf.mxu0
    %v3664 = vadd.f32 %v567, %v3663
    %3665 = vmatmul.bf16.gmra.mxu0 %v766
    %v3666 = vpop.f32.mrf.mxu0
    %v3667 = vadd.f32 %v567, %v3666
    %v3668 = vpop.f32.mrf.mxu0
    %v3669 = vadd.f32 %v567, %v3668
    %3670 = vdwg.mxu0
    %3671 = vmatpush.bf16.msra.mxu0 %v2095
    %3672 = vmatpush.bf16.msra.mxu0 %v2087
    %3673 = vmatpush.bf16.msra.mxu0 %v2079
    %3674 = vmatpush.bf16.msra.mxu0 %v2071
    %3675 = vmatpush.bf16.msra.mxu0 %v2063
    %3676 = vmatpush.bf16.msra.mxu0 %v2055
    %3677 = vmatpush.bf16.msra.mxu0 %v2047
    %3678 = vmatpush.bf16.msra.mxu0 %v2039
    %3679 = vmatmul.bf16.gmra.mxu0 %v725
    %v3680 = vpop.f32.mrf.mxu0
    %v3681 = vadd.f32 %v3632, %v3680
    %v3682 = vpop.f32.mrf.mxu0
    %v3683 = vadd.f32 %v3634, %v3682
    %3684 = vmatmul.bf16.gmra.mxu0 %v731
    %v3685 = vpop.f32.mrf.mxu0
    %v3686 = vadd.f32 %v3637, %v3685
    %v3687 = vpop.f32.mrf.mxu0
    %v3688 = vadd.f32 %v3639, %v3687
    %3689 = vmatmul.bf16.gmra.mxu0 %v737
    %v3690 = vpop.f32.mrf.mxu0
    %v3691 = vadd.f32 %v3642, %v3690
    %v3692 = vpop.f32.mrf.mxu0
    %v3693 = vadd.f32 %v3644, %v3692
    %3694 = vmatmul.bf16.gmra.mxu0 %v743
    %v3695 = vpop.f32.mrf.mxu0
    %v3696 = vadd.f32 %v3647, %v3695
    %v3697 = vpop.f32.mrf.mxu0
    %v3698 = vadd.f32 %v3649, %v3697
    %3699 = vmatmul.bf16.gmra.mxu0 %v749
    %v3700 = vpop.f32.mrf.mxu0
    %v3701 = vadd.f32 %v3652, %v3700
    %v3702 = vpop.f32.mrf.mxu0
    %v3703 = vadd.f32 %v3654, %v3702
    %3704 = vmatmul.bf16.gmra.mxu0 %v755
    %v3705 = vpop.f32.mrf.mxu0
    %v3706 = vadd.f32 %v3657, %v3705
    %v3707 = vpop.f32.mrf.mxu0
    %v3708 = vadd.f32 %v3659, %v3707
    %3709 = vmatmul.bf16.gmra.mxu0 %v761
    %v3710 = vpop.f32.mrf.mxu0
    %v3711 = vadd.f32 %v3662, %v3710
    %v3712 = vpop.f32.mrf.mxu0
    %v3713 = vadd.f32 %v3664, %v3712
    %3714 = vmatmul.bf16.gmra.mxu0 %v767
    %v3715 = vpop.f32.mrf.mxu0
    %v3716 = vadd.f32 %v3667, %v3715
    %v3717 = vpop.f32.mrf.mxu0
    %v3718 = vadd.f32 %v3669, %v3717
    %3719 = vdwg.mxu0
    %3720 = vmatpush.bf16.msra.mxu0 %v2159
    %3721 = vmatpush.bf16.msra.mxu0 %v2151
    %3722 = vmatpush.bf16.msra.mxu0 %v2143
    %3723 = vmatpush.bf16.msra.mxu0 %v2135
    %3724 = vmatpush.bf16.msra.mxu0 %v2127
    %3725 = vmatpush.bf16.msra.mxu0 %v2119
    %3726 = vmatpush.bf16.msra.mxu0 %v2111
    %3727 = vmatpush.bf16.msra.mxu0 %v2103
    %3728 = vmatmul.bf16.gmra.mxu0 %v726
    %v3729 = vpop.f32.mrf.mxu0
    %v3730 = vadd.f32 %v3681, %v3729
    %v3731 = vpop.f32.mrf.mxu0
    %v3732 = vadd.f32 %v3683, %v3731
    %3733 = vmatmul.bf16.gmra.mxu0 %v732
    %v3734 = vpop.f32.mrf.mxu0
    %v3735 = vadd.f32 %v3686, %v3734
    %v3736 = vpop.f32.mrf.mxu0
    %v3737 = vadd.f32 %v3688, %v3736
    %3738 = vmatmul.bf16.gmra.mxu0 %v738
    %v3739 = vpop.f32.mrf.mxu0
    %v3740 = vadd.f32 %v3691, %v3739
    %v3741 = vpop.f32.mrf.mxu0
    %v3742 = vadd.f32 %v3693, %v3741
    %3743 = vmatmul.bf16.gmra.mxu0 %v744
    %v3744 = vpop.f32.mrf.mxu0
    %v3745 = vadd.f32 %v3696, %v3744
    %v3746 = vpop.f32.mrf.mxu0
    %v3747 = vadd.f32 %v3698, %v3746
    %3748 = vmatmul.bf16.gmra.mxu0 %v750
    %v3749 = vpop.f32.mrf.mxu0
    %v3750 = vadd.f32 %v3701, %v3749
    %v3751 = vpop.f32.mrf.mxu0
    %v3752 = vadd.f32 %v3703, %v3751
    %3753 = vmatmul.bf16.gmra.mxu0 %v756
    %v3754 = vpop.f32.mrf.mxu0
    %v3755 = vadd.f32 %v3706, %v3754
    %v3756 = vpop.f32.mrf.mxu0
    %v3757 = vadd.f32 %v3708, %v3756
    %3758 = vmatmul.bf16.gmra.mxu0 %v762
    %v3759 = vpop.f32.mrf.mxu0
    %v3760 = vadd.f32 %v3711, %v3759
    %v3761 = vpop.f32.mrf.mxu0
    %v3762 = vadd.f32 %v3713, %v3761
    %3763 = vmatmul.bf16.gmra.mxu0 %v768
    %v3764 = vpop.f32.mrf.mxu0
    %v3765 = vadd.f32 %v3716, %v3764
    %v3766 = vpop.f32.mrf.mxu0
    %v3767 = vadd.f32 %v3718, %v3766
    %3768 = vdwg.mxu0
    %3769 = vmatpush.bf16.msra.mxu0 %v2223
    %3770 = vmatpush.bf16.msra.mxu0 %v2215
    %3771 = vmatpush.bf16.msra.mxu0 %v2207
    %3772 = vmatpush.bf16.msra.mxu0 %v2199
    %3773 = vmatpush.bf16.msra.mxu0 %v2191
    %3774 = vmatpush.bf16.msra.mxu0 %v2183
    %3775 = vmatpush.bf16.msra.mxu0 %v2175
    %3776 = vmatpush.bf16.msra.mxu0 %v2167
    %3777 = vmatmul.bf16.gmra.mxu0 %v727
    %v3778 = vpop.f32.mrf.mxu0
    %v3779 = vadd.f32 %v3730, %v3778
    %v3780 = vpop.f32.mrf.mxu0
    %v3781 = vadd.f32 %v3732, %v3780
    %3782 = vmatmul.bf16.gmra.mxu0 %v733
    %v3783 = vpop.f32.mrf.mxu0
    %v3784 = vadd.f32 %v3735, %v3783
    %v3785 = vpop.f32.mrf.mxu0
    %v3786 = vadd.f32 %v3737, %v3785
    %3787 = vmatmul.bf16.gmra.mxu0 %v739
    %v3788 = vpop.f32.mrf.mxu0
    %v3789 = vadd.f32 %v3740, %v3788
    %v3790 = vpop.f32.mrf.mxu0
    %v3791 = vadd.f32 %v3742, %v3790
    %3792 = vmatmul.bf16.gmra.mxu0 %v745
    %v3793 = vpop.f32.mrf.mxu0
    %v3794 = vadd.f32 %v3745, %v3793
    %v3795 = vpop.f32.mrf.mxu0
    %v3796 = vadd.f32 %v3747, %v3795
    %3797 = vmatmul.bf16.gmra.mxu0 %v751
    %v3798 = vpop.f32.mrf.mxu0
    %v3799 = vadd.f32 %v3750, %v3798
    %v3800 = vpop.f32.mrf.mxu0
    %v3801 = vadd.f32 %v3752, %v3800
    %3802 = vmatmul.bf16.gmra.mxu0 %v757
    %v3803 = vpop.f32.mrf.mxu0
    %v3804 = vadd.f32 %v3755, %v3803
    %v3805 = vpop.f32.mrf.mxu0
    %v3806 = vadd.f32 %v3757, %v3805
    %3807 = vmatmul.bf16.gmra.mxu0 %v763
    %v3808 = vpop.f32.mrf.mxu0
    %v3809 = vadd.f32 %v3760, %v3808
    %v3810 = vpop.f32.mrf.mxu0
    %v3811 = vadd.f32 %v3762, %v3810
    %3812 = vmatmul.bf16.gmra.mxu0 %v769
    %v3813 = vpop.f32.mrf.mxu0
    %v3814 = vadd.f32 %v3765, %v3813
    %v3815 = vpop.f32.mrf.mxu0
    %v3816 = vadd.f32 %v3767, %v3815
    %3817 = vdwg.mxu0
    %3818 = vmatpush.bf16.msra.mxu0 %v2287
    %3819 = vmatpush.bf16.msra.mxu0 %v2279
    %3820 = vmatpush.bf16.msra.mxu0 %v2271
    %3821 = vmatpush.bf16.msra.mxu0 %v2263
    %3822 = vmatpush.bf16.msra.mxu0 %v2255
    %3823 = vmatpush.bf16.msra.mxu0 %v2247
    %3824 = vmatpush.bf16.msra.mxu0 %v2239
    %3825 = vmatpush.bf16.msra.mxu0 %v2231
    %3826 = vmatmul.bf16.gmra.mxu0 %v728
    %v3827 = vpop.f32.mrf.mxu0
    %v3828 = vadd.f32 %v3779, %v3827
    %v3829 = vpop.f32.mrf.mxu0
    %v3830 = vadd.f32 %v3781, %v3829
    %3831 = vmatmul.bf16.gmra.mxu0 %v734
    %v3832 = vpop.f32.mrf.mxu0
    %v3833 = vadd.f32 %v3784, %v3832
    %v3834 = vpop.f32.mrf.mxu0
    %v3835 = vadd.f32 %v3786, %v3834
    %3836 = vmatmul.bf16.gmra.mxu0 %v740
    %v3837 = vpop.f32.mrf.mxu0
    %v3838 = vadd.f32 %v3789, %v3837
    %v3839 = vpop.f32.mrf.mxu0
    %v3840 = vadd.f32 %v3791, %v3839
    %3841 = vmatmul.bf16.gmra.mxu0 %v746
    %v3842 = vpop.f32.mrf.mxu0
    %v3843 = vadd.f32 %v3794, %v3842
    %v3844 = vpop.f32.mrf.mxu0
    %v3845 = vadd.f32 %v3796, %v3844
    %3846 = vmatmul.bf16.gmra.mxu0 %v752
    %v3847 = vpop.f32.mrf.mxu0
    %v3848 = vadd.f32 %v3799, %v3847
    %v3849 = vpop.f32.mrf.mxu0
    %v3850 = vadd.f32 %v3801, %v3849
    %3851 = vmatmul.bf16.gmra.mxu0 %v758
    %v3852 = vpop.f32.mrf.mxu0
    %v3853 = vadd.f32 %v3804, %v3852
    %v3854 = vpop.f32.mrf.mxu0
    %v3855 = vadd.f32 %v3806, %v3854
    %3856 = vmatmul.bf16.gmra.mxu0 %v764
    %v3857 = vpop.f32.mrf.mxu0
    %v3858 = vadd.f32 %v3809, %v3857
    %v3859 = vpop.f32.mrf.mxu0
    %v3860 = vadd.f32 %v3811, %v3859
    %3861 = vmatmul.bf16.gmra.mxu0 %v770
    %v3862 = vpop.f32.mrf.mxu0
    %v3863 = vadd.f32 %v3814, %v3862
    %v3864 = vpop.f32.mrf.mxu0
    %v3865 = vadd.f32 %v3816, %v3864
    %3866 = vdwg.mxu0
    %3867 = vmatpush.bf16.msra.mxu0 %v2351
    %3868 = vmatpush.bf16.msra.mxu0 %v2343
    %3869 = vmatpush.bf16.msra.mxu0 %v2335
    %3870 = vmatpush.bf16.msra.mxu0 %v2327
    %3871 = vmatpush.bf16.msra.mxu0 %v2319
    %3872 = vmatpush.bf16.msra.mxu0 %v2311
    %3873 = vmatpush.bf16.msra.mxu0 %v2303
    %3874 = vmatpush.bf16.msra.mxu0 %v2295
    %3875 = vmatmul.bf16.gmra.mxu0 %v729
    %v3876 = vpop.f32.mrf.mxu0
    %v3877 = vadd.f32 %v3828, %v3876
    %v3878 = vpop.f32.mrf.mxu0
    %v3879 = vadd.f32 %v3830, %v3878
    %3880 = vmatmul.bf16.gmra.mxu0 %v735
    %v3881 = vpop.f32.mrf.mxu0
    %v3882 = vadd.f32 %v3833, %v3881
    %v3883 = vpop.f32.mrf.mxu0
    %v3884 = vadd.f32 %v3835, %v3883
    %3885 = vmatmul.bf16.gmra.mxu0 %v741
    %v3886 = vpop.f32.mrf.mxu0
    %v3887 = vadd.f32 %v3838, %v3886
    %v3888 = vpop.f32.mrf.mxu0
    %v3889 = vadd.f32 %v3840, %v3888
    %3890 = vmatmul.bf16.gmra.mxu0 %v747
    %v3891 = vpop.f32.mrf.mxu0
    %v3892 = vadd.f32 %v3843, %v3891
    %v3893 = vpop.f32.mrf.mxu0
    %v3894 = vadd.f32 %v3845, %v3893
    %3895 = vmatmul.bf16.gmra.mxu0 %v753
    %v3896 = vpop.f32.mrf.mxu0
    %v3897 = vadd.f32 %v3848, %v3896
    %v3898 = vpop.f32.mrf.mxu0
    %v3899 = vadd.f32 %v3850, %v3898
    %3900 = vmatmul.bf16.gmra.mxu0 %v759
    %v3901 = vpop.f32.mrf.mxu0
    %v3902 = vadd.f32 %v3853, %v3901
    %v3903 = vpop.f32.mrf.mxu0
    %v3904 = vadd.f32 %v3855, %v3903
    %3905 = vmatmul.bf16.gmra.mxu0 %v765
    %v3906 = vpop.f32.mrf.mxu0
    %v3907 = vadd.f32 %v3858, %v3906
    %v3908 = vpop.f32.mrf.mxu0
    %v3909 = vadd.f32 %v3860, %v3908
    %3910 = vmatmul.bf16.gmra.mxu0 %v771
    %v3911 = vpop.f32.mrf.mxu0
    %v3912 = vadd.f32 %v3863, %v3911
    %v3913 = vpop.f32.mrf.mxu0
    %v3914 = vadd.f32 %v3865, %v3913
    %3915 = vdwg.mxu0
    %3916 = vmatpush.bf16.msra.mxu0 %v2032
    %3917 = vmatpush.bf16.msra.mxu0 %v2024
    %3918 = vmatpush.bf16.msra.mxu0 %v2016
    %3919 = vmatpush.bf16.msra.mxu0 %v2008
    %3920 = vmatpush.bf16.msra.mxu0 %v2000
    %3921 = vmatpush.bf16.msra.mxu0 %v1992
    %3922 = vmatpush.bf16.msra.mxu0 %v1984
    %3923 = vmatpush.bf16.msra.mxu0 %v1976
    %3924 = vmatmul.bf16.gmra.mxu0 %v724
    %v3925 = vpop.f32.mrf.mxu0
    %v3926 = vadd.f32 %v568, %v3925
    %v3927 = vpop.f32.mrf.mxu0
    %v3928 = vadd.f32 %v568, %v3927
    %3929 = vmatmul.bf16.gmra.mxu0 %v730
    %v3930 = vpop.f32.mrf.mxu0
    %v3931 = vadd.f32 %v568, %v3930
    %v3932 = vpop.f32.mrf.mxu0
    %v3933 = vadd.f32 %v568, %v3932
    %3934 = vmatmul.bf16.gmra.mxu0 %v736
    %v3935 = vpop.f32.mrf.mxu0
    %v3936 = vadd.f32 %v568, %v3935
    %v3937 = vpop.f32.mrf.mxu0
    %v3938 = vadd.f32 %v568, %v3937
    %3939 = vmatmul.bf16.gmra.mxu0 %v742
    %v3940 = vpop.f32.mrf.mxu0
    %v3941 = vadd.f32 %v568, %v3940
    %v3942 = vpop.f32.mrf.mxu0
    %v3943 = vadd.f32 %v568, %v3942
    %3944 = vmatmul.bf16.gmra.mxu0 %v748
    %v3945 = vpop.f32.mrf.mxu0
    %v3946 = vadd.f32 %v568, %v3945
    %v3947 = vpop.f32.mrf.mxu0
    %v3948 = vadd.f32 %v568, %v3947
    %3949 = vmatmul.bf16.gmra.mxu0 %v754
    %v3950 = vpop.f32.mrf.mxu0
    %v3951 = vadd.f32 %v568, %v3950
    %v3952 = vpop.f32.mrf.mxu0
    %v3953 = vadd.f32 %v568, %v3952
    %3954 = vmatmul.bf16.gmra.mxu0 %v760
    %v3955 = vpop.f32.mrf.mxu0
    %v3956 = vadd.f32 %v568, %v3955
    %v3957 = vpop.f32.mrf.mxu0
    %v3958 = vadd.f32 %v568, %v3957
    %3959 = vmatmul.bf16.gmra.mxu0 %v766
    %v3960 = vpop.f32.mrf.mxu0
    %v3961 = vadd.f32 %v568, %v3960
    %v3962 = vpop.f32.mrf.mxu0
    %v3963 = vadd.f32 %v568, %v3962
    %3964 = vdwg.mxu0
    %3965 = vmatpush.bf16.msra.mxu0 %v2096
    %3966 = vmatpush.bf16.msra.mxu0 %v2088
    %3967 = vmatpush.bf16.msra.mxu0 %v2080
    %3968 = vmatpush.bf16.msra.mxu0 %v2072
    %3969 = vmatpush.bf16.msra.mxu0 %v2064
    %3970 = vmatpush.bf16.msra.mxu0 %v2056
    %3971 = vmatpush.bf16.msra.mxu0 %v2048
    %3972 = vmatpush.bf16.msra.mxu0 %v2040
    %3973 = vmatmul.bf16.gmra.mxu0 %v725
    %v3974 = vpop.f32.mrf.mxu0
    %v3975 = vadd.f32 %v3926, %v3974
    %v3976 = vpop.f32.mrf.mxu0
    %v3977 = vadd.f32 %v3928, %v3976
    %3978 = vmatmul.bf16.gmra.mxu0 %v731
    %v3979 = vpop.f32.mrf.mxu0
    %v3980 = vadd.f32 %v3931, %v3979
    %v3981 = vpop.f32.mrf.mxu0
    %v3982 = vadd.f32 %v3933, %v3981
    %3983 = vmatmul.bf16.gmra.mxu0 %v737
    %v3984 = vpop.f32.mrf.mxu0
    %v3985 = vadd.f32 %v3936, %v3984
    %v3986 = vpop.f32.mrf.mxu0
    %v3987 = vadd.f32 %v3938, %v3986
    %3988 = vmatmul.bf16.gmra.mxu0 %v743
    %v3989 = vpop.f32.mrf.mxu0
    %v3990 = vadd.f32 %v3941, %v3989
    %v3991 = vpop.f32.mrf.mxu0
    %v3992 = vadd.f32 %v3943, %v3991
    %3993 = vmatmul.bf16.gmra.mxu0 %v749
    %v3994 = vpop.f32.mrf.mxu0
    %v3995 = vadd.f32 %v3946, %v3994
    %v3996 = vpop.f32.mrf.mxu0
    %v3997 = vadd.f32 %v3948, %v3996
    %3998 = vmatmul.bf16.gmra.mxu0 %v755
    %v3999 = vpop.f32.mrf.mxu0
    %v4000 = vadd.f32 %v3951, %v3999
    %v4001 = vpop.f32.mrf.mxu0
    %v4002 = vadd.f32 %v3953, %v4001
    %4003 = vmatmul.bf16.gmra.mxu0 %v761
    %v4004 = vpop.f32.mrf.mxu0
    %v4005 = vadd.f32 %v3956, %v4004
    %v4006 = vpop.f32.mrf.mxu0
    %v4007 = vadd.f32 %v3958, %v4006
    %4008 = vmatmul.bf16.gmra.mxu0 %v767
    %v4009 = vpop.f32.mrf.mxu0
    %v4010 = vadd.f32 %v3961, %v4009
    %v4011 = vpop.f32.mrf.mxu0
    %v4012 = vadd.f32 %v3963, %v4011
    %4013 = vdwg.mxu0
    %4014 = vmatpush.bf16.msra.mxu0 %v2160
    %4015 = vmatpush.bf16.msra.mxu0 %v2152
    %4016 = vmatpush.bf16.msra.mxu0 %v2144
    %4017 = vmatpush.bf16.msra.mxu0 %v2136
    %4018 = vmatpush.bf16.msra.mxu0 %v2128
    %4019 = vmatpush.bf16.msra.mxu0 %v2120
    %4020 = vmatpush.bf16.msra.mxu0 %v2112
    %4021 = vmatpush.bf16.msra.mxu0 %v2104
    %4022 = vmatmul.bf16.gmra.mxu0 %v726
    %v4023 = vpop.f32.mrf.mxu0
    %v4024 = vadd.f32 %v3975, %v4023
    %v4025 = vpop.f32.mrf.mxu0
    %v4026 = vadd.f32 %v3977, %v4025
    %4027 = vmatmul.bf16.gmra.mxu0 %v732
    %v4028 = vpop.f32.mrf.mxu0
    %v4029 = vadd.f32 %v3980, %v4028
    %v4030 = vpop.f32.mrf.mxu0
    %v4031 = vadd.f32 %v3982, %v4030
    %4032 = vmatmul.bf16.gmra.mxu0 %v738
    %v4033 = vpop.f32.mrf.mxu0
    %v4034 = vadd.f32 %v3985, %v4033
    %v4035 = vpop.f32.mrf.mxu0
    %v4036 = vadd.f32 %v3987, %v4035
    %4037 = vmatmul.bf16.gmra.mxu0 %v744
    %v4038 = vpop.f32.mrf.mxu0
    %v4039 = vadd.f32 %v3990, %v4038
    %v4040 = vpop.f32.mrf.mxu0
    %v4041 = vadd.f32 %v3992, %v4040
    %4042 = vmatmul.bf16.gmra.mxu0 %v750
    %v4043 = vpop.f32.mrf.mxu0
    %v4044 = vadd.f32 %v3995, %v4043
    %v4045 = vpop.f32.mrf.mxu0
    %v4046 = vadd.f32 %v3997, %v4045
    %4047 = vmatmul.bf16.gmra.mxu0 %v756
    %v4048 = vpop.f32.mrf.mxu0
    %v4049 = vadd.f32 %v4000, %v4048
    %v4050 = vpop.f32.mrf.mxu0
    %v4051 = vadd.f32 %v4002, %v4050
    %4052 = vmatmul.bf16.gmra.mxu0 %v762
    %v4053 = vpop.f32.mrf.mxu0
    %v4054 = vadd.f32 %v4005, %v4053
    %v4055 = vpop.f32.mrf.mxu0
    %v4056 = vadd.f32 %v4007, %v4055
    %4057 = vmatmul.bf16.gmra.mxu0 %v768
    %v4058 = vpop.f32.mrf.mxu0
    %v4059 = vadd.f32 %v4010, %v4058
    %v4060 = vpop.f32.mrf.mxu0
    %v4061 = vadd.f32 %v4012, %v4060
    %4062 = vdwg.mxu0
    %4063 = vmatpush.bf16.msra.mxu0 %v2224
    %4064 = vmatpush.bf16.msra.mxu0 %v2216
    %4065 = vmatpush.bf16.msra.mxu0 %v2208
    %4066 = vmatpush.bf16.msra.mxu0 %v2200
    %4067 = vmatpush.bf16.msra.mxu0 %v2192
    %4068 = vmatpush.bf16.msra.mxu0 %v2184
    %4069 = vmatpush.bf16.msra.mxu0 %v2176
    %4070 = vmatpush.bf16.msra.mxu0 %v2168
    %4071 = vmatmul.bf16.gmra.mxu0 %v727
    %v4072 = vpop.f32.mrf.mxu0
    %v4073 = vadd.f32 %v4024, %v4072
    %v4074 = vpop.f32.mrf.mxu0
    %v4075 = vadd.f32 %v4026, %v4074
    %4076 = vmatmul.bf16.gmra.mxu0 %v733
    %v4077 = vpop.f32.mrf.mxu0
    %v4078 = vadd.f32 %v4029, %v4077
    %v4079 = vpop.f32.mrf.mxu0
    %v4080 = vadd.f32 %v4031, %v4079
    %4081 = vmatmul.bf16.gmra.mxu0 %v739
    %v4082 = vpop.f32.mrf.mxu0
    %v4083 = vadd.f32 %v4034, %v4082
    %v4084 = vpop.f32.mrf.mxu0
    %v4085 = vadd.f32 %v4036, %v4084
    %4086 = vmatmul.bf16.gmra.mxu0 %v745
    %v4087 = vpop.f32.mrf.mxu0
    %v4088 = vadd.f32 %v4039, %v4087
    %v4089 = vpop.f32.mrf.mxu0
    %v4090 = vadd.f32 %v4041, %v4089
    %4091 = vmatmul.bf16.gmra.mxu0 %v751
    %v4092 = vpop.f32.mrf.mxu0
    %v4093 = vadd.f32 %v4044, %v4092
    %v4094 = vpop.f32.mrf.mxu0
    %v4095 = vadd.f32 %v4046, %v4094
    %4096 = vmatmul.bf16.gmra.mxu0 %v757
    %v4097 = vpop.f32.mrf.mxu0
    %v4098 = vadd.f32 %v4049, %v4097
    %v4099 = vpop.f32.mrf.mxu0
    %v4100 = vadd.f32 %v4051, %v4099
    %4101 = vmatmul.bf16.gmra.mxu0 %v763
    %v4102 = vpop.f32.mrf.mxu0
    %v4103 = vadd.f32 %v4054, %v4102
    %v4104 = vpop.f32.mrf.mxu0
    %v4105 = vadd.f32 %v4056, %v4104
    %4106 = vmatmul.bf16.gmra.mxu0 %v769
    %v4107 = vpop.f32.mrf.mxu0
    %v4108 = vadd.f32 %v4059, %v4107
    %v4109 = vpop.f32.mrf.mxu0
    %v4110 = vadd.f32 %v4061, %v4109
    %4111 = vdwg.mxu0
    %4112 = vmatpush.bf16.msra.mxu0 %v2288
    %4113 = vmatpush.bf16.msra.mxu0 %v2280
    %4114 = vmatpush.bf16.msra.mxu0 %v2272
    %4115 = vmatpush.bf16.msra.mxu0 %v2264
    %4116 = vmatpush.bf16.msra.mxu0 %v2256
    %4117 = vmatpush.bf16.msra.mxu0 %v2248
    %4118 = vmatpush.bf16.msra.mxu0 %v2240
    %4119 = vmatpush.bf16.msra.mxu0 %v2232
    %4120 = vmatmul.bf16.gmra.mxu0 %v728
    %v4121 = vpop.f32.mrf.mxu0
    %v4122 = vadd.f32 %v4073, %v4121
    %v4123 = vpop.f32.mrf.mxu0
    %v4124 = vadd.f32 %v4075, %v4123
    %4125 = vmatmul.bf16.gmra.mxu0 %v734
    %v4126 = vpop.f32.mrf.mxu0
    %v4127 = vadd.f32 %v4078, %v4126
    %v4128 = vpop.f32.mrf.mxu0
    %v4129 = vadd.f32 %v4080, %v4128
    %4130 = vmatmul.bf16.gmra.mxu0 %v740
    %v4131 = vpop.f32.mrf.mxu0
    %v4132 = vadd.f32 %v4083, %v4131
    %v4133 = vpop.f32.mrf.mxu0
    %v4134 = vadd.f32 %v4085, %v4133
    %4135 = vmatmul.bf16.gmra.mxu0 %v746
    %v4136 = vpop.f32.mrf.mxu0
    %v4137 = vadd.f32 %v4088, %v4136
    %v4138 = vpop.f32.mrf.mxu0
    %v4139 = vadd.f32 %v4090, %v4138
    %4140 = vmatmul.bf16.gmra.mxu0 %v752
    %v4141 = vpop.f32.mrf.mxu0
    %v4142 = vadd.f32 %v4093, %v4141
    %v4143 = vpop.f32.mrf.mxu0
    %v4144 = vadd.f32 %v4095, %v4143
    %4145 = vmatmul.bf16.gmra.mxu0 %v758
    %v4146 = vpop.f32.mrf.mxu0
    %v4147 = vadd.f32 %v4098, %v4146
    %v4148 = vpop.f32.mrf.mxu0
    %v4149 = vadd.f32 %v4100, %v4148
    %4150 = vmatmul.bf16.gmra.mxu0 %v764
    %v4151 = vpop.f32.mrf.mxu0
    %v4152 = vadd.f32 %v4103, %v4151
    %v4153 = vpop.f32.mrf.mxu0
    %v4154 = vadd.f32 %v4105, %v4153
    %4155 = vmatmul.bf16.gmra.mxu0 %v770
    %v4156 = vpop.f32.mrf.mxu0
    %v4157 = vadd.f32 %v4108, %v4156
    %v4158 = vpop.f32.mrf.mxu0
    %v4159 = vadd.f32 %v4110, %v4158
    %4160 = vdwg.mxu0
    %4161 = vmatpush.bf16.msra.mxu0 %v2352
    %4162 = vmatpush.bf16.msra.mxu0 %v2344
    %4163 = vmatpush.bf16.msra.mxu0 %v2336
    %4164 = vmatpush.bf16.msra.mxu0 %v2328
    %4165 = vmatpush.bf16.msra.mxu0 %v2320
    %4166 = vmatpush.bf16.msra.mxu0 %v2312
    %4167 = vmatpush.bf16.msra.mxu0 %v2304
    %4168 = vmatpush.bf16.msra.mxu0 %v2296
    %4169 = vmatmul.bf16.gmra.mxu0 %v729
    %v4170 = vpop.f32.mrf.mxu0
    %v4171 = vadd.f32 %v4122, %v4170
    %v4172 = vpop.f32.mrf.mxu0
    %v4173 = vadd.f32 %v4124, %v4172
    %4174 = vmatmul.bf16.gmra.mxu0 %v735
    %v4175 = vpop.f32.mrf.mxu0
    %v4176 = vadd.f32 %v4127, %v4175
    %v4177 = vpop.f32.mrf.mxu0
    %v4178 = vadd.f32 %v4129, %v4177
    %4179 = vmatmul.bf16.gmra.mxu0 %v741
    %v4180 = vpop.f32.mrf.mxu0
    %v4181 = vadd.f32 %v4132, %v4180
    %v4182 = vpop.f32.mrf.mxu0
    %v4183 = vadd.f32 %v4134, %v4182
    %4184 = vmatmul.bf16.gmra.mxu0 %v747
    %v4185 = vpop.f32.mrf.mxu0
    %v4186 = vadd.f32 %v4137, %v4185
    %v4187 = vpop.f32.mrf.mxu0
    %v4188 = vadd.f32 %v4139, %v4187
    %4189 = vmatmul.bf16.gmra.mxu0 %v753
    %v4190 = vpop.f32.mrf.mxu0
    %v4191 = vadd.f32 %v4142, %v4190
    %v4192 = vpop.f32.mrf.mxu0
    %v4193 = vadd.f32 %v4144, %v4192
    %4194 = vmatmul.bf16.gmra.mxu0 %v759
    %v4195 = vpop.f32.mrf.mxu0
    %v4196 = vadd.f32 %v4147, %v4195
    %v4197 = vpop.f32.mrf.mxu0
    %v4198 = vadd.f32 %v4149, %v4197
    %4199 = vmatmul.bf16.gmra.mxu0 %v765
    %v4200 = vpop.f32.mrf.mxu0
    %v4201 = vadd.f32 %v4152, %v4200
    %v4202 = vpop.f32.mrf.mxu0
    %v4203 = vadd.f32 %v4154, %v4202
    %4204 = vmatmul.bf16.gmra.mxu0 %v771
    %v4205 = vpop.f32.mrf.mxu0
    %v4206 = vadd.f32 %v4157, %v4205
    %v4207 = vpop.f32.mrf.mxu0
    %v4208 = vadd.f32 %v4159, %v4207
    %4209 = vdwg.mxu0
    %4210 = vmatpush.bf16.msra.mxu0 %v2033
    %4211 = vmatpush.bf16.msra.mxu0 %v2025
    %4212 = vmatpush.bf16.msra.mxu0 %v2017
    %4213 = vmatpush.bf16.msra.mxu0 %v2009
    %4214 = vmatpush.bf16.msra.mxu0 %v2001
    %4215 = vmatpush.bf16.msra.mxu0 %v1993
    %4216 = vmatpush.bf16.msra.mxu0 %v1985
    %4217 = vmatpush.bf16.msra.mxu0 %v1977
    %4218 = vmatmul.bf16.gmra.mxu0 %v724
    %v4219 = vpop.f32.mrf.mxu0
    %v4220 = vadd.f32 %v569, %v4219
    %v4221 = vpop.f32.mrf.mxu0
    %v4222 = vadd.f32 %v569, %v4221
    %4223 = vmatmul.bf16.gmra.mxu0 %v730
    %v4224 = vpop.f32.mrf.mxu0
    %v4225 = vadd.f32 %v569, %v4224
    %v4226 = vpop.f32.mrf.mxu0
    %v4227 = vadd.f32 %v569, %v4226
    %4228 = vmatmul.bf16.gmra.mxu0 %v736
    %v4229 = vpop.f32.mrf.mxu0
    %v4230 = vadd.f32 %v569, %v4229
    %v4231 = vpop.f32.mrf.mxu0
    %v4232 = vadd.f32 %v569, %v4231
    %4233 = vmatmul.bf16.gmra.mxu0 %v742
    %v4234 = vpop.f32.mrf.mxu0
    %v4235 = vadd.f32 %v569, %v4234
    %v4236 = vpop.f32.mrf.mxu0
    %v4237 = vadd.f32 %v569, %v4236
    %4238 = vmatmul.bf16.gmra.mxu0 %v748
    %v4239 = vpop.f32.mrf.mxu0
    %v4240 = vadd.f32 %v569, %v4239
    %v4241 = vpop.f32.mrf.mxu0
    %v4242 = vadd.f32 %v569, %v4241
    %4243 = vmatmul.bf16.gmra.mxu0 %v754
    %v4244 = vpop.f32.mrf.mxu0
    %v4245 = vadd.f32 %v569, %v4244
    %v4246 = vpop.f32.mrf.mxu0
    %v4247 = vadd.f32 %v569, %v4246
    %4248 = vmatmul.bf16.gmra.mxu0 %v760
    %v4249 = vpop.f32.mrf.mxu0
    %v4250 = vadd.f32 %v569, %v4249
    %v4251 = vpop.f32.mrf.mxu0
    %v4252 = vadd.f32 %v569, %v4251
    %4253 = vmatmul.bf16.gmra.mxu0 %v766
    %v4254 = vpop.f32.mrf.mxu0
    %v4255 = vadd.f32 %v569, %v4254
    %v4256 = vpop.f32.mrf.mxu0
    %v4257 = vadd.f32 %v569, %v4256
    %4258 = vdwg.mxu0
    %4259 = vmatpush.bf16.msra.mxu0 %v2097
    %4260 = vmatpush.bf16.msra.mxu0 %v2089
    %4261 = vmatpush.bf16.msra.mxu0 %v2081
    %4262 = vmatpush.bf16.msra.mxu0 %v2073
    %4263 = vmatpush.bf16.msra.mxu0 %v2065
    %4264 = vmatpush.bf16.msra.mxu0 %v2057
    %4265 = vmatpush.bf16.msra.mxu0 %v2049
    %4266 = vmatpush.bf16.msra.mxu0 %v2041
    %4267 = vmatmul.bf16.gmra.mxu0 %v725
    %v4268 = vpop.f32.mrf.mxu0
    %v4269 = vadd.f32 %v4220, %v4268
    %v4270 = vpop.f32.mrf.mxu0
    %v4271 = vadd.f32 %v4222, %v4270
    %4272 = vmatmul.bf16.gmra.mxu0 %v731
    %v4273 = vpop.f32.mrf.mxu0
    %v4274 = vadd.f32 %v4225, %v4273
    %v4275 = vpop.f32.mrf.mxu0
    %v4276 = vadd.f32 %v4227, %v4275
    %4277 = vmatmul.bf16.gmra.mxu0 %v737
    %v4278 = vpop.f32.mrf.mxu0
    %v4279 = vadd.f32 %v4230, %v4278
    %v4280 = vpop.f32.mrf.mxu0
    %v4281 = vadd.f32 %v4232, %v4280
    %4282 = vmatmul.bf16.gmra.mxu0 %v743
    %v4283 = vpop.f32.mrf.mxu0
    %v4284 = vadd.f32 %v4235, %v4283
    %v4285 = vpop.f32.mrf.mxu0
    %v4286 = vadd.f32 %v4237, %v4285
    %4287 = vmatmul.bf16.gmra.mxu0 %v749
    %v4288 = vpop.f32.mrf.mxu0
    %v4289 = vadd.f32 %v4240, %v4288
    %v4290 = vpop.f32.mrf.mxu0
    %v4291 = vadd.f32 %v4242, %v4290
    %4292 = vmatmul.bf16.gmra.mxu0 %v755
    %v4293 = vpop.f32.mrf.mxu0
    %v4294 = vadd.f32 %v4245, %v4293
    %v4295 = vpop.f32.mrf.mxu0
    %v4296 = vadd.f32 %v4247, %v4295
    %4297 = vmatmul.bf16.gmra.mxu0 %v761
    %v4298 = vpop.f32.mrf.mxu0
    %v4299 = vadd.f32 %v4250, %v4298
    %v4300 = vpop.f32.mrf.mxu0
    %v4301 = vadd.f32 %v4252, %v4300
    %4302 = vmatmul.bf16.gmra.mxu0 %v767
    %v4303 = vpop.f32.mrf.mxu0
    %v4304 = vadd.f32 %v4255, %v4303
    %v4305 = vpop.f32.mrf.mxu0
    %v4306 = vadd.f32 %v4257, %v4305
    %4307 = vdwg.mxu0
    %4308 = vmatpush.bf16.msra.mxu0 %v2161
    %4309 = vmatpush.bf16.msra.mxu0 %v2153
    %4310 = vmatpush.bf16.msra.mxu0 %v2145
    %4311 = vmatpush.bf16.msra.mxu0 %v2137
    %4312 = vmatpush.bf16.msra.mxu0 %v2129
    %4313 = vmatpush.bf16.msra.mxu0 %v2121
    %4314 = vmatpush.bf16.msra.mxu0 %v2113
    %4315 = vmatpush.bf16.msra.mxu0 %v2105
    %4316 = vmatmul.bf16.gmra.mxu0 %v726
    %v4317 = vpop.f32.mrf.mxu0
    %v4318 = vadd.f32 %v4269, %v4317
    %v4319 = vpop.f32.mrf.mxu0
    %v4320 = vadd.f32 %v4271, %v4319
    %4321 = vmatmul.bf16.gmra.mxu0 %v732
    %v4322 = vpop.f32.mrf.mxu0
    %v4323 = vadd.f32 %v4274, %v4322
    %v4324 = vpop.f32.mrf.mxu0
    %v4325 = vadd.f32 %v4276, %v4324
    %4326 = vmatmul.bf16.gmra.mxu0 %v738
    %v4327 = vpop.f32.mrf.mxu0
    %v4328 = vadd.f32 %v4279, %v4327
    %v4329 = vpop.f32.mrf.mxu0
    %v4330 = vadd.f32 %v4281, %v4329
    %4331 = vmatmul.bf16.gmra.mxu0 %v744
    %v4332 = vpop.f32.mrf.mxu0
    %v4333 = vadd.f32 %v4284, %v4332
    %v4334 = vpop.f32.mrf.mxu0
    %v4335 = vadd.f32 %v4286, %v4334
    %4336 = vmatmul.bf16.gmra.mxu0 %v750
    %v4337 = vpop.f32.mrf.mxu0
    %v4338 = vadd.f32 %v4289, %v4337
    %v4339 = vpop.f32.mrf.mxu0
    %v4340 = vadd.f32 %v4291, %v4339
    %4341 = vmatmul.bf16.gmra.mxu0 %v756
    %v4342 = vpop.f32.mrf.mxu0
    %v4343 = vadd.f32 %v4294, %v4342
    %v4344 = vpop.f32.mrf.mxu0
    %v4345 = vadd.f32 %v4296, %v4344
    %4346 = vmatmul.bf16.gmra.mxu0 %v762
    %v4347 = vpop.f32.mrf.mxu0
    %v4348 = vadd.f32 %v4299, %v4347
    %v4349 = vpop.f32.mrf.mxu0
    %v4350 = vadd.f32 %v4301, %v4349
    %4351 = vmatmul.bf16.gmra.mxu0 %v768
    %v4352 = vpop.f32.mrf.mxu0
    %v4353 = vadd.f32 %v4304, %v4352
    %v4354 = vpop.f32.mrf.mxu0
    %v4355 = vadd.f32 %v4306, %v4354
    %4356 = vdwg.mxu0
    %4357 = vmatpush.bf16.msra.mxu0 %v2225
    %4358 = vmatpush.bf16.msra.mxu0 %v2217
    %4359 = vmatpush.bf16.msra.mxu0 %v2209
    %4360 = vmatpush.bf16.msra.mxu0 %v2201
    %4361 = vmatpush.bf16.msra.mxu0 %v2193
    %4362 = vmatpush.bf16.msra.mxu0 %v2185
    %4363 = vmatpush.bf16.msra.mxu0 %v2177
    %4364 = vmatpush.bf16.msra.mxu0 %v2169
    %4365 = vmatmul.bf16.gmra.mxu0 %v727
    %v4366 = vpop.f32.mrf.mxu0
    %v4367 = vadd.f32 %v4318, %v4366
    %v4368 = vpop.f32.mrf.mxu0
    %v4369 = vadd.f32 %v4320, %v4368
    %4370 = vmatmul.bf16.gmra.mxu0 %v733
    %v4371 = vpop.f32.mrf.mxu0
    %v4372 = vadd.f32 %v4323, %v4371
    %v4373 = vpop.f32.mrf.mxu0
    %v4374 = vadd.f32 %v4325, %v4373
    %4375 = vmatmul.bf16.gmra.mxu0 %v739
    %v4376 = vpop.f32.mrf.mxu0
    %v4377 = vadd.f32 %v4328, %v4376
    %v4378 = vpop.f32.mrf.mxu0
    %v4379 = vadd.f32 %v4330, %v4378
    %4380 = vmatmul.bf16.gmra.mxu0 %v745
    %v4381 = vpop.f32.mrf.mxu0
    %v4382 = vadd.f32 %v4333, %v4381
    %v4383 = vpop.f32.mrf.mxu0
    %v4384 = vadd.f32 %v4335, %v4383
    %4385 = vmatmul.bf16.gmra.mxu0 %v751
    %v4386 = vpop.f32.mrf.mxu0
    %v4387 = vadd.f32 %v4338, %v4386
    %v4388 = vpop.f32.mrf.mxu0
    %v4389 = vadd.f32 %v4340, %v4388
    %4390 = vmatmul.bf16.gmra.mxu0 %v757
    %v4391 = vpop.f32.mrf.mxu0
    %v4392 = vadd.f32 %v4343, %v4391
    %v4393 = vpop.f32.mrf.mxu0
    %v4394 = vadd.f32 %v4345, %v4393
    %4395 = vmatmul.bf16.gmra.mxu0 %v763
    %v4396 = vpop.f32.mrf.mxu0
    %v4397 = vadd.f32 %v4348, %v4396
    %v4398 = vpop.f32.mrf.mxu0
    %v4399 = vadd.f32 %v4350, %v4398
    %4400 = vmatmul.bf16.gmra.mxu0 %v769
    %v4401 = vpop.f32.mrf.mxu0
    %v4402 = vadd.f32 %v4353, %v4401
    %v4403 = vpop.f32.mrf.mxu0
    %v4404 = vadd.f32 %v4355, %v4403
    %4405 = vdwg.mxu0
    %4406 = vmatpush.bf16.msra.mxu0 %v2289
    %4407 = vmatpush.bf16.msra.mxu0 %v2281
    %4408 = vmatpush.bf16.msra.mxu0 %v2273
    %4409 = vmatpush.bf16.msra.mxu0 %v2265
    %4410 = vmatpush.bf16.msra.mxu0 %v2257
    %4411 = vmatpush.bf16.msra.mxu0 %v2249
    %4412 = vmatpush.bf16.msra.mxu0 %v2241
    %4413 = vmatpush.bf16.msra.mxu0 %v2233
    %4414 = vmatmul.bf16.gmra.mxu0 %v728
    %v4415 = vpop.f32.mrf.mxu0
    %v4416 = vadd.f32 %v4367, %v4415
    %v4417 = vpop.f32.mrf.mxu0
    %v4418 = vadd.f32 %v4369, %v4417
    %4419 = vmatmul.bf16.gmra.mxu0 %v734
    %v4420 = vpop.f32.mrf.mxu0
    %v4421 = vadd.f32 %v4372, %v4420
    %v4422 = vpop.f32.mrf.mxu0
    %v4423 = vadd.f32 %v4374, %v4422
    %4424 = vmatmul.bf16.gmra.mxu0 %v740
    %v4425 = vpop.f32.mrf.mxu0
    %v4426 = vadd.f32 %v4377, %v4425
    %v4427 = vpop.f32.mrf.mxu0
    %v4428 = vadd.f32 %v4379, %v4427
    %4429 = vmatmul.bf16.gmra.mxu0 %v746
    %v4430 = vpop.f32.mrf.mxu0
    %v4431 = vadd.f32 %v4382, %v4430
    %v4432 = vpop.f32.mrf.mxu0
    %v4433 = vadd.f32 %v4384, %v4432
    %4434 = vmatmul.bf16.gmra.mxu0 %v752
    %v4435 = vpop.f32.mrf.mxu0
    %v4436 = vadd.f32 %v4387, %v4435
    %v4437 = vpop.f32.mrf.mxu0
    %v4438 = vadd.f32 %v4389, %v4437
    %4439 = vmatmul.bf16.gmra.mxu0 %v758
    %v4440 = vpop.f32.mrf.mxu0
    %v4441 = vadd.f32 %v4392, %v4440
    %v4442 = vpop.f32.mrf.mxu0
    %v4443 = vadd.f32 %v4394, %v4442
    %4444 = vmatmul.bf16.gmra.mxu0 %v764
    %v4445 = vpop.f32.mrf.mxu0
    %v4446 = vadd.f32 %v4397, %v4445
    %v4447 = vpop.f32.mrf.mxu0
    %v4448 = vadd.f32 %v4399, %v4447
    %4449 = vmatmul.bf16.gmra.mxu0 %v770
    %v4450 = vpop.f32.mrf.mxu0
    %v4451 = vadd.f32 %v4402, %v4450
    %v4452 = vpop.f32.mrf.mxu0
    %v4453 = vadd.f32 %v4404, %v4452
    %4454 = vdwg.mxu0
    %4455 = vmatpush.bf16.msra.mxu0 %v2353
    %4456 = vmatpush.bf16.msra.mxu0 %v2345
    %4457 = vmatpush.bf16.msra.mxu0 %v2337
    %4458 = vmatpush.bf16.msra.mxu0 %v2329
    %4459 = vmatpush.bf16.msra.mxu0 %v2321
    %4460 = vmatpush.bf16.msra.mxu0 %v2313
    %4461 = vmatpush.bf16.msra.mxu0 %v2305
    %4462 = vmatpush.bf16.msra.mxu0 %v2297
    %4463 = vmatmul.bf16.gmra.mxu0 %v729
    %v4464 = vpop.f32.mrf.mxu0
    %v4465 = vadd.f32 %v4416, %v4464
    %v4466 = vpop.f32.mrf.mxu0
    %v4467 = vadd.f32 %v4418, %v4466
    %4468 = vmatmul.bf16.gmra.mxu0 %v735
    %v4469 = vpop.f32.mrf.mxu0
    %v4470 = vadd.f32 %v4421, %v4469
    %v4471 = vpop.f32.mrf.mxu0
    %v4472 = vadd.f32 %v4423, %v4471
    %4473 = vmatmul.bf16.gmra.mxu0 %v741
    %v4474 = vpop.f32.mrf.mxu0
    %v4475 = vadd.f32 %v4426, %v4474
    %v4476 = vpop.f32.mrf.mxu0
    %v4477 = vadd.f32 %v4428, %v4476
    %4478 = vmatmul.bf16.gmra.mxu0 %v747
    %v4479 = vpop.f32.mrf.mxu0
    %v4480 = vadd.f32 %v4431, %v4479
    %v4481 = vpop.f32.mrf.mxu0
    %v4482 = vadd.f32 %v4433, %v4481
    %4483 = vmatmul.bf16.gmra.mxu0 %v753
    %v4484 = vpop.f32.mrf.mxu0
    %v4485 = vadd.f32 %v4436, %v4484
    %v4486 = vpop.f32.mrf.mxu0
    %v4487 = vadd.f32 %v4438, %v4486
    %4488 = vmatmul.bf16.gmra.mxu0 %v759
    %v4489 = vpop.f32.mrf.mxu0
    %v4490 = vadd.f32 %v4441, %v4489
    %v4491 = vpop.f32.mrf.mxu0
    %v4492 = vadd.f32 %v4443, %v4491
    %4493 = vmatmul.bf16.gmra.mxu0 %v765
    %v4494 = vpop.f32.mrf.mxu0
    %v4495 = vadd.f32 %v4446, %v4494
    %v4496 = vpop.f32.mrf.mxu0
    %v4497 = vadd.f32 %v4448, %v4496
    %4498 = vmatmul.bf16.gmra.mxu0 %v771
    %v4499 = vpop.f32.mrf.mxu0
    %v4500 = vadd.f32 %v4451, %v4499
    %v4501 = vpop.f32.mrf.mxu0
    %v4502 = vadd.f32 %v4453, %v4501
    %4503 = vdwg.mxu0
    %4504 = vmatpush.bf16.msra.mxu0 %v2034
    %4505 = vmatpush.bf16.msra.mxu0 %v2026
    %4506 = vmatpush.bf16.msra.mxu0 %v2018
    %4507 = vmatpush.bf16.msra.mxu0 %v2010
    %4508 = vmatpush.bf16.msra.mxu0 %v2002
    %4509 = vmatpush.bf16.msra.mxu0 %v1994
    %4510 = vmatpush.bf16.msra.mxu0 %v1986
    %4511 = vmatpush.bf16.msra.mxu0 %v1978
    %4512 = vmatmul.bf16.gmra.mxu0 %v724
    %v4513 = vpop.f32.mrf.mxu0
    %v4514 = vadd.f32 %v570, %v4513
    %v4515 = vpop.f32.mrf.mxu0
    %v4516 = vadd.f32 %v570, %v4515
    %4517 = vmatmul.bf16.gmra.mxu0 %v730
    %v4518 = vpop.f32.mrf.mxu0
    %v4519 = vadd.f32 %v570, %v4518
    %v4520 = vpop.f32.mrf.mxu0
    %v4521 = vadd.f32 %v570, %v4520
    %4522 = vmatmul.bf16.gmra.mxu0 %v736
    %v4523 = vpop.f32.mrf.mxu0
    %v4524 = vadd.f32 %v570, %v4523
    %v4525 = vpop.f32.mrf.mxu0
    %v4526 = vadd.f32 %v570, %v4525
    %4527 = vmatmul.bf16.gmra.mxu0 %v742
    %v4528 = vpop.f32.mrf.mxu0
    %v4529 = vadd.f32 %v570, %v4528
    %v4530 = vpop.f32.mrf.mxu0
    %v4531 = vadd.f32 %v570, %v4530
    %4532 = vmatmul.bf16.gmra.mxu0 %v748
    %v4533 = vpop.f32.mrf.mxu0
    %v4534 = vadd.f32 %v570, %v4533
    %v4535 = vpop.f32.mrf.mxu0
    %v4536 = vadd.f32 %v570, %v4535
    %4537 = vmatmul.bf16.gmra.mxu0 %v754
    %v4538 = vpop.f32.mrf.mxu0
    %v4539 = vadd.f32 %v570, %v4538
    %v4540 = vpop.f32.mrf.mxu0
    %v4541 = vadd.f32 %v570, %v4540
    %4542 = vmatmul.bf16.gmra.mxu0 %v760
    %v4543 = vpop.f32.mrf.mxu0
    %v4544 = vadd.f32 %v570, %v4543
    %v4545 = vpop.f32.mrf.mxu0
    %v4546 = vadd.f32 %v570, %v4545
    %4547 = vmatmul.bf16.gmra.mxu0 %v766
    %v4548 = vpop.f32.mrf.mxu0
    %v4549 = vadd.f32 %v570, %v4548
    %v4550 = vpop.f32.mrf.mxu0
    %v4551 = vadd.f32 %v570, %v4550
    %4552 = vdwg.mxu0
    %4553 = vmatpush.bf16.msra.mxu0 %v2098
    %4554 = vmatpush.bf16.msra.mxu0 %v2090
    %4555 = vmatpush.bf16.msra.mxu0 %v2082
    %4556 = vmatpush.bf16.msra.mxu0 %v2074
    %4557 = vmatpush.bf16.msra.mxu0 %v2066
    %4558 = vmatpush.bf16.msra.mxu0 %v2058
    %4559 = vmatpush.bf16.msra.mxu0 %v2050
    %4560 = vmatpush.bf16.msra.mxu0 %v2042
    %4561 = vmatmul.bf16.gmra.mxu0 %v725
    %v4562 = vpop.f32.mrf.mxu0
    %v4563 = vadd.f32 %v4514, %v4562
    %v4564 = vpop.f32.mrf.mxu0
    %v4565 = vadd.f32 %v4516, %v4564
    %4566 = vmatmul.bf16.gmra.mxu0 %v731
    %v4567 = vpop.f32.mrf.mxu0
    %v4568 = vadd.f32 %v4519, %v4567
    %v4569 = vpop.f32.mrf.mxu0
    %v4570 = vadd.f32 %v4521, %v4569
    %4571 = vmatmul.bf16.gmra.mxu0 %v737
    %v4572 = vpop.f32.mrf.mxu0
    %v4573 = vadd.f32 %v4524, %v4572
    %v4574 = vpop.f32.mrf.mxu0
    %v4575 = vadd.f32 %v4526, %v4574
    %4576 = vmatmul.bf16.gmra.mxu0 %v743
    %v4577 = vpop.f32.mrf.mxu0
    %v4578 = vadd.f32 %v4529, %v4577
    %v4579 = vpop.f32.mrf.mxu0
    %v4580 = vadd.f32 %v4531, %v4579
    %4581 = vmatmul.bf16.gmra.mxu0 %v749
    %v4582 = vpop.f32.mrf.mxu0
    %v4583 = vadd.f32 %v4534, %v4582
    %v4584 = vpop.f32.mrf.mxu0
    %v4585 = vadd.f32 %v4536, %v4584
    %4586 = vmatmul.bf16.gmra.mxu0 %v755
    %v4587 = vpop.f32.mrf.mxu0
    %v4588 = vadd.f32 %v4539, %v4587
    %v4589 = vpop.f32.mrf.mxu0
    %v4590 = vadd.f32 %v4541, %v4589
    %4591 = vmatmul.bf16.gmra.mxu0 %v761
    %v4592 = vpop.f32.mrf.mxu0
    %v4593 = vadd.f32 %v4544, %v4592
    %v4594 = vpop.f32.mrf.mxu0
    %v4595 = vadd.f32 %v4546, %v4594
    %4596 = vmatmul.bf16.gmra.mxu0 %v767
    %v4597 = vpop.f32.mrf.mxu0
    %v4598 = vadd.f32 %v4549, %v4597
    %v4599 = vpop.f32.mrf.mxu0
    %v4600 = vadd.f32 %v4551, %v4599
    %4601 = vdwg.mxu0
    %4602 = vmatpush.bf16.msra.mxu0 %v2162
    %4603 = vmatpush.bf16.msra.mxu0 %v2154
    %4604 = vmatpush.bf16.msra.mxu0 %v2146
    %4605 = vmatpush.bf16.msra.mxu0 %v2138
    %4606 = vmatpush.bf16.msra.mxu0 %v2130
    %4607 = vmatpush.bf16.msra.mxu0 %v2122
    %4608 = vmatpush.bf16.msra.mxu0 %v2114
    %4609 = vmatpush.bf16.msra.mxu0 %v2106
    %4610 = vmatmul.bf16.gmra.mxu0 %v726
    %v4611 = vpop.f32.mrf.mxu0
    %v4612 = vadd.f32 %v4563, %v4611
    %v4613 = vpop.f32.mrf.mxu0
    %v4614 = vadd.f32 %v4565, %v4613
    %4615 = vmatmul.bf16.gmra.mxu0 %v732
    %v4616 = vpop.f32.mrf.mxu0
    %v4617 = vadd.f32 %v4568, %v4616
    %v4618 = vpop.f32.mrf.mxu0
    %v4619 = vadd.f32 %v4570, %v4618
    %4620 = vmatmul.bf16.gmra.mxu0 %v738
    %v4621 = vpop.f32.mrf.mxu0
    %v4622 = vadd.f32 %v4573, %v4621
    %v4623 = vpop.f32.mrf.mxu0
    %v4624 = vadd.f32 %v4575, %v4623
    %4625 = vmatmul.bf16.gmra.mxu0 %v744
    %v4626 = vpop.f32.mrf.mxu0
    %v4627 = vadd.f32 %v4578, %v4626
    %v4628 = vpop.f32.mrf.mxu0
    %v4629 = vadd.f32 %v4580, %v4628
    %4630 = vmatmul.bf16.gmra.mxu0 %v750
    %v4631 = vpop.f32.mrf.mxu0
    %v4632 = vadd.f32 %v4583, %v4631
    %v4633 = vpop.f32.mrf.mxu0
    %v4634 = vadd.f32 %v4585, %v4633
    %4635 = vmatmul.bf16.gmra.mxu0 %v756
    %v4636 = vpop.f32.mrf.mxu0
    %v4637 = vadd.f32 %v4588, %v4636
    %v4638 = vpop.f32.mrf.mxu0
    %v4639 = vadd.f32 %v4590, %v4638
    %4640 = vmatmul.bf16.gmra.mxu0 %v762
    %v4641 = vpop.f32.mrf.mxu0
    %v4642 = vadd.f32 %v4593, %v4641
    %v4643 = vpop.f32.mrf.mxu0
    %v4644 = vadd.f32 %v4595, %v4643
    %4645 = vmatmul.bf16.gmra.mxu0 %v768
    %v4646 = vpop.f32.mrf.mxu0
    %v4647 = vadd.f32 %v4598, %v4646
    %v4648 = vpop.f32.mrf.mxu0
    %v4649 = vadd.f32 %v4600, %v4648
    %4650 = vdwg.mxu0
    %4651 = vmatpush.bf16.msra.mxu0 %v2226
    %4652 = vmatpush.bf16.msra.mxu0 %v2218
    %4653 = vmatpush.bf16.msra.mxu0 %v2210
    %4654 = vmatpush.bf16.msra.mxu0 %v2202
    %4655 = vmatpush.bf16.msra.mxu0 %v2194
    %4656 = vmatpush.bf16.msra.mxu0 %v2186
    %4657 = vmatpush.bf16.msra.mxu0 %v2178
    %4658 = vmatpush.bf16.msra.mxu0 %v2170
    %4659 = vmatmul.bf16.gmra.mxu0 %v727
    %v4660 = vpop.f32.mrf.mxu0
    %v4661 = vadd.f32 %v4612, %v4660
    %v4662 = vpop.f32.mrf.mxu0
    %v4663 = vadd.f32 %v4614, %v4662
    %4664 = vmatmul.bf16.gmra.mxu0 %v733
    %v4665 = vpop.f32.mrf.mxu0
    %v4666 = vadd.f32 %v4617, %v4665
    %v4667 = vpop.f32.mrf.mxu0
    %v4668 = vadd.f32 %v4619, %v4667
    %4669 = vmatmul.bf16.gmra.mxu0 %v739
    %v4670 = vpop.f32.mrf.mxu0
    %v4671 = vadd.f32 %v4622, %v4670
    %v4672 = vpop.f32.mrf.mxu0
    %v4673 = vadd.f32 %v4624, %v4672
    %4674 = vmatmul.bf16.gmra.mxu0 %v745
    %v4675 = vpop.f32.mrf.mxu0
    %v4676 = vadd.f32 %v4627, %v4675
    %v4677 = vpop.f32.mrf.mxu0
    %v4678 = vadd.f32 %v4629, %v4677
    %4679 = vmatmul.bf16.gmra.mxu0 %v751
    %v4680 = vpop.f32.mrf.mxu0
    %v4681 = vadd.f32 %v4632, %v4680
    %v4682 = vpop.f32.mrf.mxu0
    %v4683 = vadd.f32 %v4634, %v4682
    %4684 = vmatmul.bf16.gmra.mxu0 %v757
    %v4685 = vpop.f32.mrf.mxu0
    %v4686 = vadd.f32 %v4637, %v4685
    %v4687 = vpop.f32.mrf.mxu0
    %v4688 = vadd.f32 %v4639, %v4687
    %4689 = vmatmul.bf16.gmra.mxu0 %v763
    %v4690 = vpop.f32.mrf.mxu0
    %v4691 = vadd.f32 %v4642, %v4690
    %v4692 = vpop.f32.mrf.mxu0
    %v4693 = vadd.f32 %v4644, %v4692
    %4694 = vmatmul.bf16.gmra.mxu0 %v769
    %v4695 = vpop.f32.mrf.mxu0
    %v4696 = vadd.f32 %v4647, %v4695
    %v4697 = vpop.f32.mrf.mxu0
    %v4698 = vadd.f32 %v4649, %v4697
    %4699 = vdwg.mxu0
    %4700 = vmatpush.bf16.msra.mxu0 %v2290
    %4701 = vmatpush.bf16.msra.mxu0 %v2282
    %4702 = vmatpush.bf16.msra.mxu0 %v2274
    %4703 = vmatpush.bf16.msra.mxu0 %v2266
    %4704 = vmatpush.bf16.msra.mxu0 %v2258
    %4705 = vmatpush.bf16.msra.mxu0 %v2250
    %4706 = vmatpush.bf16.msra.mxu0 %v2242
    %4707 = vmatpush.bf16.msra.mxu0 %v2234
    %4708 = vmatmul.bf16.gmra.mxu0 %v728
    %v4709 = vpop.f32.mrf.mxu0
    %v4710 = vadd.f32 %v4661, %v4709
    %v4711 = vpop.f32.mrf.mxu0
    %v4712 = vadd.f32 %v4663, %v4711
    %4713 = vmatmul.bf16.gmra.mxu0 %v734
    %v4714 = vpop.f32.mrf.mxu0
    %v4715 = vadd.f32 %v4666, %v4714
    %v4716 = vpop.f32.mrf.mxu0
    %v4717 = vadd.f32 %v4668, %v4716
    %4718 = vmatmul.bf16.gmra.mxu0 %v740
    %v4719 = vpop.f32.mrf.mxu0
    %v4720 = vadd.f32 %v4671, %v4719
    %v4721 = vpop.f32.mrf.mxu0
    %v4722 = vadd.f32 %v4673, %v4721
    %4723 = vmatmul.bf16.gmra.mxu0 %v746
    %v4724 = vpop.f32.mrf.mxu0
    %v4725 = vadd.f32 %v4676, %v4724
    %v4726 = vpop.f32.mrf.mxu0
    %v4727 = vadd.f32 %v4678, %v4726
    %4728 = vmatmul.bf16.gmra.mxu0 %v752
    %v4729 = vpop.f32.mrf.mxu0
    %v4730 = vadd.f32 %v4681, %v4729
    %v4731 = vpop.f32.mrf.mxu0
    %v4732 = vadd.f32 %v4683, %v4731
    %4733 = vmatmul.bf16.gmra.mxu0 %v758
    %v4734 = vpop.f32.mrf.mxu0
    %v4735 = vadd.f32 %v4686, %v4734
    %v4736 = vpop.f32.mrf.mxu0
    %v4737 = vadd.f32 %v4688, %v4736
    %4738 = vmatmul.bf16.gmra.mxu0 %v764
    %v4739 = vpop.f32.mrf.mxu0
    %v4740 = vadd.f32 %v4691, %v4739
    %v4741 = vpop.f32.mrf.mxu0
    %v4742 = vadd.f32 %v4693, %v4741
    %4743 = vmatmul.bf16.gmra.mxu0 %v770
    %v4744 = vpop.f32.mrf.mxu0
    %v4745 = vadd.f32 %v4696, %v4744
    %v4746 = vpop.f32.mrf.mxu0
    %v4747 = vadd.f32 %v4698, %v4746
    %4748 = vdwg.mxu0
    %4749 = vmatpush.bf16.msra.mxu0 %v2354
    %4750 = vmatpush.bf16.msra.mxu0 %v2346
    %4751 = vmatpush.bf16.msra.mxu0 %v2338
    %4752 = vmatpush.bf16.msra.mxu0 %v2330
    %4753 = vmatpush.bf16.msra.mxu0 %v2322
    %4754 = vmatpush.bf16.msra.mxu0 %v2314
    %4755 = vmatpush.bf16.msra.mxu0 %v2306
    %4756 = vmatpush.bf16.msra.mxu0 %v2298
    %4757 = vmatmul.bf16.gmra.mxu0 %v729
    %v4758 = vpop.f32.mrf.mxu0
    %v4759 = vadd.f32 %v4710, %v4758
    %v4760 = vpop.f32.mrf.mxu0
    %v4761 = vadd.f32 %v4712, %v4760
    %4762 = vmatmul.bf16.gmra.mxu0 %v735
    %v4763 = vpop.f32.mrf.mxu0
    %v4764 = vadd.f32 %v4715, %v4763
    %v4765 = vpop.f32.mrf.mxu0
    %v4766 = vadd.f32 %v4717, %v4765
    %4767 = vmatmul.bf16.gmra.mxu0 %v741
    %v4768 = vpop.f32.mrf.mxu0
    %v4769 = vadd.f32 %v4720, %v4768
    %v4770 = vpop.f32.mrf.mxu0
    %v4771 = vadd.f32 %v4722, %v4770
    %4772 = vmatmul.bf16.gmra.mxu0 %v747
    %v4773 = vpop.f32.mrf.mxu0
    %v4774 = vadd.f32 %v4725, %v4773
    %v4775 = vpop.f32.mrf.mxu0
    %v4776 = vadd.f32 %v4727, %v4775
    %4777 = vmatmul.bf16.gmra.mxu0 %v753
    %v4778 = vpop.f32.mrf.mxu0
    %v4779 = vadd.f32 %v4730, %v4778
    %v4780 = vpop.f32.mrf.mxu0
    %v4781 = vadd.f32 %v4732, %v4780
    %4782 = vmatmul.bf16.gmra.mxu0 %v759
    %v4783 = vpop.f32.mrf.mxu0
    %v4784 = vadd.f32 %v4735, %v4783
    %v4785 = vpop.f32.mrf.mxu0
    %v4786 = vadd.f32 %v4737, %v4785
    %4787 = vmatmul.bf16.gmra.mxu0 %v765
    %v4788 = vpop.f32.mrf.mxu0
    %v4789 = vadd.f32 %v4740, %v4788
    %v4790 = vpop.f32.mrf.mxu0
    %v4791 = vadd.f32 %v4742, %v4790
    %4792 = vmatmul.bf16.gmra.mxu0 %v771
    %v4793 = vpop.f32.mrf.mxu0
    %v4794 = vadd.f32 %v4745, %v4793
    %v4795 = vpop.f32.mrf.mxu0
    %v4796 = vadd.f32 %v4747, %v4795
    %4797 = vdwg.mxu0
    %4798 = vmatpush.bf16.msra.mxu0 %v2035
    %4799 = vmatpush.bf16.msra.mxu0 %v2027
    %4800 = vmatpush.bf16.msra.mxu0 %v2019
    %4801 = vmatpush.bf16.msra.mxu0 %v2011
    %4802 = vmatpush.bf16.msra.mxu0 %v2003
    %4803 = vmatpush.bf16.msra.mxu0 %v1995
    %4804 = vmatpush.bf16.msra.mxu0 %v1987
    %4805 = vmatpush.bf16.msra.mxu0 %v1979
    %4806 = vmatmul.bf16.gmra.mxu0 %v724
    %v4807 = vpop.f32.mrf.mxu0
    %v4808 = vadd.f32 %v571, %v4807
    %v4809 = vpop.f32.mrf.mxu0
    %v4810 = vadd.f32 %v571, %v4809
    %4811 = vmatmul.bf16.gmra.mxu0 %v730
    %v4812 = vpop.f32.mrf.mxu0
    %v4813 = vadd.f32 %v571, %v4812
    %v4814 = vpop.f32.mrf.mxu0
    %v4815 = vadd.f32 %v571, %v4814
    %4816 = vmatmul.bf16.gmra.mxu0 %v736
    %v4817 = vpop.f32.mrf.mxu0
    %v4818 = vadd.f32 %v571, %v4817
    %v4819 = vpop.f32.mrf.mxu0
    %v4820 = vadd.f32 %v571, %v4819
    %4821 = vmatmul.bf16.gmra.mxu0 %v742
    %v4822 = vpop.f32.mrf.mxu0
    %v4823 = vadd.f32 %v571, %v4822
    %v4824 = vpop.f32.mrf.mxu0
    %v4825 = vadd.f32 %v571, %v4824
    %4826 = vmatmul.bf16.gmra.mxu0 %v748
    %v4827 = vpop.f32.mrf.mxu0
    %v4828 = vadd.f32 %v571, %v4827
    %v4829 = vpop.f32.mrf.mxu0
    %v4830 = vadd.f32 %v571, %v4829
    %4831 = vmatmul.bf16.gmra.mxu0 %v754
    %v4832 = vpop.f32.mrf.mxu0
    %v4833 = vadd.f32 %v571, %v4832
    %v4834 = vpop.f32.mrf.mxu0
    %v4835 = vadd.f32 %v571, %v4834
    %4836 = vmatmul.bf16.gmra.mxu0 %v760
    %v4837 = vpop.f32.mrf.mxu0
    %v4838 = vadd.f32 %v571, %v4837
    %v4839 = vpop.f32.mrf.mxu0
    %v4840 = vadd.f32 %v571, %v4839
    %4841 = vmatmul.bf16.gmra.mxu0 %v766
    %v4842 = vpop.f32.mrf.mxu0
    %v4843 = vadd.f32 %v571, %v4842
    %v4844 = vpop.f32.mrf.mxu0
    %v4845 = vadd.f32 %v571, %v4844
    %4846 = vdwg.mxu0
    %4847 = vmatpush.bf16.msra.mxu0 %v2099
    %4848 = vmatpush.bf16.msra.mxu0 %v2091
    %4849 = vmatpush.bf16.msra.mxu0 %v2083
    %4850 = vmatpush.bf16.msra.mxu0 %v2075
    %4851 = vmatpush.bf16.msra.mxu0 %v2067
    %4852 = vmatpush.bf16.msra.mxu0 %v2059
    %4853 = vmatpush.bf16.msra.mxu0 %v2051
    %4854 = vmatpush.bf16.msra.mxu0 %v2043
    %4855 = vmatmul.bf16.gmra.mxu0 %v725
    %v4856 = vpop.f32.mrf.mxu0
    %v4857 = vadd.f32 %v4808, %v4856
    %v4858 = vpop.f32.mrf.mxu0
    %v4859 = vadd.f32 %v4810, %v4858
    %4860 = vmatmul.bf16.gmra.mxu0 %v731
    %v4861 = vpop.f32.mrf.mxu0
    %v4862 = vadd.f32 %v4813, %v4861
    %v4863 = vpop.f32.mrf.mxu0
    %v4864 = vadd.f32 %v4815, %v4863
    %4865 = vmatmul.bf16.gmra.mxu0 %v737
    %v4866 = vpop.f32.mrf.mxu0
    %v4867 = vadd.f32 %v4818, %v4866
    %v4868 = vpop.f32.mrf.mxu0
    %v4869 = vadd.f32 %v4820, %v4868
    %4870 = vmatmul.bf16.gmra.mxu0 %v743
    %v4871 = vpop.f32.mrf.mxu0
    %v4872 = vadd.f32 %v4823, %v4871
    %v4873 = vpop.f32.mrf.mxu0
    %v4874 = vadd.f32 %v4825, %v4873
    %4875 = vmatmul.bf16.gmra.mxu0 %v749
    %v4876 = vpop.f32.mrf.mxu0
    %v4877 = vadd.f32 %v4828, %v4876
    %v4878 = vpop.f32.mrf.mxu0
    %v4879 = vadd.f32 %v4830, %v4878
    %4880 = vmatmul.bf16.gmra.mxu0 %v755
    %v4881 = vpop.f32.mrf.mxu0
    %v4882 = vadd.f32 %v4833, %v4881
    %v4883 = vpop.f32.mrf.mxu0
    %v4884 = vadd.f32 %v4835, %v4883
    %4885 = vmatmul.bf16.gmra.mxu0 %v761
    %v4886 = vpop.f32.mrf.mxu0
    %v4887 = vadd.f32 %v4838, %v4886
    %v4888 = vpop.f32.mrf.mxu0
    %v4889 = vadd.f32 %v4840, %v4888
    %4890 = vmatmul.bf16.gmra.mxu0 %v767
    %v4891 = vpop.f32.mrf.mxu0
    %v4892 = vadd.f32 %v4843, %v4891
    %v4893 = vpop.f32.mrf.mxu0
    %v4894 = vadd.f32 %v4845, %v4893
    %4895 = vdwg.mxu0
    %4896 = vmatpush.bf16.msra.mxu0 %v2163
    %4897 = vmatpush.bf16.msra.mxu0 %v2155
    %4898 = vmatpush.bf16.msra.mxu0 %v2147
    %4899 = vmatpush.bf16.msra.mxu0 %v2139
    %4900 = vmatpush.bf16.msra.mxu0 %v2131
    %4901 = vmatpush.bf16.msra.mxu0 %v2123
    %4902 = vmatpush.bf16.msra.mxu0 %v2115
    %4903 = vmatpush.bf16.msra.mxu0 %v2107
    %4904 = vmatmul.bf16.gmra.mxu0 %v726
    %v4905 = vpop.f32.mrf.mxu0
    %v4906 = vadd.f32 %v4857, %v4905
    %v4907 = vpop.f32.mrf.mxu0
    %v4908 = vadd.f32 %v4859, %v4907
    %4909 = vmatmul.bf16.gmra.mxu0 %v732
    %v4910 = vpop.f32.mrf.mxu0
    %v4911 = vadd.f32 %v4862, %v4910
    %v4912 = vpop.f32.mrf.mxu0
    %v4913 = vadd.f32 %v4864, %v4912
    %4914 = vmatmul.bf16.gmra.mxu0 %v738
    %v4915 = vpop.f32.mrf.mxu0
    %v4916 = vadd.f32 %v4867, %v4915
    %v4917 = vpop.f32.mrf.mxu0
    %v4918 = vadd.f32 %v4869, %v4917
    %4919 = vmatmul.bf16.gmra.mxu0 %v744
    %v4920 = vpop.f32.mrf.mxu0
    %v4921 = vadd.f32 %v4872, %v4920
    %v4922 = vpop.f32.mrf.mxu0
    %v4923 = vadd.f32 %v4874, %v4922
    %4924 = vmatmul.bf16.gmra.mxu0 %v750
    %v4925 = vpop.f32.mrf.mxu0
    %v4926 = vadd.f32 %v4877, %v4925
    %v4927 = vpop.f32.mrf.mxu0
    %v4928 = vadd.f32 %v4879, %v4927
    %4929 = vmatmul.bf16.gmra.mxu0 %v756
    %v4930 = vpop.f32.mrf.mxu0
    %v4931 = vadd.f32 %v4882, %v4930
    %v4932 = vpop.f32.mrf.mxu0
    %v4933 = vadd.f32 %v4884, %v4932
    %4934 = vmatmul.bf16.gmra.mxu0 %v762
    %v4935 = vpop.f32.mrf.mxu0
    %v4936 = vadd.f32 %v4887, %v4935
    %v4937 = vpop.f32.mrf.mxu0
    %v4938 = vadd.f32 %v4889, %v4937
    %4939 = vmatmul.bf16.gmra.mxu0 %v768
    %v4940 = vpop.f32.mrf.mxu0
    %v4941 = vadd.f32 %v4892, %v4940
    %v4942 = vpop.f32.mrf.mxu0
    %v4943 = vadd.f32 %v4894, %v4942
    %4944 = vdwg.mxu0
    %4945 = vmatpush.bf16.msra.mxu0 %v2227
    %4946 = vmatpush.bf16.msra.mxu0 %v2219
    %4947 = vmatpush.bf16.msra.mxu0 %v2211
    %4948 = vmatpush.bf16.msra.mxu0 %v2203
    %4949 = vmatpush.bf16.msra.mxu0 %v2195
    %4950 = vmatpush.bf16.msra.mxu0 %v2187
    %4951 = vmatpush.bf16.msra.mxu0 %v2179
    %4952 = vmatpush.bf16.msra.mxu0 %v2171
    %4953 = vmatmul.bf16.gmra.mxu0 %v727
    %v4954 = vpop.f32.mrf.mxu0
    %v4955 = vadd.f32 %v4906, %v4954
    %v4956 = vpop.f32.mrf.mxu0
    %v4957 = vadd.f32 %v4908, %v4956
    %4958 = vmatmul.bf16.gmra.mxu0 %v733
    %v4959 = vpop.f32.mrf.mxu0
    %v4960 = vadd.f32 %v4911, %v4959
    %v4961 = vpop.f32.mrf.mxu0
    %v4962 = vadd.f32 %v4913, %v4961
    %4963 = vmatmul.bf16.gmra.mxu0 %v739
    %v4964 = vpop.f32.mrf.mxu0
    %v4965 = vadd.f32 %v4916, %v4964
    %v4966 = vpop.f32.mrf.mxu0
    %v4967 = vadd.f32 %v4918, %v4966
    %4968 = vmatmul.bf16.gmra.mxu0 %v745
    %v4969 = vpop.f32.mrf.mxu0
    %v4970 = vadd.f32 %v4921, %v4969
    %v4971 = vpop.f32.mrf.mxu0
    %v4972 = vadd.f32 %v4923, %v4971
    %4973 = vmatmul.bf16.gmra.mxu0 %v751
    %v4974 = vpop.f32.mrf.mxu0
    %v4975 = vadd.f32 %v4926, %v4974
    %v4976 = vpop.f32.mrf.mxu0
    %v4977 = vadd.f32 %v4928, %v4976
    %4978 = vmatmul.bf16.gmra.mxu0 %v757
    %v4979 = vpop.f32.mrf.mxu0
    %v4980 = vadd.f32 %v4931, %v4979
    %v4981 = vpop.f32.mrf.mxu0
    %v4982 = vadd.f32 %v4933, %v4981
    %4983 = vmatmul.bf16.gmra.mxu0 %v763
    %v4984 = vpop.f32.mrf.mxu0
    %v4985 = vadd.f32 %v4936, %v4984
    %v4986 = vpop.f32.mrf.mxu0
    %v4987 = vadd.f32 %v4938, %v4986
    %4988 = vmatmul.bf16.gmra.mxu0 %v769
    %v4989 = vpop.f32.mrf.mxu0
    %v4990 = vadd.f32 %v4941, %v4989
    %v4991 = vpop.f32.mrf.mxu0
    %v4992 = vadd.f32 %v4943, %v4991
    %4993 = vdwg.mxu0
    %4994 = vmatpush.bf16.msra.mxu0 %v2291
    %4995 = vmatpush.bf16.msra.mxu0 %v2283
    %4996 = vmatpush.bf16.msra.mxu0 %v2275
    %4997 = vmatpush.bf16.msra.mxu0 %v2267
    %4998 = vmatpush.bf16.msra.mxu0 %v2259
    %4999 = vmatpush.bf16.msra.mxu0 %v2251
    %5000 = vmatpush.bf16.msra.mxu0 %v2243
    %5001 = vmatpush.bf16.msra.mxu0 %v2235
    %5002 = vmatmul.bf16.gmra.mxu0 %v728
    %v5003 = vpop.f32.mrf.mxu0
    %v5004 = vadd.f32 %v4955, %v5003
    %v5005 = vpop.f32.mrf.mxu0
    %v5006 = vadd.f32 %v4957, %v5005
    %5007 = vmatmul.bf16.gmra.mxu0 %v734
    %v5008 = vpop.f32.mrf.mxu0
    %v5009 = vadd.f32 %v4960, %v5008
    %v5010 = vpop.f32.mrf.mxu0
    %v5011 = vadd.f32 %v4962, %v5010
    %5012 = vmatmul.bf16.gmra.mxu0 %v740
    %v5013 = vpop.f32.mrf.mxu0
    %v5014 = vadd.f32 %v4965, %v5013
    %v5015 = vpop.f32.mrf.mxu0
    %v5016 = vadd.f32 %v4967, %v5015
    %5017 = vmatmul.bf16.gmra.mxu0 %v746
    %v5018 = vpop.f32.mrf.mxu0
    %v5019 = vadd.f32 %v4970, %v5018
    %v5020 = vpop.f32.mrf.mxu0
    %v5021 = vadd.f32 %v4972, %v5020
    %5022 = vmatmul.bf16.gmra.mxu0 %v752
    %v5023 = vpop.f32.mrf.mxu0
    %v5024 = vadd.f32 %v4975, %v5023
    %v5025 = vpop.f32.mrf.mxu0
    %v5026 = vadd.f32 %v4977, %v5025
    %5027 = vmatmul.bf16.gmra.mxu0 %v758
    %v5028 = vpop.f32.mrf.mxu0
    %v5029 = vadd.f32 %v4980, %v5028
    %v5030 = vpop.f32.mrf.mxu0
    %v5031 = vadd.f32 %v4982, %v5030
    %5032 = vmatmul.bf16.gmra.mxu0 %v764
    %v5033 = vpop.f32.mrf.mxu0
    %v5034 = vadd.f32 %v4985, %v5033
    %v5035 = vpop.f32.mrf.mxu0
    %v5036 = vadd.f32 %v4987, %v5035
    %5037 = vmatmul.bf16.gmra.mxu0 %v770
    %v5038 = vpop.f32.mrf.mxu0
    %v5039 = vadd.f32 %v4990, %v5038
    %v5040 = vpop.f32.mrf.mxu0
    %v5041 = vadd.f32 %v4992, %v5040
    %5042 = vdwg.mxu0
    %5043 = vmatpush.bf16.msra.mxu0 %v2355
    %5044 = vmatpush.bf16.msra.mxu0 %v2347
    %5045 = vmatpush.bf16.msra.mxu0 %v2339
    %5046 = vmatpush.bf16.msra.mxu0 %v2331
    %5047 = vmatpush.bf16.msra.mxu0 %v2323
    %5048 = vmatpush.bf16.msra.mxu0 %v2315
    %5049 = vmatpush.bf16.msra.mxu0 %v2307
    %5050 = vmatpush.bf16.msra.mxu0 %v2299
    %5051 = vmatmul.bf16.gmra.mxu0 %v729
    %v5052 = vpop.f32.mrf.mxu0
    %v5053 = vadd.f32 %v5004, %v5052
    %v5054 = vpop.f32.mrf.mxu0
    %v5055 = vadd.f32 %v5006, %v5054
    %5056 = vmatmul.bf16.gmra.mxu0 %v735
    %v5057 = vpop.f32.mrf.mxu0
    %v5058 = vadd.f32 %v5009, %v5057
    %v5059 = vpop.f32.mrf.mxu0
    %v5060 = vadd.f32 %v5011, %v5059
    %5061 = vmatmul.bf16.gmra.mxu0 %v741
    %v5062 = vpop.f32.mrf.mxu0
    %v5063 = vadd.f32 %v5014, %v5062
    %v5064 = vpop.f32.mrf.mxu0
    %v5065 = vadd.f32 %v5016, %v5064
    %5066 = vmatmul.bf16.gmra.mxu0 %v747
    %v5067 = vpop.f32.mrf.mxu0
    %v5068 = vadd.f32 %v5019, %v5067
    %v5069 = vpop.f32.mrf.mxu0
    %v5070 = vadd.f32 %v5021, %v5069
    %5071 = vmatmul.bf16.gmra.mxu0 %v753
    %v5072 = vpop.f32.mrf.mxu0
    %v5073 = vadd.f32 %v5024, %v5072
    %v5074 = vpop.f32.mrf.mxu0
    %v5075 = vadd.f32 %v5026, %v5074
    %5076 = vmatmul.bf16.gmra.mxu0 %v759
    %v5077 = vpop.f32.mrf.mxu0
    %v5078 = vadd.f32 %v5029, %v5077
    %v5079 = vpop.f32.mrf.mxu0
    %v5080 = vadd.f32 %v5031, %v5079
    %5081 = vmatmul.bf16.gmra.mxu0 %v765
    %v5082 = vpop.f32.mrf.mxu0
    %v5083 = vadd.f32 %v5034, %v5082
    %v5084 = vpop.f32.mrf.mxu0
    %v5085 = vadd.f32 %v5036, %v5084
    %5086 = vmatmul.bf16.gmra.mxu0 %v771
    %v5087 = vpop.f32.mrf.mxu0
    %v5088 = vadd.f32 %v5039, %v5087
    %v5089 = vpop.f32.mrf.mxu0
    %v5090 = vadd.f32 %v5041, %v5089
    %5091 = vdwg.mxu0
    %v5092 = vmax.f32 %v2995, 0.0
    %v5093 = vmax.f32 %v3289, 0.0
    %v5094 = vmax.f32 %v3583, 0.0
    %v5095 = vmax.f32 %v3877, 0.0
    %v5096 = vmax.f32 %v4171, 0.0
    %v5097 = vmax.f32 %v4465, 0.0
    %v5098 = vmax.f32 %v4759, 0.0
    %v5099 = vmax.f32 %v5053, 0.0
    %v5100 = vmax.f32 %v2997, 0.0
    %v5101 = vmax.f32 %v3291, 0.0
    %v5102 = vmax.f32 %v3585, 0.0
    %v5103 = vmax.f32 %v3879, 0.0
    %v5104 = vmax.f32 %v4173, 0.0
    %v5105 = vmax.f32 %v4467, 0.0
    %v5106 = vmax.f32 %v4761, 0.0
    %v5107 = vmax.f32 %v5055, 0.0
    %v5108 = vmax.f32 %v3000, 0.0
    %v5109 = vmax.f32 %v3294, 0.0
    %v5110 = vmax.f32 %v3588, 0.0
    %v5111 = vmax.f32 %v3882, 0.0
    %v5112 = vmax.f32 %v4176, 0.0
    %v5113 = vmax.f32 %v4470, 0.0
    %v5114 = vmax.f32 %v4764, 0.0
    %v5115 = vmax.f32 %v5058, 0.0
    %v5116 = vmax.f32 %v3002, 0.0
    %v5117 = vmax.f32 %v3296, 0.0
    %v5118 = vmax.f32 %v3590, 0.0
    %v5119 = vmax.f32 %v3884, 0.0
    %v5120 = vmax.f32 %v4178, 0.0
    %v5121 = vmax.f32 %v4472, 0.0
    %v5122 = vmax.f32 %v4766, 0.0
    %v5123 = vmax.f32 %v5060, 0.0
    %v5124 = vmax.f32 %v3005, 0.0
    %v5125 = vmax.f32 %v3299, 0.0
    %v5126 = vmax.f32 %v3593, 0.0
    %v5127 = vmax.f32 %v3887, 0.0
    %v5128 = vmax.f32 %v4181, 0.0
    %v5129 = vmax.f32 %v4475, 0.0
    %v5130 = vmax.f32 %v4769, 0.0
    %v5131 = vmax.f32 %v5063, 0.0
    %v5132 = vmax.f32 %v3007, 0.0
    %v5133 = vmax.f32 %v3301, 0.0
    %v5134 = vmax.f32 %v3595, 0.0
    %v5135 = vmax.f32 %v3889, 0.0
    %v5136 = vmax.f32 %v4183, 0.0
    %v5137 = vmax.f32 %v4477, 0.0
    %v5138 = vmax.f32 %v4771, 0.0
    %v5139 = vmax.f32 %v5065, 0.0
    %v5140 = vmax.f32 %v3010, 0.0
    %v5141 = vmax.f32 %v3304, 0.0
    %v5142 = vmax.f32 %v3598, 0.0
    %v5143 = vmax.f32 %v3892, 0.0
    %v5144 = vmax.f32 %v4186, 0.0
    %v5145 = vmax.f32 %v4480, 0.0
    %v5146 = vmax.f32 %v4774, 0.0
    %v5147 = vmax.f32 %v5068, 0.0
    %v5148 = vmax.f32 %v3012, 0.0
    %v5149 = vmax.f32 %v3306, 0.0
    %v5150 = vmax.f32 %v3600, 0.0
    %v5151 = vmax.f32 %v3894, 0.0
    %v5152 = vmax.f32 %v4188, 0.0
    %v5153 = vmax.f32 %v4482, 0.0
    %v5154 = vmax.f32 %v4776, 0.0
    %v5155 = vmax.f32 %v5070, 0.0
    %v5156 = vmax.f32 %v3015, 0.0
    %v5157 = vmax.f32 %v3309, 0.0
    %v5158 = vmax.f32 %v3603, 0.0
    %v5159 = vmax.f32 %v3897, 0.0
    %v5160 = vmax.f32 %v4191, 0.0
    %v5161 = vmax.f32 %v4485, 0.0
    %v5162 = vmax.f32 %v4779, 0.0
    %v5163 = vmax.f32 %v5073, 0.0
    %v5164 = vmax.f32 %v3017, 0.0
    %v5165 = vmax.f32 %v3311, 0.0
    %v5166 = vmax.f32 %v3605, 0.0
    %v5167 = vmax.f32 %v3899, 0.0
    %v5168 = vmax.f32 %v4193, 0.0
    %v5169 = vmax.f32 %v4487, 0.0
    %v5170 = vmax.f32 %v4781, 0.0
    %v5171 = vmax.f32 %v5075, 0.0
    %v5172 = vmax.f32 %v3020, 0.0
    %v5173 = vmax.f32 %v3314, 0.0
    %v5174 = vmax.f32 %v3608, 0.0
    %v5175 = vmax.f32 %v3902, 0.0
    %v5176 = vmax.f32 %v4196, 0.0
    %v5177 = vmax.f32 %v4490, 0.0
    %v5178 = vmax.f32 %v4784, 0.0
    %v5179 = vmax.f32 %v5078, 0.0
    %v5180 = vmax.f32 %v3022, 0.0
    %v5181 = vmax.f32 %v3316, 0.0
    %v5182 = vmax.f32 %v3610, 0.0
    %v5183 = vmax.f32 %v3904, 0.0
    %v5184 = vmax.f32 %v4198, 0.0
    %v5185 = vmax.f32 %v4492, 0.0
    %v5186 = vmax.f32 %v4786, 0.0
    %v5187 = vmax.f32 %v5080, 0.0
    %v5188 = vmax.f32 %v3025, 0.0
    %v5189 = vmax.f32 %v3319, 0.0
    %v5190 = vmax.f32 %v3613, 0.0
    %v5191 = vmax.f32 %v3907, 0.0
    %v5192 = vmax.f32 %v4201, 0.0
    %v5193 = vmax.f32 %v4495, 0.0
    %v5194 = vmax.f32 %v4789, 0.0
    %v5195 = vmax.f32 %v5083, 0.0
    %v5196 = vmax.f32 %v3027, 0.0
    %v5197 = vmax.f32 %v3321, 0.0
    %v5198 = vmax.f32 %v3615, 0.0
    %v5199 = vmax.f32 %v3909, 0.0
    %v5200 = vmax.f32 %v4203, 0.0
    %v5201 = vmax.f32 %v4497, 0.0
    %v5202 = vmax.f32 %v4791, 0.0
    %v5203 = vmax.f32 %v5085, 0.0
    %v5204 = vmax.f32 %v3030, 0.0
    %v5205 = vmax.f32 %v3324, 0.0
    %v5206 = vmax.f32 %v3618, 0.0
    %v5207 = vmax.f32 %v3912, 0.0
    %v5208 = vmax.f32 %v4206, 0.0
    %v5209 = vmax.f32 %v4500, 0.0
    %v5210 = vmax.f32 %v4794, 0.0
    %v5211 = vmax.f32 %v5088, 0.0
    %v5212 = vmax.f32 %v3032, 0.0
    %v5213 = vmax.f32 %v3326, 0.0
    %v5214 = vmax.f32 %v3620, 0.0
    %v5215 = vmax.f32 %v3914, 0.0
    %v5216 = vmax.f32 %v4208, 0.0
    %v5217 = vmax.f32 %v4502, 0.0
    %v5218 = vmax.f32 %v4796, 0.0
    %v5219 = vmax.f32 %v5090, 0.0
    %5220 = vst [vmem:[#allocation2] sm:$0xff] %v5092
    %5221 = vst [vmem:[#allocation2 + $0x8] sm:$0xff] %v5093
    %5222 = vst [vmem:[#allocation2 + $0x10] sm:$0xff] %v5094
    %5223 = vst [vmem:[#allocation2 + $0x18] sm:$0xff] %v5095
    %5224 = vst [vmem:[#allocation2 + $0x20] sm:$0xff] %v5096
    %5225 = vst [vmem:[#allocation2 + $0x28] sm:$0xff] %v5097
    %5226 = vst [vmem:[#allocation2 + $0x30] sm:$0xff] %v5098
    %5227 = vst [vmem:[#allocation2 + $0x38] sm:$0xff] %v5099
    %5228 = vst [vmem:[#allocation2 + $0x40] sm:$0xff] %v5100
    %5229 = vst [vmem:[#allocation2 + $0x48] sm:$0xff] %v5101
    %5230 = vst [vmem:[#allocation2 + $0x50] sm:$0xff] %v5102
    %5231 = vst [vmem:[#allocation2 + $0x58] sm:$0xff] %v5103
    %5232 = vst [vmem:[#allocation2 + $0x60] sm:$0xff] %v5104
    %5233 = vst [vmem:[#allocation2 + $0x68] sm:$0xff] %v5105
    %5234 = vst [vmem:[#allocation2 + $0x70] sm:$0xff] %v5106
    %5235 = vst [vmem:[#allocation2 + $0x78] sm:$0xff] %v5107
    %5236 = vst [vmem:[#allocation2 + $0x80] sm:$0xff] %v5108
    %5237 = vst [vmem:[#allocation2 + $0x88] sm:$0xff] %v5109
    %5238 = vst [vmem:[#allocation2 + $0x90] sm:$0xff] %v5110
    %5239 = vst [vmem:[#allocation2 + $0x98] sm:$0xff] %v5111
    %5240 = vst [vmem:[#allocation2 + $0xa0] sm:$0xff] %v5112
    %5241 = vst [vmem:[#allocation2 + $0xa8] sm:$0xff] %v5113
    %5242 = vst [vmem:[#allocation2 + $0xb0] sm:$0xff] %v5114
    %5243 = vst [vmem:[#allocation2 + $0xb8] sm:$0xff] %v5115
    %5244 = vst [vmem:[#allocation2 + $0xc0] sm:$0xff] %v5116
    %5245 = vst [vmem:[#allocation2 + $0xc8] sm:$0xff] %v5117
    %5246 = vst [vmem:[#allocation2 + $0xd0] sm:$0xff] %v5118
    %5247 = vst [vmem:[#allocation2 + $0xd8] sm:$0xff] %v5119
    %5248 = vst [vmem:[#allocation2 + $0xe0] sm:$0xff] %v5120
    %5249 = vst [vmem:[#allocation2 + $0xe8] sm:$0xff] %v5121
    %5250 = vst [vmem:[#allocation2 + $0xf0] sm:$0xff] %v5122
    %5251 = vst [vmem:[#allocation2 + $0xf8] sm:$0xff] %v5123
    %5252 = vst [vmem:[#allocation2 + $0x100] sm:$0xff] %v5124
    %5253 = vst [vmem:[#allocation2 + $0x108] sm:$0xff] %v5125
    %5254 = vst [vmem:[#allocation2 + $0x110] sm:$0xff] %v5126
    %5255 = vst [vmem:[#allocation2 + $0x118] sm:$0xff] %v5127
    %5256 = vst [vmem:[#allocation2 + $0x120] sm:$0xff] %v5128
    %5257 = vst [vmem:[#allocation2 + $0x128] sm:$0xff] %v5129
    %5258 = vst [vmem:[#allocation2 + $0x130] sm:$0xff] %v5130
    %5259 = vst [vmem:[#allocation2 + $0x138] sm:$0xff] %v5131
    %5260 = vst [vmem:[#allocation2 + $0x140] sm:$0xff] %v5132
    %5261 = vst [vmem:[#allocation2 + $0x148] sm:$0xff] %v5133
    %5262 = vst [vmem:[#allocation2 + $0x150] sm:$0xff] %v5134
    %5263 = vst [vmem:[#allocation2 + $0x158] sm:$0xff] %v5135
    %5264 = vst [vmem:[#allocation2 + $0x160] sm:$0xff] %v5136
    %5265 = vst [vmem:[#allocation2 + $0x168] sm:$0xff] %v5137
    %5266 = vst [vmem:[#allocation2 + $0x170] sm:$0xff] %v5138
    %5267 = vst [vmem:[#allocation2 + $0x178] sm:$0xff] %v5139
    %5268 = vst [vmem:[#allocation2 + $0x180] sm:$0xff] %v5140
    %5269 = vst [vmem:[#allocation2 + $0x188] sm:$0xff] %v5141
    %5270 = vst [vmem:[#allocation2 + $0x190] sm:$0xff] %v5142
    %5271 = vst [vmem:[#allocation2 + $0x198] sm:$0xff] %v5143
    %5272 = vst [vmem:[#allocation2 + $0x1a0] sm:$0xff] %v5144
    %5273 = vst [vmem:[#allocation2 + $0x1a8] sm:$0xff] %v5145
    %5274 = vst [vmem:[#allocation2 + $0x1b0] sm:$0xff] %v5146
    %5275 = vst [vmem:[#allocation2 + $0x1b8] sm:$0xff] %v5147
    %5276 = vst [vmem:[#allocation2 + $0x1c0] sm:$0xff] %v5148
    %5277 = vst [vmem:[#allocation2 + $0x1c8] sm:$0xff] %v5149
    %5278 = vst [vmem:[#allocation2 + $0x1d0] sm:$0xff] %v5150
    %5279 = vst [vmem:[#allocation2 + $0x1d8] sm:$0xff] %v5151
    %5280 = vst [vmem:[#allocation2 + $0x1e0] sm:$0xff] %v5152
    %5281 = vst [vmem:[#allocation2 + $0x1e8] sm:$0xff] %v5153
    %5282 = vst [vmem:[#allocation2 + $0x1f0] sm:$0xff] %v5154
    %5283 = vst [vmem:[#allocation2 + $0x1f8] sm:$0xff] %v5155
    %5284 = vst [vmem:[#allocation2 + $0x200] sm:$0xff] %v5156
    %5285 = vst [vmem:[#allocation2 + $0x208] sm:$0xff] %v5157
    %5286 = vst [vmem:[#allocation2 + $0x210] sm:$0xff] %v5158
    %5287 = vst [vmem:[#allocation2 + $0x218] sm:$0xff] %v5159
    %5288 = vst [vmem:[#allocation2 + $0x220] sm:$0xff] %v5160
    %5289 = vst [vmem:[#allocation2 + $0x228] sm:$0xff] %v5161
    %5290 = vst [vmem:[#allocation2 + $0x230] sm:$0xff] %v5162
    %5291 = vst [vmem:[#allocation2 + $0x238] sm:$0xff] %v5163
    %5292 = vst [vmem:[#allocation2 + $0x240] sm:$0xff] %v5164
    %5293 = vst [vmem:[#allocation2 + $0x248] sm:$0xff] %v5165
    %5294 = vst [vmem:[#allocation2 + $0x250] sm:$0xff] %v5166
    %5295 = vst [vmem:[#allocation2 + $0x258] sm:$0xff] %v5167
    %5296 = vst [vmem:[#allocation2 + $0x260] sm:$0xff] %v5168
    %5297 = vst [vmem:[#allocation2 + $0x268] sm:$0xff] %v5169
    %5298 = vst [vmem:[#allocation2 + $0x270] sm:$0xff] %v5170
    %5299 = vst [vmem:[#allocation2 + $0x278] sm:$0xff] %v5171
    %5300 = vst [vmem:[#allocation2 + $0x280] sm:$0xff] %v5172
    %5301 = vst [vmem:[#allocation2 + $0x288] sm:$0xff] %v5173
    %5302 = vst [vmem:[#allocation2 + $0x290] sm:$0xff] %v5174
    %5303 = vst [vmem:[#allocation2 + $0x298] sm:$0xff] %v5175
    %5304 = vst [vmem:[#allocation2 + $0x2a0] sm:$0xff] %v5176
    %5305 = vst [vmem:[#allocation2 + $0x2a8] sm:$0xff] %v5177
    %5306 = vst [vmem:[#allocation2 + $0x2b0] sm:$0xff] %v5178
    %5307 = vst [vmem:[#allocation2 + $0x2b8] sm:$0xff] %v5179
    %5308 = vst [vmem:[#allocation2 + $0x2c0] sm:$0xff] %v5180
    %5309 = vst [vmem:[#allocation2 + $0x2c8] sm:$0xff] %v5181
    %5310 = vst [vmem:[#allocation2 + $0x2d0] sm:$0xff] %v5182
    %5311 = vst [vmem:[#allocation2 + $0x2d8] sm:$0xff] %v5183
    %5312 = vst [vmem:[#allocation2 + $0x2e0] sm:$0xff] %v5184
    %5313 = vst [vmem:[#allocation2 + $0x2e8] sm:$0xff] %v5185
    %5314 = vst [vmem:[#allocation2 + $0x2f0] sm:$0xff] %v5186
    %5315 = vst [vmem:[#allocation2 + $0x2f8] sm:$0xff] %v5187
    %5316 = vst [vmem:[#allocation2 + $0x300] sm:$0xff] %v5188
    %5317 = vst [vmem:[#allocation2 + $0x308] sm:$0xff] %v5189
    %5318 = vst [vmem:[#allocation2 + $0x310] sm:$0xff] %v5190
    %5319 = vst [vmem:[#allocation2 + $0x318] sm:$0xff] %v5191
    %5320 = vst [vmem:[#allocation2 + $0x320] sm:$0xff] %v5192
    %5321 = vst [vmem:[#allocation2 + $0x328] sm:$0xff] %v5193
    %5322 = vst [vmem:[#allocation2 + $0x330] sm:$0xff] %v5194
    %5323 = vst [vmem:[#allocation2 + $0x338] sm:$0xff] %v5195
    %5324 = vst [vmem:[#allocation2 + $0x340] sm:$0xff] %v5196
    %5325 = vst [vmem:[#allocation2 + $0x348] sm:$0xff] %v5197
    %5326 = vst [vmem:[#allocation2 + $0x350] sm:$0xff] %v5198
    %5327 = vst [vmem:[#allocation2 + $0x358] sm:$0xff] %v5199
    %5328 = vst [vmem:[#allocation2 + $0x360] sm:$0xff] %v5200
    %5329 = vst [vmem:[#allocation2 + $0x368] sm:$0xff] %v5201
    %5330 = vst [vmem:[#allocation2 + $0x370] sm:$0xff] %v5202
    %5331 = vst [vmem:[#allocation2 + $0x378] sm:$0xff] %v5203
    %5332 = vst [vmem:[#allocation2 + $0x380] sm:$0xff] %v5204
    %5333 = vst [vmem:[#allocation2 + $0x388] sm:$0xff] %v5205
    %5334 = vst [vmem:[#allocation2 + $0x390] sm:$0xff] %v5206
    %5335 = vst [vmem:[#allocation2 + $0x398] sm:$0xff] %v5207
    %5336 = vst [vmem:[#allocation2 + $0x3a0] sm:$0xff] %v5208
    %5337 = vst [vmem:[#allocation2 + $0x3a8] sm:$0xff] %v5209
    %5338 = vst [vmem:[#allocation2 + $0x3b0] sm:$0xff] %v5210
    %5339 = vst [vmem:[#allocation2 + $0x3b8] sm:$0xff] %v5211
    %5340 = vst [vmem:[#allocation2 + $0x3c0] sm:$0xff] %v5212
    %5341 = vst [vmem:[#allocation2 + $0x3c8] sm:$0xff] %v5213
    %5342 = vst [vmem:[#allocation2 + $0x3d0] sm:$0xff] %v5214
    %5343 = vst [vmem:[#allocation2 + $0x3d8] sm:$0xff] %v5215
    %5344 = vst [vmem:[#allocation2 + $0x3e0] sm:$0xff] %v5216
    %5345 = vst [vmem:[#allocation2 + $0x3e8] sm:$0xff] %v5217
    %5346 = vst [vmem:[#allocation2 + $0x3f0] sm:$0xff] %v5218
    %5347 = vst [vmem:[#allocation2 + $0x3f8] sm:$0xff] %v5219
    %v5348 = vld [vmem:[#allocation2] sm:$0xff]
    %v5349 = vld [vmem:[#allocation2 + $0x8] sm:$0xff]
    %v5350 = vld [vmem:[#allocation2 + $0x10] sm:$0xff]
    %v5351 = vld [vmem:[#allocation2 + $0x18] sm:$0xff]
    %v5352 = vld [vmem:[#allocation2 + $0x20] sm:$0xff]
    %v5353 = vld [vmem:[#allocation2 + $0x28] sm:$0xff]
    %v5354 = vld [vmem:[#allocation2 + $0x30] sm:$0xff]
    %v5355 = vld [vmem:[#allocation2 + $0x38] sm:$0xff]
    %v5356 = vld [vmem:[#allocation2 + $0x40] sm:$0xff]
    %v5357 = vld [vmem:[#allocation2 + $0x48] sm:$0xff]
    %v5358 = vld [vmem:[#allocation2 + $0x50] sm:$0xff]
    %v5359 = vld [vmem:[#allocation2 + $0x58] sm:$0xff]
    %v5360 = vld [vmem:[#allocation2 + $0x60] sm:$0xff]
    %v5361 = vld [vmem:[#allocation2 + $0x68] sm:$0xff]
    %v5362 = vld [vmem:[#allocation2 + $0x70] sm:$0xff]
    %v5363 = vld [vmem:[#allocation2 + $0x78] sm:$0xff]
    %v5364 = vld [vmem:[#allocation2 + $0x80] sm:$0xff]
    %v5365 = vld [vmem:[#allocation2 + $0x88] sm:$0xff]
    %v5366 = vld [vmem:[#allocation2 + $0x90] sm:$0xff]
    %v5367 = vld [vmem:[#allocation2 + $0x98] sm:$0xff]
    %v5368 = vld [vmem:[#allocation2 + $0xa0] sm:$0xff]
    %v5369 = vld [vmem:[#allocation2 + $0xa8] sm:$0xff]
    %v5370 = vld [vmem:[#allocation2 + $0xb0] sm:$0xff]
    %v5371 = vld [vmem:[#allocation2 + $0xb8] sm:$0xff]
    %v5372 = vld [vmem:[#allocation2 + $0xc0] sm:$0xff]
    %v5373 = vld [vmem:[#allocation2 + $0xc8] sm:$0xff]
    %v5374 = vld [vmem:[#allocation2 + $0xd0] sm:$0xff]
    %v5375 = vld [vmem:[#allocation2 + $0xd8] sm:$0xff]
    %v5376 = vld [vmem:[#allocation2 + $0xe0] sm:$0xff]
    %v5377 = vld [vmem:[#allocation2 + $0xe8] sm:$0xff]
    %v5378 = vld [vmem:[#allocation2 + $0xf0] sm:$0xff]
    %v5379 = vld [vmem:[#allocation2 + $0xf8] sm:$0xff]
    %v5380 = vld [vmem:[#allocation2 + $0x100] sm:$0xff]
    %v5381 = vld [vmem:[#allocation2 + $0x108] sm:$0xff]
    %v5382 = vld [vmem:[#allocation2 + $0x110] sm:$0xff]
    %v5383 = vld [vmem:[#allocation2 + $0x118] sm:$0xff]
    %v5384 = vld [vmem:[#allocation2 + $0x120] sm:$0xff]
    %v5385 = vld [vmem:[#allocation2 + $0x128] sm:$0xff]
    %v5386 = vld [vmem:[#allocation2 + $0x130] sm:$0xff]
    %v5387 = vld [vmem:[#allocation2 + $0x138] sm:$0xff]
    %v5388 = vld [vmem:[#allocation2 + $0x140] sm:$0xff]
    %v5389 = vld [vmem:[#allocation2 + $0x148] sm:$0xff]
    %v5390 = vld [vmem:[#allocation2 + $0x150] sm:$0xff]
    %v5391 = vld [vmem:[#allocation2 + $0x158] sm:$0xff]
    %v5392 = vld [vmem:[#allocation2 + $0x160] sm:$0xff]
    %v5393 = vld [vmem:[#allocation2 + $0x168] sm:$0xff]
    %v5394 = vld [vmem:[#allocation2 + $0x170] sm:$0xff]
    %v5395 = vld [vmem:[#allocation2 + $0x178] sm:$0xff]
    %v5396 = vld [vmem:[#allocation2 + $0x180] sm:$0xff]
    %v5397 = vld [vmem:[#allocation2 + $0x188] sm:$0xff]
    %v5398 = vld [vmem:[#allocation2 + $0x190] sm:$0xff]
    %v5399 = vld [vmem:[#allocation2 + $0x198] sm:$0xff]
    %v5400 = vld [vmem:[#allocation2 + $0x1a0] sm:$0xff]
    %v5401 = vld [vmem:[#allocation2 + $0x1a8] sm:$0xff]
    %v5402 = vld [vmem:[#allocation2 + $0x1b0] sm:$0xff]
    %v5403 = vld [vmem:[#allocation2 + $0x1b8] sm:$0xff]
    %v5404 = vld [vmem:[#allocation2 + $0x1c0] sm:$0xff]
    %v5405 = vld [vmem:[#allocation2 + $0x1c8] sm:$0xff]
    %v5406 = vld [vmem:[#allocation2 + $0x1d0] sm:$0xff]
    %v5407 = vld [vmem:[#allocation2 + $0x1d8] sm:$0xff]
    %v5408 = vld [vmem:[#allocation2 + $0x1e0] sm:$0xff]
    %v5409 = vld [vmem:[#allocation2 + $0x1e8] sm:$0xff]
    %v5410 = vld [vmem:[#allocation2 + $0x1f0] sm:$0xff]
    %v5411 = vld [vmem:[#allocation2 + $0x1f8] sm:$0xff]
    %v5412 = vld [vmem:[#allocation2 + $0x200] sm:$0xff]
    %v5413 = vld [vmem:[#allocation2 + $0x208] sm:$0xff]
    %v5414 = vld [vmem:[#allocation2 + $0x210] sm:$0xff]
    %v5415 = vld [vmem:[#allocation2 + $0x218] sm:$0xff]
    %v5416 = vld [vmem:[#allocation2 + $0x220] sm:$0xff]
    %v5417 = vld [vmem:[#allocation2 + $0x228] sm:$0xff]
    %v5418 = vld [vmem:[#allocation2 + $0x230] sm:$0xff]
    %v5419 = vld [vmem:[#allocation2 + $0x238] sm:$0xff]
    %v5420 = vld [vmem:[#allocation2 + $0x240] sm:$0xff]
    %v5421 = vld [vmem:[#allocation2 + $0x248] sm:$0xff]
    %v5422 = vld [vmem:[#allocation2 + $0x250] sm:$0xff]
    %v5423 = vld [vmem:[#allocation2 + $0x258] sm:$0xff]
    %v5424 = vld [vmem:[#allocation2 + $0x260] sm:$0xff]
    %v5425 = vld [vmem:[#allocation2 + $0x268] sm:$0xff]
    %v5426 = vld [vmem:[#allocation2 + $0x270] sm:$0xff]
    %v5427 = vld [vmem:[#allocation2 + $0x278] sm:$0xff]
    %v5428 = vld [vmem:[#allocation2 + $0x280] sm:$0xff]
    %v5429 = vld [vmem:[#allocation2 + $0x288] sm:$0xff]
    %v5430 = vld [vmem:[#allocation2 + $0x290] sm:$0xff]
    %v5431 = vld [vmem:[#allocation2 + $0x298] sm:$0xff]
    %v5432 = vld [vmem:[#allocation2 + $0x2a0] sm:$0xff]
    %v5433 = vld [vmem:[#allocation2 + $0x2a8] sm:$0xff]
    %v5434 = vld [vmem:[#allocation2 + $0x2b0] sm:$0xff]
    %v5435 = vld [vmem:[#allocation2 + $0x2b8] sm:$0xff]
    %v5436 = vld [vmem:[#allocation2 + $0x2c0] sm:$0xff]
    %v5437 = vld [vmem:[#allocation2 + $0x2c8] sm:$0xff]
    %v5438 = vld [vmem:[#allocation2 + $0x2d0] sm:$0xff]
    %v5439 = vld [vmem:[#allocation2 + $0x2d8] sm:$0xff]
    %v5440 = vld [vmem:[#allocation2 + $0x2e0] sm:$0xff]
    %v5441 = vld [vmem:[#allocation2 + $0x2e8] sm:$0xff]
    %v5442 = vld [vmem:[#allocation2 + $0x2f0] sm:$0xff]
    %v5443 = vld [vmem:[#allocation2 + $0x2f8] sm:$0xff]
    %v5444 = vld [vmem:[#allocation2 + $0x300] sm:$0xff]
    %v5445 = vld [vmem:[#allocation2 + $0x308] sm:$0xff]
    %v5446 = vld [vmem:[#allocation2 + $0x310] sm:$0xff]
    %v5447 = vld [vmem:[#allocation2 + $0x318] sm:$0xff]
    %v5448 = vld [vmem:[#allocation2 + $0x320] sm:$0xff]
    %v5449 = vld [vmem:[#allocation2 + $0x328] sm:$0xff]
    %v5450 = vld [vmem:[#allocation2 + $0x330] sm:$0xff]
    %v5451 = vld [vmem:[#allocation2 + $0x338] sm:$0xff]
    %v5452 = vld [vmem:[#allocation2 + $0x340] sm:$0xff]
    %v5453 = vld [vmem:[#allocation2 + $0x348] sm:$0xff]
    %v5454 = vld [vmem:[#allocation2 + $0x350] sm:$0xff]
    %v5455 = vld [vmem:[#allocation2 + $0x358] sm:$0xff]
    %v5456 = vld [vmem:[#allocation2 + $0x360] sm:$0xff]
    %v5457 = vld [vmem:[#allocation2 + $0x368] sm:$0xff]
    %v5458 = vld [vmem:[#allocation2 + $0x370] sm:$0xff]
    %v5459 = vld [vmem:[#allocation2 + $0x378] sm:$0xff]
    %v5460 = vld [vmem:[#allocation2 + $0x380] sm:$0xff]
    %v5461 = vld [vmem:[#allocation2 + $0x388] sm:$0xff]
    %v5462 = vld [vmem:[#allocation2 + $0x390] sm:$0xff]
    %v5463 = vld [vmem:[#allocation2 + $0x398] sm:$0xff]
    %v5464 = vld [vmem:[#allocation2 + $0x3a0] sm:$0xff]
    %v5465 = vld [vmem:[#allocation2 + $0x3a8] sm:$0xff]
    %v5466 = vld [vmem:[#allocation2 + $0x3b0] sm:$0xff]
    %v5467 = vld [vmem:[#allocation2 + $0x3b8] sm:$0xff]
    %v5468 = vld [vmem:[#allocation2 + $0x3c0] sm:$0xff]
    %v5469 = vld [vmem:[#allocation2 + $0x3c8] sm:$0xff]
    %v5470 = vld [vmem:[#allocation2 + $0x3d0] sm:$0xff]
    %v5471 = vld [vmem:[#allocation2 + $0x3d8] sm:$0xff]
    %v5472 = vld [vmem:[#allocation2 + $0x3e0] sm:$0xff]
    %v5473 = vld [vmem:[#allocation2 + $0x3e8] sm:$0xff]
    %v5474 = vld [vmem:[#allocation2 + $0x3f0] sm:$0xff]
    %v5475 = vld [vmem:[#allocation2 + $0x3f8] sm:$0xff]
    %v5476 = vld [vmem:[#allocation9] sm:$0xff]
    %v5477 = vld [vmem:[#allocation9 + $0x8] sm:$0xff]
    %v5478 = vld [vmem:[#allocation9 + $0x10] sm:$0xff]
    %v5479 = vld [vmem:[#allocation9 + $0x18] sm:$0xff]
    %v5480 = vld [vmem:[#allocation9 + $0x20] sm:$0xff]
    %v5481 = vld [vmem:[#allocation9 + $0x28] sm:$0xff]
    %v5482 = vld [vmem:[#allocation9 + $0x30] sm:$0xff]
    %v5483 = vld [vmem:[#allocation9 + $0x38] sm:$0xff]
    %v5484 = vld [vmem:[#allocation9 + $0x40] sm:$0xff]
    %v5485 = vld [vmem:[#allocation9 + $0x48] sm:$0xff]
    %v5486 = vld [vmem:[#allocation9 + $0x50] sm:$0xff]
    %v5487 = vld [vmem:[#allocation9 + $0x58] sm:$0xff]
    %v5488 = vld [vmem:[#allocation9 + $0x60] sm:$0xff]
    %v5489 = vld [vmem:[#allocation9 + $0x68] sm:$0xff]
    %v5490 = vld [vmem:[#allocation9 + $0x70] sm:$0xff]
    %v5491 = vld [vmem:[#allocation9 + $0x78] sm:$0xff]
    %v5492 = vld [vmem:[#allocation9 + $0x80] sm:$0xff]
    %v5493 = vld [vmem:[#allocation9 + $0x88] sm:$0xff]
    %v5494 = vld [vmem:[#allocation9 + $0x90] sm:$0xff]
    %v5495 = vld [vmem:[#allocation9 + $0x98] sm:$0xff]
    %v5496 = vld [vmem:[#allocation9 + $0xa0] sm:$0xff]
    %v5497 = vld [vmem:[#allocation9 + $0xa8] sm:$0xff]
    %v5498 = vld [vmem:[#allocation9 + $0xb0] sm:$0xff]
    %v5499 = vld [vmem:[#allocation9 + $0xb8] sm:$0xff]
    %v5500 = vld [vmem:[#allocation9 + $0xc0] sm:$0xff]
    %v5501 = vld [vmem:[#allocation9 + $0xc8] sm:$0xff]
    %v5502 = vld [vmem:[#allocation9 + $0xd0] sm:$0xff]
    %v5503 = vld [vmem:[#allocation9 + $0xd8] sm:$0xff]
    %v5504 = vld [vmem:[#allocation9 + $0xe0] sm:$0xff]
    %v5505 = vld [vmem:[#allocation9 + $0xe8] sm:$0xff]
    %v5506 = vld [vmem:[#allocation9 + $0xf0] sm:$0xff]
    %v5507 = vld [vmem:[#allocation9 + $0xf8] sm:$0xff]
    %v5508 = vld [vmem:[#allocation9 + $0x100] sm:$0xff]
    %v5509 = vld [vmem:[#allocation9 + $0x108] sm:$0xff]
    %v5510 = vld [vmem:[#allocation9 + $0x110] sm:$0xff]
    %v5511 = vld [vmem:[#allocation9 + $0x118] sm:$0xff]
    %v5512 = vld [vmem:[#allocation9 + $0x120] sm:$0xff]
    %v5513 = vld [vmem:[#allocation9 + $0x128] sm:$0xff]
    %v5514 = vld [vmem:[#allocation9 + $0x130] sm:$0xff]
    %v5515 = vld [vmem:[#allocation9 + $0x138] sm:$0xff]
    %v5516 = vld [vmem:[#allocation9 + $0x140] sm:$0xff]
    %v5517 = vld [vmem:[#allocation9 + $0x148] sm:$0xff]
    %v5518 = vld [vmem:[#allocation9 + $0x150] sm:$0xff]
    %v5519 = vld [vmem:[#allocation9 + $0x158] sm:$0xff]
    %v5520 = vld [vmem:[#allocation9 + $0x160] sm:$0xff]
    %v5521 = vld [vmem:[#allocation9 + $0x168] sm:$0xff]
    %v5522 = vld [vmem:[#allocation9 + $0x170] sm:$0xff]
    %v5523 = vld [vmem:[#allocation9 + $0x178] sm:$0xff]
    %v5524 = vld [vmem:[#allocation9 + $0x180] sm:$0xff]
    %v5525 = vld [vmem:[#allocation9 + $0x188] sm:$0xff]
    %v5526 = vld [vmem:[#allocation9 + $0x190] sm:$0xff]
    %v5527 = vld [vmem:[#allocation9 + $0x198] sm:$0xff]
    %v5528 = vld [vmem:[#allocation9 + $0x1a0] sm:$0xff]
    %v5529 = vld [vmem:[#allocation9 + $0x1a8] sm:$0xff]
    %v5530 = vld [vmem:[#allocation9 + $0x1b0] sm:$0xff]
    %v5531 = vld [vmem:[#allocation9 + $0x1b8] sm:$0xff]
    %v5532 = vld [vmem:[#allocation9 + $0x1c0] sm:$0xff]
    %v5533 = vld [vmem:[#allocation9 + $0x1c8] sm:$0xff]
    %v5534 = vld [vmem:[#allocation9 + $0x1d0] sm:$0xff]
    %v5535 = vld [vmem:[#allocation9 + $0x1d8] sm:$0xff]
    %v5536 = vld [vmem:[#allocation9 + $0x1e0] sm:$0xff]
    %v5537 = vld [vmem:[#allocation9 + $0x1e8] sm:$0xff]
    %v5538 = vld [vmem:[#allocation9 + $0x1f0] sm:$0xff]
    %v5539 = vld [vmem:[#allocation9 + $0x1f8] sm:$0xff]
    %v5540 = vld [vmem:[#allocation9 + $0x200] sm:$0xff]
    %v5541 = vld [vmem:[#allocation9 + $0x208] sm:$0xff]
    %v5542 = vld [vmem:[#allocation9 + $0x210] sm:$0xff]
    %v5543 = vld [vmem:[#allocation9 + $0x218] sm:$0xff]
    %v5544 = vld [vmem:[#allocation9 + $0x220] sm:$0xff]
    %v5545 = vld [vmem:[#allocation9 + $0x228] sm:$0xff]
    %v5546 = vld [vmem:[#allocation9 + $0x230] sm:$0xff]
    %v5547 = vld [vmem:[#allocation9 + $0x238] sm:$0xff]
    %v5548 = vld [vmem:[#allocation9 + $0x240] sm:$0xff]
    %v5549 = vld [vmem:[#allocation9 + $0x248] sm:$0xff]
    %v5550 = vld [vmem:[#allocation9 + $0x250] sm:$0xff]
    %v5551 = vld [vmem:[#allocation9 + $0x258] sm:$0xff]
    %v5552 = vld [vmem:[#allocation9 + $0x260] sm:$0xff]
    %v5553 = vld [vmem:[#allocation9 + $0x268] sm:$0xff]
    %v5554 = vld [vmem:[#allocation9 + $0x270] sm:$0xff]
    %v5555 = vld [vmem:[#allocation9 + $0x278] sm:$0xff]
    %v5556 = vld [vmem:[#allocation9 + $0x280] sm:$0xff]
    %v5557 = vld [vmem:[#allocation9 + $0x288] sm:$0xff]
    %v5558 = vld [vmem:[#allocation9 + $0x290] sm:$0xff]
    %v5559 = vld [vmem:[#allocation9 + $0x298] sm:$0xff]
    %v5560 = vld [vmem:[#allocation9 + $0x2a0] sm:$0xff]
    %v5561 = vld [vmem:[#allocation9 + $0x2a8] sm:$0xff]
    %v5562 = vld [vmem:[#allocation9 + $0x2b0] sm:$0xff]
    %v5563 = vld [vmem:[#allocation9 + $0x2b8] sm:$0xff]
    %v5564 = vld [vmem:[#allocation9 + $0x2c0] sm:$0xff]
    %v5565 = vld [vmem:[#allocation9 + $0x2c8] sm:$0xff]
    %v5566 = vld [vmem:[#allocation9 + $0x2d0] sm:$0xff]
    %v5567 = vld [vmem:[#allocation9 + $0x2d8] sm:$0xff]
    %v5568 = vld [vmem:[#allocation9 + $0x2e0] sm:$0xff]
    %v5569 = vld [vmem:[#allocation9 + $0x2e8] sm:$0xff]
    %v5570 = vld [vmem:[#allocation9 + $0x2f0] sm:$0xff]
    %v5571 = vld [vmem:[#allocation9 + $0x2f8] sm:$0xff]
    %v5572 = vld [vmem:[#allocation9 + $0x300] sm:$0xff]
    %v5573 = vld [vmem:[#allocation9 + $0x308] sm:$0xff]
    %v5574 = vld [vmem:[#allocation9 + $0x310] sm:$0xff]
    %v5575 = vld [vmem:[#allocation9 + $0x318] sm:$0xff]
    %v5576 = vld [vmem:[#allocation9 + $0x320] sm:$0xff]
    %v5577 = vld [vmem:[#allocation9 + $0x328] sm:$0xff]
    %v5578 = vld [vmem:[#allocation9 + $0x330] sm:$0xff]
    %v5579 = vld [vmem:[#allocation9 + $0x338] sm:$0xff]
    %v5580 = vld [vmem:[#allocation9 + $0x340] sm:$0xff]
    %v5581 = vld [vmem:[#allocation9 + $0x348] sm:$0xff]
    %v5582 = vld [vmem:[#allocation9 + $0x350] sm:$0xff]
    %v5583 = vld [vmem:[#allocation9 + $0x358] sm:$0xff]
    %v5584 = vld [vmem:[#allocation9 + $0x360] sm:$0xff]
    %v5585 = vld [vmem:[#allocation9 + $0x368] sm:$0xff]
    %v5586 = vld [vmem:[#allocation9 + $0x370] sm:$0xff]
    %v5587 = vld [vmem:[#allocation9 + $0x378] sm:$0xff]
    %v5588 = vld [vmem:[#allocation9 + $0x380] sm:$0xff]
    %v5589 = vld [vmem:[#allocation9 + $0x388] sm:$0xff]
    %v5590 = vld [vmem:[#allocation9 + $0x390] sm:$0xff]
    %v5591 = vld [vmem:[#allocation9 + $0x398] sm:$0xff]
    %v5592 = vld [vmem:[#allocation9 + $0x3a0] sm:$0xff]
    %v5593 = vld [vmem:[#allocation9 + $0x3a8] sm:$0xff]
    %v5594 = vld [vmem:[#allocation9 + $0x3b0] sm:$0xff]
    %v5595 = vld [vmem:[#allocation9 + $0x3b8] sm:$0xff]
    %v5596 = vld [vmem:[#allocation9 + $0x3c0] sm:$0xff]
    %v5597 = vld [vmem:[#allocation9 + $0x3c8] sm:$0xff]
    %v5598 = vld [vmem:[#allocation9 + $0x3d0] sm:$0xff]
    %v5599 = vld [vmem:[#allocation9 + $0x3d8] sm:$0xff]
    %v5600 = vld [vmem:[#allocation9 + $0x3e0] sm:$0xff]
    %v5601 = vld [vmem:[#allocation9 + $0x3e8] sm:$0xff]
    %v5602 = vld [vmem:[#allocation9 + $0x3f0] sm:$0xff]
    %v5603 = vld [vmem:[#allocation9 + $0x3f8] sm:$0xff]
    %v5604 = vld [vmem:[#allocation11] sm:$0xff]
    %v5605 = vld [vmem:[#allocation11 + $0x8] sm:$0xff]
    %v5606 = vld [vmem:[#allocation11 + $0x10] sm:$0xff]
    %v5607 = vld [vmem:[#allocation11 + $0x18] sm:$0xff]
    %v5608 = vld [vmem:[#allocation11 + $0x20] sm:$0xff]
    %v5609 = vld [vmem:[#allocation11 + $0x28] sm:$0xff]
    %v5610 = vld [vmem:[#allocation11 + $0x30] sm:$0xff]
    %v5611 = vld [vmem:[#allocation11 + $0x38] sm:$0xff]
    %v5612 = vld [vmem:[#allocation11 + $0x40] sm:$0xff]
    %v5613 = vld [vmem:[#allocation11 + $0x48] sm:$0xff]
    %v5614 = vld [vmem:[#allocation11 + $0x50] sm:$0xff]
    %v5615 = vld [vmem:[#allocation11 + $0x58] sm:$0xff]
    %v5616 = vld [vmem:[#allocation11 + $0x60] sm:$0xff]
    %v5617 = vld [vmem:[#allocation11 + $0x68] sm:$0xff]
    %v5618 = vld [vmem:[#allocation11 + $0x70] sm:$0xff]
    %v5619 = vld [vmem:[#allocation11 + $0x78] sm:$0xff]
    %5620 = vmatpush.msra.mxu0 %v5491
    %5621 = vmatpush.msra.mxu0 %v5490
    %5622 = vmatpush.msra.mxu0 %v5489
    %5623 = vmatpush.msra.mxu0 %v5488
    %5624 = vmatpush.msra.mxu0 %v5487
    %5625 = vmatpush.msra.mxu0 %v5486
    %5626 = vmatpush.msra.mxu0 %v5485
    %5627 = vmatpush.msra.mxu0 %v5484
    %5628 = vmatpush.msra.mxu0 %v5483
    %5629 = vmatpush.msra.mxu0 %v5482
    %5630 = vmatpush.msra.mxu0 %v5481
    %5631 = vmatpush.msra.mxu0 %v5480
    %5632 = vmatpush.msra.mxu0 %v5479
    %5633 = vmatpush.msra.mxu0 %v5478
    %5634 = vmatpush.msra.mxu0 %v5477
    %5635 = vmatpush.msra.mxu0 %v5476
    %5636 = vmatmul.f32.gmra.mxu0 %v5348
    %v5637 = vpop.f32.mrf.mxu0
    %v5638 = vadd.f32 %v5604, %v5637
    %5639 = vmatmul.f32.gmra.mxu0 %v5356
    %v5640 = vpop.f32.mrf.mxu0
    %v5641 = vadd.f32 %v5605, %v5640
    %5642 = vmatmul.f32.gmra.mxu0 %v5364
    %v5643 = vpop.f32.mrf.mxu0
    %v5644 = vadd.f32 %v5606, %v5643
    %5645 = vmatmul.f32.gmra.mxu0 %v5372
    %v5646 = vpop.f32.mrf.mxu0
    %v5647 = vadd.f32 %v5607, %v5646
    %5648 = vmatmul.f32.gmra.mxu0 %v5380
    %v5649 = vpop.f32.mrf.mxu0
    %v5650 = vadd.f32 %v5608, %v5649
    %5651 = vmatmul.f32.gmra.mxu0 %v5388
    %v5652 = vpop.f32.mrf.mxu0
    %v5653 = vadd.f32 %v5609, %v5652
    %5654 = vmatmul.f32.gmra.mxu0 %v5396
    %v5655 = vpop.f32.mrf.mxu0
    %v5656 = vadd.f32 %v5610, %v5655
    %5657 = vmatmul.f32.gmra.mxu0 %v5404
    %v5658 = vpop.f32.mrf.mxu0
    %v5659 = vadd.f32 %v5611, %v5658
    %5660 = vmatmul.f32.gmra.mxu0 %v5412
    %v5661 = vpop.f32.mrf.mxu0
    %v5662 = vadd.f32 %v5612, %v5661
    %5663 = vmatmul.f32.gmra.mxu0 %v5420
    %v5664 = vpop.f32.mrf.mxu0
    %v5665 = vadd.f32 %v5613, %v5664
    %5666 = vmatmul.f32.gmra.mxu0 %v5428
    %v5667 = vpop.f32.mrf.mxu0
    %v5668 = vadd.f32 %v5614, %v5667
    %5669 = vmatmul.f32.gmra.mxu0 %v5436
    %v5670 = vpop.f32.mrf.mxu0
    %v5671 = vadd.f32 %v5615, %v5670
    %5672 = vmatmul.f32.gmra.mxu0 %v5444
    %v5673 = vpop.f32.mrf.mxu0
    %v5674 = vadd.f32 %v5616, %v5673
    %5675 = vmatmul.f32.gmra.mxu0 %v5452
    %v5676 = vpop.f32.mrf.mxu0
    %v5677 = vadd.f32 %v5617, %v5676
    %5678 = vmatmul.f32.gmra.mxu0 %v5460
    %v5679 = vpop.f32.mrf.mxu0
    %v5680 = vadd.f32 %v5618, %v5679
    %5681 = vmatmul.f32.gmra.mxu0 %v5468
    %v5682 = vpop.f32.mrf.mxu0
    %v5683 = vadd.f32 %v5619, %v5682
    %5684 = vdwg.mxu0
    %5685 = vmatpush.msra.mxu0 %v5507
    %5686 = vmatpush.msra.mxu0 %v5506
    %5687 = vmatpush.msra.mxu0 %v5505
    %5688 = vmatpush.msra.mxu0 %v5504
    %5689 = vmatpush.msra.mxu0 %v5503
    %5690 = vmatpush.msra.mxu0 %v5502
    %5691 = vmatpush.msra.mxu0 %v5501
    %5692 = vmatpush.msra.mxu0 %v5500
    %5693 = vmatpush.msra.mxu0 %v5499
    %5694 = vmatpush.msra.mxu0 %v5498
    %5695 = vmatpush.msra.mxu0 %v5497
    %5696 = vmatpush.msra.mxu0 %v5496
    %5697 = vmatpush.msra.mxu0 %v5495
    %5698 = vmatpush.msra.mxu0 %v5494
    %5699 = vmatpush.msra.mxu0 %v5493
    %5700 = vmatpush.msra.mxu0 %v5492
    %5701 = vmatmul.f32.gmra.mxu0 %v5349
    %v5702 = vpop.f32.mrf.mxu0
    %v5703 = vadd.f32 %v5638, %v5702
    %5704 = vmatmul.f32.gmra.mxu0 %v5357
    %v5705 = vpop.f32.mrf.mxu0
    %v5706 = vadd.f32 %v5641, %v5705
    %5707 = vmatmul.f32.gmra.mxu0 %v5365
    %v5708 = vpop.f32.mrf.mxu0
    %v5709 = vadd.f32 %v5644, %v5708
    %5710 = vmatmul.f32.gmra.mxu0 %v5373
    %v5711 = vpop.f32.mrf.mxu0
    %v5712 = vadd.f32 %v5647, %v5711
    %5713 = vmatmul.f32.gmra.mxu0 %v5381
    %v5714 = vpop.f32.mrf.mxu0
    %v5715 = vadd.f32 %v5650, %v5714
    %5716 = vmatmul.f32.gmra.mxu0 %v5389
    %v5717 = vpop.f32.mrf.mxu0
    %v5718 = vadd.f32 %v5653, %v5717
    %5719 = vmatmul.f32.gmra.mxu0 %v5397
    %v5720 = vpop.f32.mrf.mxu0
    %v5721 = vadd.f32 %v5656, %v5720
    %5722 = vmatmul.f32.gmra.mxu0 %v5405
    %v5723 = vpop.f32.mrf.mxu0
    %v5724 = vadd.f32 %v5659, %v5723
    %5725 = vmatmul.f32.gmra.mxu0 %v5413
    %v5726 = vpop.f32.mrf.mxu0
    %v5727 = vadd.f32 %v5662, %v5726
    %5728 = vmatmul.f32.gmra.mxu0 %v5421
    %v5729 = vpop.f32.mrf.mxu0
    %v5730 = vadd.f32 %v5665, %v5729
    %5731 = vmatmul.f32.gmra.mxu0 %v5429
    %v5732 = vpop.f32.mrf.mxu0
    %v5733 = vadd.f32 %v5668, %v5732
    %5734 = vmatmul.f32.gmra.mxu0 %v5437
    %v5735 = vpop.f32.mrf.mxu0
    %v5736 = vadd.f32 %v5671, %v5735
    %5737 = vmatmul.f32.gmra.mxu0 %v5445
    %v5738 = vpop.f32.mrf.mxu0
    %v5739 = vadd.f32 %v5674, %v5738
    %5740 = vmatmul.f32.gmra.mxu0 %v5453
    %v5741 = vpop.f32.mrf.mxu0
    %v5742 = vadd.f32 %v5677, %v5741
    %5743 = vmatmul.f32.gmra.mxu0 %v5461
    %v5744 = vpop.f32.mrf.mxu0
    %v5745 = vadd.f32 %v5680, %v5744
    %5746 = vmatmul.f32.gmra.mxu0 %v5469
    %v5747 = vpop.f32.mrf.mxu0
    %v5748 = vadd.f32 %v5683, %v5747
    %5749 = vdwg.mxu0
    %5750 = vmatpush.msra.mxu0 %v5523
    %5751 = vmatpush.msra.mxu0 %v5522
    %5752 = vmatpush.msra.mxu0 %v5521
    %5753 = vmatpush.msra.mxu0 %v5520
    %5754 = vmatpush.msra.mxu0 %v5519
    %5755 = vmatpush.msra.mxu0 %v5518
    %5756 = vmatpush.msra.mxu0 %v5517
    %5757 = vmatpush.msra.mxu0 %v5516
    %5758 = vmatpush.msra.mxu0 %v5515
    %5759 = vmatpush.msra.mxu0 %v5514
    %5760 = vmatpush.msra.mxu0 %v5513
    %5761 = vmatpush.msra.mxu0 %v5512
    %5762 = vmatpush.msra.mxu0 %v5511
    %5763 = vmatpush.msra.mxu0 %v5510
    %5764 = vmatpush.msra.mxu0 %v5509
    %5765 = vmatpush.msra.mxu0 %v5508
    %5766 = vmatmul.f32.gmra.mxu0 %v5350
    %v5767 = vpop.f32.mrf.mxu0
    %v5768 = vadd.f32 %v5703, %v5767
    %5769 = vmatmul.f32.gmra.mxu0 %v5358
    %v5770 = vpop.f32.mrf.mxu0
    %v5771 = vadd.f32 %v5706, %v5770
    %5772 = vmatmul.f32.gmra.mxu0 %v5366
    %v5773 = vpop.f32.mrf.mxu0
    %v5774 = vadd.f32 %v5709, %v5773
    %5775 = vmatmul.f32.gmra.mxu0 %v5374
    %v5776 = vpop.f32.mrf.mxu0
    %v5777 = vadd.f32 %v5712, %v5776
    %5778 = vmatmul.f32.gmra.mxu0 %v5382
    %v5779 = vpop.f32.mrf.mxu0
    %v5780 = vadd.f32 %v5715, %v5779
    %5781 = vmatmul.f32.gmra.mxu0 %v5390
    %v5782 = vpop.f32.mrf.mxu0
    %v5783 = vadd.f32 %v5718, %v5782
    %5784 = vmatmul.f32.gmra.mxu0 %v5398
    %v5785 = vpop.f32.mrf.mxu0
    %v5786 = vadd.f32 %v5721, %v5785
    %5787 = vmatmul.f32.gmra.mxu0 %v5406
    %v5788 = vpop.f32.mrf.mxu0
    %v5789 = vadd.f32 %v5724, %v5788
    %5790 = vmatmul.f32.gmra.mxu0 %v5414
    %v5791 = vpop.f32.mrf.mxu0
    %v5792 = vadd.f32 %v5727, %v5791
    %5793 = vmatmul.f32.gmra.mxu0 %v5422
    %v5794 = vpop.f32.mrf.mxu0
    %v5795 = vadd.f32 %v5730, %v5794
    %5796 = vmatmul.f32.gmra.mxu0 %v5430
    %v5797 = vpop.f32.mrf.mxu0
    %v5798 = vadd.f32 %v5733, %v5797
    %5799 = vmatmul.f32.gmra.mxu0 %v5438
    %v5800 = vpop.f32.mrf.mxu0
    %v5801 = vadd.f32 %v5736, %v5800
    %5802 = vmatmul.f32.gmra.mxu0 %v5446
    %v5803 = vpop.f32.mrf.mxu0
    %v5804 = vadd.f32 %v5739, %v5803
    %5805 = vmatmul.f32.gmra.mxu0 %v5454
    %v5806 = vpop.f32.mrf.mxu0
    %v5807 = vadd.f32 %v5742, %v5806
    %5808 = vmatmul.f32.gmra.mxu0 %v5462
    %v5809 = vpop.f32.mrf.mxu0
    %v5810 = vadd.f32 %v5745, %v5809
    %5811 = vmatmul.f32.gmra.mxu0 %v5470
    %v5812 = vpop.f32.mrf.mxu0
    %v5813 = vadd.f32 %v5748, %v5812
    %5814 = vdwg.mxu0
    %5815 = vmatpush.msra.mxu0 %v5539
    %5816 = vmatpush.msra.mxu0 %v5538
    %5817 = vmatpush.msra.mxu0 %v5537
    %5818 = vmatpush.msra.mxu0 %v5536
    %5819 = vmatpush.msra.mxu0 %v5535
    %5820 = vmatpush.msra.mxu0 %v5534
    %5821 = vmatpush.msra.mxu0 %v5533
    %5822 = vmatpush.msra.mxu0 %v5532
    %5823 = vmatpush.msra.mxu0 %v5531
    %5824 = vmatpush.msra.mxu0 %v5530
    %5825 = vmatpush.msra.mxu0 %v5529
    %5826 = vmatpush.msra.mxu0 %v5528
    %5827 = vmatpush.msra.mxu0 %v5527
    %5828 = vmatpush.msra.mxu0 %v5526
    %5829 = vmatpush.msra.mxu0 %v5525
    %5830 = vmatpush.msra.mxu0 %v5524
    %5831 = vmatmul.f32.gmra.mxu0 %v5351
    %v5832 = vpop.f32.mrf.mxu0
    %v5833 = vadd.f32 %v5768, %v5832
    %5834 = vmatmul.f32.gmra.mxu0 %v5359
    %v5835 = vpop.f32.mrf.mxu0
    %v5836 = vadd.f32 %v5771, %v5835
    %5837 = vmatmul.f32.gmra.mxu0 %v5367
    %v5838 = vpop.f32.mrf.mxu0
    %v5839 = vadd.f32 %v5774, %v5838
    %5840 = vmatmul.f32.gmra.mxu0 %v5375
    %v5841 = vpop.f32.mrf.mxu0
    %v5842 = vadd.f32 %v5777, %v5841
    %5843 = vmatmul.f32.gmra.mxu0 %v5383
    %v5844 = vpop.f32.mrf.mxu0
    %v5845 = vadd.f32 %v5780, %v5844
    %5846 = vmatmul.f32.gmra.mxu0 %v5391
    %v5847 = vpop.f32.mrf.mxu0
    %v5848 = vadd.f32 %v5783, %v5847
    %5849 = vmatmul.f32.gmra.mxu0 %v5399
    %v5850 = vpop.f32.mrf.mxu0
    %v5851 = vadd.f32 %v5786, %v5850
    %5852 = vmatmul.f32.gmra.mxu0 %v5407
    %v5853 = vpop.f32.mrf.mxu0
    %v5854 = vadd.f32 %v5789, %v5853
    %5855 = vmatmul.f32.gmra.mxu0 %v5415
    %v5856 = vpop.f32.mrf.mxu0
    %v5857 = vadd.f32 %v5792, %v5856
    %5858 = vmatmul.f32.gmra.mxu0 %v5423
    %v5859 = vpop.f32.mrf.mxu0
    %v5860 = vadd.f32 %v5795, %v5859
    %5861 = vmatmul.f32.gmra.mxu0 %v5431
    %v5862 = vpop.f32.mrf.mxu0
    %v5863 = vadd.f32 %v5798, %v5862
    %5864 = vmatmul.f32.gmra.mxu0 %v5439
    %v5865 = vpop.f32.mrf.mxu0
    %v5866 = vadd.f32 %v5801, %v5865
    %5867 = vmatmul.f32.gmra.mxu0 %v5447
    %v5868 = vpop.f32.mrf.mxu0
    %v5869 = vadd.f32 %v5804, %v5868
    %5870 = vmatmul.f32.gmra.mxu0 %v5455
    %v5871 = vpop.f32.mrf.mxu0
    %v5872 = vadd.f32 %v5807, %v5871
    %5873 = vmatmul.f32.gmra.mxu0 %v5463
    %v5874 = vpop.f32.mrf.mxu0
    %v5875 = vadd.f32 %v5810, %v5874
    %5876 = vmatmul.f32.gmra.mxu0 %v5471
    %v5877 = vpop.f32.mrf.mxu0
    %v5878 = vadd.f32 %v5813, %v5877
    %5879 = vdwg.mxu0
    %5880 = vmatpush.msra.mxu0 %v5555
    %5881 = vmatpush.msra.mxu0 %v5554
    %5882 = vmatpush.msra.mxu0 %v5553
    %5883 = vmatpush.msra.mxu0 %v5552
    %5884 = vmatpush.msra.mxu0 %v5551
    %5885 = vmatpush.msra.mxu0 %v5550
    %5886 = vmatpush.msra.mxu0 %v5549
    %5887 = vmatpush.msra.mxu0 %v5548
    %5888 = vmatpush.msra.mxu0 %v5547
    %5889 = vmatpush.msra.mxu0 %v5546
    %5890 = vmatpush.msra.mxu0 %v5545
    %5891 = vmatpush.msra.mxu0 %v5544
    %5892 = vmatpush.msra.mxu0 %v5543
    %5893 = vmatpush.msra.mxu0 %v5542
    %5894 = vmatpush.msra.mxu0 %v5541
    %5895 = vmatpush.msra.mxu0 %v5540
    %5896 = vmatmul.f32.gmra.mxu0 %v5352
    %v5897 = vpop.f32.mrf.mxu0
    %v5898 = vadd.f32 %v5833, %v5897
    %5899 = vmatmul.f32.gmra.mxu0 %v5360
    %v5900 = vpop.f32.mrf.mxu0
    %v5901 = vadd.f32 %v5836, %v5900
    %5902 = vmatmul.f32.gmra.mxu0 %v5368
    %v5903 = vpop.f32.mrf.mxu0
    %v5904 = vadd.f32 %v5839, %v5903
    %5905 = vmatmul.f32.gmra.mxu0 %v5376
    %v5906 = vpop.f32.mrf.mxu0
    %v5907 = vadd.f32 %v5842, %v5906
    %5908 = vmatmul.f32.gmra.mxu0 %v5384
    %v5909 = vpop.f32.mrf.mxu0
    %v5910 = vadd.f32 %v5845, %v5909
    %5911 = vmatmul.f32.gmra.mxu0 %v5392
    %v5912 = vpop.f32.mrf.mxu0
    %v5913 = vadd.f32 %v5848, %v5912
    %5914 = vmatmul.f32.gmra.mxu0 %v5400
    %v5915 = vpop.f32.mrf.mxu0
    %v5916 = vadd.f32 %v5851, %v5915
    %5917 = vmatmul.f32.gmra.mxu0 %v5408
    %v5918 = vpop.f32.mrf.mxu0
    %v5919 = vadd.f32 %v5854, %v5918
    %5920 = vmatmul.f32.gmra.mxu0 %v5416
    %v5921 = vpop.f32.mrf.mxu0
    %v5922 = vadd.f32 %v5857, %v5921
    %5923 = vmatmul.f32.gmra.mxu0 %v5424
    %v5924 = vpop.f32.mrf.mxu0
    %v5925 = vadd.f32 %v5860, %v5924
    %5926 = vmatmul.f32.gmra.mxu0 %v5432
    %v5927 = vpop.f32.mrf.mxu0
    %v5928 = vadd.f32 %v5863, %v5927
    %5929 = vmatmul.f32.gmra.mxu0 %v5440
    %v5930 = vpop.f32.mrf.mxu0
    %v5931 = vadd.f32 %v5866, %v5930
    %5932 = vmatmul.f32.gmra.mxu0 %v5448
    %v5933 = vpop.f32.mrf.mxu0
    %v5934 = vadd.f32 %v5869, %v5933
    %5935 = vmatmul.f32.gmra.mxu0 %v5456
    %v5936 = vpop.f32.mrf.mxu0
    %v5937 = vadd.f32 %v5872, %v5936
    %5938 = vmatmul.f32.gmra.mxu0 %v5464
    %v5939 = vpop.f32.mrf.mxu0
    %v5940 = vadd.f32 %v5875, %v5939
    %5941 = vmatmul.f32.gmra.mxu0 %v5472
    %v5942 = vpop.f32.mrf.mxu0
    %v5943 = vadd.f32 %v5878, %v5942
    %5944 = vdwg.mxu0
    %5945 = vmatpush.msra.mxu0 %v5571
    %5946 = vmatpush.msra.mxu0 %v5570
    %5947 = vmatpush.msra.mxu0 %v5569
    %5948 = vmatpush.msra.mxu0 %v5568
    %5949 = vmatpush.msra.mxu0 %v5567
    %5950 = vmatpush.msra.mxu0 %v5566
    %5951 = vmatpush.msra.mxu0 %v5565
    %5952 = vmatpush.msra.mxu0 %v5564
    %5953 = vmatpush.msra.mxu0 %v5563
    %5954 = vmatpush.msra.mxu0 %v5562
    %5955 = vmatpush.msra.mxu0 %v5561
    %5956 = vmatpush.msra.mxu0 %v5560
    %5957 = vmatpush.msra.mxu0 %v5559
    %5958 = vmatpush.msra.mxu0 %v5558
    %5959 = vmatpush.msra.mxu0 %v5557
    %5960 = vmatpush.msra.mxu0 %v5556
    %5961 = vmatmul.f32.gmra.mxu0 %v5353
    %v5962 = vpop.f32.mrf.mxu0
    %v5963 = vadd.f32 %v5898, %v5962
    %5964 = vmatmul.f32.gmra.mxu0 %v5361
    %v5965 = vpop.f32.mrf.mxu0
    %v5966 = vadd.f32 %v5901, %v5965
    %5967 = vmatmul.f32.gmra.mxu0 %v5369
    %v5968 = vpop.f32.mrf.mxu0
    %v5969 = vadd.f32 %v5904, %v5968
    %5970 = vmatmul.f32.gmra.mxu0 %v5377
    %v5971 = vpop.f32.mrf.mxu0
    %v5972 = vadd.f32 %v5907, %v5971
    %5973 = vmatmul.f32.gmra.mxu0 %v5385
    %v5974 = vpop.f32.mrf.mxu0
    %v5975 = vadd.f32 %v5910, %v5974
    %5976 = vmatmul.f32.gmra.mxu0 %v5393
    %v5977 = vpop.f32.mrf.mxu0
    %v5978 = vadd.f32 %v5913, %v5977
    %5979 = vmatmul.f32.gmra.mxu0 %v5401
    %v5980 = vpop.f32.mrf.mxu0
    %v5981 = vadd.f32 %v5916, %v5980
    %5982 = vmatmul.f32.gmra.mxu0 %v5409
    %v5983 = vpop.f32.mrf.mxu0
    %v5984 = vadd.f32 %v5919, %v5983
    %5985 = vmatmul.f32.gmra.mxu0 %v5417
    %v5986 = vpop.f32.mrf.mxu0
    %v5987 = vadd.f32 %v5922, %v5986
    %5988 = vmatmul.f32.gmra.mxu0 %v5425
    %v5989 = vpop.f32.mrf.mxu0
    %v5990 = vadd.f32 %v5925, %v5989
    %5991 = vmatmul.f32.gmra.mxu0 %v5433
    %v5992 = vpop.f32.mrf.mxu0
    %v5993 = vadd.f32 %v5928, %v5992
    %5994 = vmatmul.f32.gmra.mxu0 %v5441
    %v5995 = vpop.f32.mrf.mxu0
    %v5996 = vadd.f32 %v5931, %v5995
    %5997 = vmatmul.f32.gmra.mxu0 %v5449
    %v5998 = vpop.f32.mrf.mxu0
    %v5999 = vadd.f32 %v5934, %v5998
    %6000 = vmatmul.f32.gmra.mxu0 %v5457
    %v6001 = vpop.f32.mrf.mxu0
    %v6002 = vadd.f32 %v5937, %v6001
    %6003 = vmatmul.f32.gmra.mxu0 %v5465
    %v6004 = vpop.f32.mrf.mxu0
    %v6005 = vadd.f32 %v5940, %v6004
    %6006 = vmatmul.f32.gmra.mxu0 %v5473
    %v6007 = vpop.f32.mrf.mxu0
    %v6008 = vadd.f32 %v5943, %v6007
    %6009 = vdwg.mxu0
    %6010 = vmatpush.msra.mxu0 %v5587
    %6011 = vmatpush.msra.mxu0 %v5586
    %6012 = vmatpush.msra.mxu0 %v5585
    %6013 = vmatpush.msra.mxu0 %v5584
    %6014 = vmatpush.msra.mxu0 %v5583
    %6015 = vmatpush.msra.mxu0 %v5582
    %6016 = vmatpush.msra.mxu0 %v5581
    %6017 = vmatpush.msra.mxu0 %v5580
    %6018 = vmatpush.msra.mxu0 %v5579
    %6019 = vmatpush.msra.mxu0 %v5578
    %6020 = vmatpush.msra.mxu0 %v5577
    %6021 = vmatpush.msra.mxu0 %v5576
    %6022 = vmatpush.msra.mxu0 %v5575
    %6023 = vmatpush.msra.mxu0 %v5574
    %6024 = vmatpush.msra.mxu0 %v5573
    %6025 = vmatpush.msra.mxu0 %v5572
    %6026 = vmatmul.f32.gmra.mxu0 %v5354
    %v6027 = vpop.f32.mrf.mxu0
    %v6028 = vadd.f32 %v5963, %v6027
    %6029 = vmatmul.f32.gmra.mxu0 %v5362
    %v6030 = vpop.f32.mrf.mxu0
    %v6031 = vadd.f32 %v5966, %v6030
    %6032 = vmatmul.f32.gmra.mxu0 %v5370
    %v6033 = vpop.f32.mrf.mxu0
    %v6034 = vadd.f32 %v5969, %v6033
    %6035 = vmatmul.f32.gmra.mxu0 %v5378
    %v6036 = vpop.f32.mrf.mxu0
    %v6037 = vadd.f32 %v5972, %v6036
    %6038 = vmatmul.f32.gmra.mxu0 %v5386
    %v6039 = vpop.f32.mrf.mxu0
    %v6040 = vadd.f32 %v5975, %v6039
    %6041 = vmatmul.f32.gmra.mxu0 %v5394
    %v6042 = vpop.f32.mrf.mxu0
    %v6043 = vadd.f32 %v5978, %v6042
    %6044 = vmatmul.f32.gmra.mxu0 %v5402
    %v6045 = vpop.f32.mrf.mxu0
    %v6046 = vadd.f32 %v5981, %v6045
    %6047 = vmatmul.f32.gmra.mxu0 %v5410
    %v6048 = vpop.f32.mrf.mxu0
    %v6049 = vadd.f32 %v5984, %v6048
    %6050 = vmatmul.f32.gmra.mxu0 %v5418
    %v6051 = vpop.f32.mrf.mxu0
    %v6052 = vadd.f32 %v5987, %v6051
    %6053 = vmatmul.f32.gmra.mxu0 %v5426
    %v6054 = vpop.f32.mrf.mxu0
    %v6055 = vadd.f32 %v5990, %v6054
    %6056 = vmatmul.f32.gmra.mxu0 %v5434
    %v6057 = vpop.f32.mrf.mxu0
    %v6058 = vadd.f32 %v5993, %v6057
    %6059 = vmatmul.f32.gmra.mxu0 %v5442
    %v6060 = vpop.f32.mrf.mxu0
    %v6061 = vadd.f32 %v5996, %v6060
    %6062 = vmatmul.f32.gmra.mxu0 %v5450
    %v6063 = vpop.f32.mrf.mxu0
    %v6064 = vadd.f32 %v5999, %v6063
    %6065 = vmatmul.f32.gmra.mxu0 %v5458
    %v6066 = vpop.f32.mrf.mxu0
    %v6067 = vadd.f32 %v6002, %v6066
    %6068 = vmatmul.f32.gmra.mxu0 %v5466
    %v6069 = vpop.f32.mrf.mxu0
    %v6070 = vadd.f32 %v6005, %v6069
    %6071 = vmatmul.f32.gmra.mxu0 %v5474
    %v6072 = vpop.f32.mrf.mxu0
    %v6073 = vadd.f32 %v6008, %v6072
    %6074 = vdwg.mxu0
    %6075 = vmatpush.msra.mxu0 %v5603
    %6076 = vmatpush.msra.mxu0 %v5602
    %6077 = vmatpush.msra.mxu0 %v5601
    %6078 = vmatpush.msra.mxu0 %v5600
    %6079 = vmatpush.msra.mxu0 %v5599
    %6080 = vmatpush.msra.mxu0 %v5598
    %6081 = vmatpush.msra.mxu0 %v5597
    %6082 = vmatpush.msra.mxu0 %v5596
    %6083 = vmatpush.msra.mxu0 %v5595
    %6084 = vmatpush.msra.mxu0 %v5594
    %6085 = vmatpush.msra.mxu0 %v5593
    %6086 = vmatpush.msra.mxu0 %v5592
    %6087 = vmatpush.msra.mxu0 %v5591
    %6088 = vmatpush.msra.mxu0 %v5590
    %6089 = vmatpush.msra.mxu0 %v5589
    %6090 = vmatpush.msra.mxu0 %v5588
    %6091 = vmatmul.f32.gmra.mxu0 %v5355
    %v6092 = vpop.f32.mrf.mxu0
    %v6093 = vadd.f32 %v6028, %v6092
    %6094 = vmatmul.f32.gmra.mxu0 %v5363
    %v6095 = vpop.f32.mrf.mxu0
    %v6096 = vadd.f32 %v6031, %v6095
    %6097 = vmatmul.f32.gmra.mxu0 %v5371
    %v6098 = vpop.f32.mrf.mxu0
    %v6099 = vadd.f32 %v6034, %v6098
    %6100 = vmatmul.f32.gmra.mxu0 %v5379
    %v6101 = vpop.f32.mrf.mxu0
    %v6102 = vadd.f32 %v6037, %v6101
    %6103 = vmatmul.f32.gmra.mxu0 %v5387
    %v6104 = vpop.f32.mrf.mxu0
    %v6105 = vadd.f32 %v6040, %v6104
    %6106 = vmatmul.f32.gmra.mxu0 %v5395
    %v6107 = vpop.f32.mrf.mxu0
    %v6108 = vadd.f32 %v6043, %v6107
    %6109 = vmatmul.f32.gmra.mxu0 %v5403
    %v6110 = vpop.f32.mrf.mxu0
    %v6111 = vadd.f32 %v6046, %v6110
    %6112 = vmatmul.f32.gmra.mxu0 %v5411
    %v6113 = vpop.f32.mrf.mxu0
    %v6114 = vadd.f32 %v6049, %v6113
    %6115 = vmatmul.f32.gmra.mxu0 %v5419
    %v6116 = vpop.f32.mrf.mxu0
    %v6117 = vadd.f32 %v6052, %v6116
    %6118 = vmatmul.f32.gmra.mxu0 %v5427
    %v6119 = vpop.f32.mrf.mxu0
    %v6120 = vadd.f32 %v6055, %v6119
    %6121 = vmatmul.f32.gmra.mxu0 %v5435
    %v6122 = vpop.f32.mrf.mxu0
    %v6123 = vadd.f32 %v6058, %v6122
    %6124 = vmatmul.f32.gmra.mxu0 %v5443
    %v6125 = vpop.f32.mrf.mxu0
    %v6126 = vadd.f32 %v6061, %v6125
    %6127 = vmatmul.f32.gmra.mxu0 %v5451
    %v6128 = vpop.f32.mrf.mxu0
    %v6129 = vadd.f32 %v6064, %v6128
    %6130 = vmatmul.f32.gmra.mxu0 %v5459
    %v6131 = vpop.f32.mrf.mxu0
    %v6132 = vadd.f32 %v6067, %v6131
    %6133 = vmatmul.f32.gmra.mxu0 %v5467
    %v6134 = vpop.f32.mrf.mxu0
    %v6135 = vadd.f32 %v6070, %v6134
    %6136 = vmatmul.f32.gmra.mxu0 %v5475
    %v6137 = vpop.f32.mrf.mxu0
    %v6138 = vadd.f32 %v6073, %v6137
    %6139 = vdwg.mxu0
    %6140 = vadd.xlane.f32.xlu0 %v6093
    %v6141 = vpop.xlane.xlu0 %6140
    %6142 = vadd.xlane.f32.xlu0 %v6096
    %v6143 = vpop.xlane.xlu0 %6142
    %6144 = vadd.xlane.f32.xlu0 %v6099
    %v6145 = vpop.xlane.xlu0 %6144
    %6146 = vadd.xlane.f32.xlu0 %v6102
    %v6147 = vpop.xlane.xlu0 %6146
    %6148 = vadd.xlane.f32.xlu0 %v6105
    %v6149 = vpop.xlane.xlu0 %6148
    %6150 = vadd.xlane.f32.xlu0 %v6108
    %v6151 = vpop.xlane.xlu0 %6150
    %6152 = vadd.xlane.f32.xlu0 %v6111
    %v6153 = vpop.xlane.xlu0 %6152
    %6154 = vadd.xlane.f32.xlu0 %v6114
    %v6155 = vpop.xlane.xlu0 %6154
    %6156 = vadd.xlane.f32.xlu0 %v6117
    %v6157 = vpop.xlane.xlu0 %6156
    %6158 = vadd.xlane.f32.xlu0 %v6120
    %v6159 = vpop.xlane.xlu0 %6158
    %6160 = vadd.xlane.f32.xlu0 %v6123
    %v6161 = vpop.xlane.xlu0 %6160
    %6162 = vadd.xlane.f32.xlu0 %v6126
    %v6163 = vpop.xlane.xlu0 %6162
    %6164 = vadd.xlane.f32.xlu0 %v6129
    %v6165 = vpop.xlane.xlu0 %6164
    %6166 = vadd.xlane.f32.xlu0 %v6132
    %v6167 = vpop.xlane.xlu0 %6166
    %6168 = vadd.xlane.f32.xlu0 %v6135
    %v6169 = vpop.xlane.xlu0 %6168
    %6170 = vadd.xlane.f32.xlu0 %v6138
    %v6171 = vpop.xlane.xlu0 %6170
    %v6172 = vrcp.pop 128.0
    %v6173 = vmul.f32 128.0, %v6172
    %v6174 = vsub.f32 1.0, %v6173
    %v6175 = vmul.f32 %v6172, %v6174
    %v6176 = vadd.f32 %v6172, %v6175
    %vm6177 = vweird.f32 %v6172
    %v6178 = vsel %vm6177, %v6172, %v6176
    %v6179 = vmul.f32 %v6141, %v6178
    %v6180 = vmul.f32 %v6143, %v6178
    %v6181 = vmul.f32 %v6145, %v6178
    %v6182 = vmul.f32 %v6147, %v6178
    %v6183 = vmul.f32 %v6149, %v6178
    %v6184 = vmul.f32 %v6151, %v6178
    %v6185 = vmul.f32 %v6153, %v6178
    %v6186 = vmul.f32 %v6155, %v6178
    %v6187 = vmul.f32 %v6157, %v6178
    %v6188 = vmul.f32 %v6159, %v6178
    %v6189 = vmul.f32 %v6161, %v6178
    %v6190 = vmul.f32 %v6163, %v6178
    %v6191 = vmul.f32 %v6165, %v6178
    %v6192 = vmul.f32 %v6167, %v6178
    %v6193 = vmul.f32 %v6169, %v6178
    %v6194 = vmul.f32 %v6171, %v6178
    %v6195 = vsub.f32 %v6093, %v6179
    %v6196 = vsub.f32 %v6096, %v6180
    %v6197 = vsub.f32 %v6099, %v6181
    %v6198 = vsub.f32 %v6102, %v6182
    %v6199 = vsub.f32 %v6105, %v6183
    %v6200 = vsub.f32 %v6108, %v6184
    %v6201 = vsub.f32 %v6111, %v6185
    %v6202 = vsub.f32 %v6114, %v6186
    %v6203 = vsub.f32 %v6117, %v6187
    %v6204 = vsub.f32 %v6120, %v6188
    %v6205 = vsub.f32 %v6123, %v6189
    %v6206 = vsub.f32 %v6126, %v6190
    %v6207 = vsub.f32 %v6129, %v6191
    %v6208 = vsub.f32 %v6132, %v6192
    %v6209 = vsub.f32 %v6135, %v6193
    %v6210 = vsub.f32 %v6138, %v6194
    %v6211 = vmul.f32 %v6195, %v6195
    %v6212 = vmul.f32 %v6196, %v6196
    %v6213 = vmul.f32 %v6197, %v6197
    %v6214 = vmul.f32 %v6198, %v6198
    %v6215 = vmul.f32 %v6199, %v6199
    %v6216 = vmul.f32 %v6200, %v6200
    %v6217 = vmul.f32 %v6201, %v6201
    %v6218 = vmul.f32 %v6202, %v6202
    %v6219 = vmul.f32 %v6203, %v6203
    %v6220 = vmul.f32 %v6204, %v6204
    %v6221 = vmul.f32 %v6205, %v6205
    %v6222 = vmul.f32 %v6206, %v6206
    %v6223 = vmul.f32 %v6207, %v6207
    %v6224 = vmul.f32 %v6208, %v6208
    %v6225 = vmul.f32 %v6209, %v6209
    %v6226 = vmul.f32 %v6210, %v6210
    %6227 = vadd.xlane.f32.xlu0 %v6211
    %v6228 = vpop.xlane.xlu0 %6227
    %6229 = vadd.xlane.f32.xlu0 %v6212
    %v6230 = vpop.xlane.xlu0 %6229
    %6231 = vadd.xlane.f32.xlu0 %v6213
    %v6232 = vpop.xlane.xlu0 %6231
    %6233 = vadd.xlane.f32.xlu0 %v6214
    %v6234 = vpop.xlane.xlu0 %6233
    %6235 = vadd.xlane.f32.xlu0 %v6215
    %v6236 = vpop.xlane.xlu0 %6235
    %6237 = vadd.xlane.f32.xlu0 %v6216
    %v6238 = vpop.xlane.xlu0 %6237
    %6239 = vadd.xlane.f32.xlu0 %v6217
    %v6240 = vpop.xlane.xlu0 %6239
    %6241 = vadd.xlane.f32.xlu0 %v6218
    %v6242 = vpop.xlane.xlu0 %6241
    %6243 = vadd.xlane.f32.xlu0 %v6219
    %v6244 = vpop.xlane.xlu0 %6243
    %6245 = vadd.xlane.f32.xlu0 %v6220
    %v6246 = vpop.xlane.xlu0 %6245
    %6247 = vadd.xlane.f32.xlu0 %v6221
    %v6248 = vpop.xlane.xlu0 %6247
    %6249 = vadd.xlane.f32.xlu0 %v6222
    %v6250 = vpop.xlane.xlu0 %6249
    %6251 = vadd.xlane.f32.xlu0 %v6223
    %v6252 = vpop.xlane.xlu0 %6251
    %6253 = vadd.xlane.f32.xlu0 %v6224
    %v6254 = vpop.xlane.xlu0 %6253
    %6255 = vadd.xlane.f32.xlu0 %v6225
    %v6256 = vpop.xlane.xlu0 %6255
    %6257 = vadd.xlane.f32.xlu0 %v6226
    %v6258 = vpop.xlane.xlu0 %6257
    %v6259 = vmul.f32 %v6228, %v6178
    %v6260 = vmul.f32 %v6230, %v6178
    %v6261 = vmul.f32 %v6232, %v6178
    %v6262 = vmul.f32 %v6234, %v6178
    %v6263 = vmul.f32 %v6236, %v6178
    %v6264 = vmul.f32 %v6238, %v6178
    %v6265 = vmul.f32 %v6240, %v6178
    %v6266 = vmul.f32 %v6242, %v6178
    %v6267 = vmul.f32 %v6244, %v6178
    %v6268 = vmul.f32 %v6246, %v6178
    %v6269 = vmul.f32 %v6248, %v6178
    %v6270 = vmul.f32 %v6250, %v6178
    %v6271 = vmul.f32 %v6252, %v6178
    %v6272 = vmul.f32 %v6254, %v6178
    %v6273 = vmul.f32 %v6256, %v6178
    %v6274 = vmul.f32 %v6258, %v6178
    %v6275 = vadd.f32 %v6259, 1e-05
    %v6276 = vadd.f32 %v6260, 1e-05
    %v6277 = vadd.f32 %v6261, 1e-05
    %v6278 = vadd.f32 %v6262, 1e-05
    %v6279 = vadd.f32 %v6263, 1e-05
    %v6280 = vadd.f32 %v6264, 1e-05
    %v6281 = vadd.f32 %v6265, 1e-05
    %v6282 = vadd.f32 %v6266, 1e-05
    %v6283 = vadd.f32 %v6267, 1e-05
    %v6284 = vadd.f32 %v6268, 1e-05
    %v6285 = vadd.f32 %v6269, 1e-05
    %v6286 = vadd.f32 %v6270, 1e-05
    %v6287 = vadd.f32 %v6271, 1e-05
    %v6288 = vadd.f32 %v6272, 1e-05
    %v6289 = vadd.f32 %v6273, 1e-05
    %v6290 = vadd.f32 %v6274, 1e-05
    %v6291 = vrsqrt.pop %v6275
    %v6292 = vmul.f32 %v6291, %v6275
    %v6293 = vmul.f32 %v6292, %v6291
    %v6294 = vmul.f32 0.5, %v6293
    %v6295 = vsub.f32 1.5, %v6294
    %v6296 = vmul.f32 %v6291, %v6295
    %vm6297 = vweird.f32 %v6275
    %vm6298 = vweird.f32 %v6291
    %vm6299 = vmor %vm6297, %vm6298
    %v6300 = vsel %vm6299, %v6291, %v6296
    %v6301 = vrsqrt.pop %v6276
    %v6302 = vmul.f32 %v6301, %v6276
    %v6303 = vmul.f32 %v6302, %v6301
    %v6304 = vmul.f32 0.5, %v6303
    %v6305 = vsub.f32 1.5, %v6304
    %v6306 = vmul.f32 %v6301, %v6305
    %vm6307 = vweird.f32 %v6276
    %vm6308 = vweird.f32 %v6301
    %vm6309 = vmor %vm6307, %vm6308
    %v6310 = vsel %vm6309, %v6301, %v6306
    %v6311 = vrsqrt.pop %v6277
    %v6312 = vmul.f32 %v6311, %v6277
    %v6313 = vmul.f32 %v6312, %v6311
    %v6314 = vmul.f32 0.5, %v6313
    %v6315 = vsub.f32 1.5, %v6314
    %v6316 = vmul.f32 %v6311, %v6315
    %vm6317 = vweird.f32 %v6277
    %vm6318 = vweird.f32 %v6311
    %vm6319 = vmor %vm6317, %vm6318
    %v6320 = vsel %vm6319, %v6311, %v6316
    %v6321 = vrsqrt.pop %v6278
    %v6322 = vmul.f32 %v6321, %v6278
    %v6323 = vmul.f32 %v6322, %v6321
    %v6324 = vmul.f32 0.5, %v6323
    %v6325 = vsub.f32 1.5, %v6324
    %v6326 = vmul.f32 %v6321, %v6325
    %vm6327 = vweird.f32 %v6278
    %vm6328 = vweird.f32 %v6321
    %vm6329 = vmor %vm6327, %vm6328
    %v6330 = vsel %vm6329, %v6321, %v6326
    %v6331 = vrsqrt.pop %v6279
    %v6332 = vmul.f32 %v6331, %v6279
    %v6333 = vmul.f32 %v6332, %v6331
    %v6334 = vmul.f32 0.5, %v6333
    %v6335 = vsub.f32 1.5, %v6334
    %v6336 = vmul.f32 %v6331, %v6335
    %vm6337 = vweird.f32 %v6279
    %vm6338 = vweird.f32 %v6331
    %vm6339 = vmor %vm6337, %vm6338
    %v6340 = vsel %vm6339, %v6331, %v6336
    %v6341 = vrsqrt.pop %v6280
    %v6342 = vmul.f32 %v6341, %v6280
    %v6343 = vmul.f32 %v6342, %v6341
    %v6344 = vmul.f32 0.5, %v6343
    %v6345 = vsub.f32 1.5, %v6344
    %v6346 = vmul.f32 %v6341, %v6345
    %vm6347 = vweird.f32 %v6280
    %vm6348 = vweird.f32 %v6341
    %vm6349 = vmor %vm6347, %vm6348
    %v6350 = vsel %vm6349, %v6341, %v6346
    %v6351 = vrsqrt.pop %v6281
    %v6352 = vmul.f32 %v6351, %v6281
    %v6353 = vmul.f32 %v6352, %v6351
    %v6354 = vmul.f32 0.5, %v6353
    %v6355 = vsub.f32 1.5, %v6354
    %v6356 = vmul.f32 %v6351, %v6355
    %vm6357 = vweird.f32 %v6281
    %vm6358 = vweird.f32 %v6351
    %vm6359 = vmor %vm6357, %vm6358
    %v6360 = vsel %vm6359, %v6351, %v6356
    %v6361 = vrsqrt.pop %v6282
    %v6362 = vmul.f32 %v6361, %v6282
    %v6363 = vmul.f32 %v6362, %v6361
    %v6364 = vmul.f32 0.5, %v6363
    %v6365 = vsub.f32 1.5, %v6364
    %v6366 = vmul.f32 %v6361, %v6365
    %vm6367 = vweird.f32 %v6282
    %vm6368 = vweird.f32 %v6361
    %vm6369 = vmor %vm6367, %vm6368
    %v6370 = vsel %vm6369, %v6361, %v6366
    %v6371 = vrsqrt.pop %v6283
    %v6372 = vmul.f32 %v6371, %v6283
    %v6373 = vmul.f32 %v6372, %v6371
    %v6374 = vmul.f32 0.5, %v6373
    %v6375 = vsub.f32 1.5, %v6374
    %v6376 = vmul.f32 %v6371, %v6375
    %vm6377 = vweird.f32 %v6283
    %vm6378 = vweird.f32 %v6371
    %vm6379 = vmor %vm6377, %vm6378
    %v6380 = vsel %vm6379, %v6371, %v6376
    %v6381 = vrsqrt.pop %v6284
    %v6382 = vmul.f32 %v6381, %v6284
    %v6383 = vmul.f32 %v6382, %v6381
    %v6384 = vmul.f32 0.5, %v6383
    %v6385 = vsub.f32 1.5, %v6384
    %v6386 = vmul.f32 %v6381, %v6385
    %vm6387 = vweird.f32 %v6284
    %vm6388 = vweird.f32 %v6381
    %vm6389 = vmor %vm6387, %vm6388
    %v6390 = vsel %vm6389, %v6381, %v6386
    %v6391 = vrsqrt.pop %v6285
    %v6392 = vmul.f32 %v6391, %v6285
    %v6393 = vmul.f32 %v6392, %v6391
    %v6394 = vmul.f32 0.5, %v6393
    %v6395 = vsub.f32 1.5, %v6394
    %v6396 = vmul.f32 %v6391, %v6395
    %vm6397 = vweird.f32 %v6285
    %vm6398 = vweird.f32 %v6391
    %vm6399 = vmor %vm6397, %vm6398
    %v6400 = vsel %vm6399, %v6391, %v6396
    %v6401 = vrsqrt.pop %v6286
    %v6402 = vmul.f32 %v6401, %v6286
    %v6403 = vmul.f32 %v6402, %v6401
    %v6404 = vmul.f32 0.5, %v6403
    %v6405 = vsub.f32 1.5, %v6404
    %v6406 = vmul.f32 %v6401, %v6405
    %vm6407 = vweird.f32 %v6286
    %vm6408 = vweird.f32 %v6401
    %vm6409 = vmor %vm6407, %vm6408
    %v6410 = vsel %vm6409, %v6401, %v6406
    %v6411 = vrsqrt.pop %v6287
    %v6412 = vmul.f32 %v6411, %v6287
    %v6413 = vmul.f32 %v6412, %v6411
    %v6414 = vmul.f32 0.5, %v6413
    %v6415 = vsub.f32 1.5, %v6414
    %v6416 = vmul.f32 %v6411, %v6415
    %vm6417 = vweird.f32 %v6287
    %vm6418 = vweird.f32 %v6411
    %vm6419 = vmor %vm6417, %vm6418
    %v6420 = vsel %vm6419, %v6411, %v6416
    %v6421 = vrsqrt.pop %v6288
    %v6422 = vmul.f32 %v6421, %v6288
    %v6423 = vmul.f32 %v6422, %v6421
    %v6424 = vmul.f32 0.5, %v6423
    %v6425 = vsub.f32 1.5, %v6424
    %v6426 = vmul.f32 %v6421, %v6425
    %vm6427 = vweird.f32 %v6288
    %vm6428 = vweird.f32 %v6421
    %vm6429 = vmor %vm6427, %vm6428
    %v6430 = vsel %vm6429, %v6421, %v6426
    %v6431 = vrsqrt.pop %v6289
    %v6432 = vmul.f32 %v6431, %v6289
    %v6433 = vmul.f32 %v6432, %v6431
    %v6434 = vmul.f32 0.5, %v6433
    %v6435 = vsub.f32 1.5, %v6434
    %v6436 = vmul.f32 %v6431, %v6435
    %vm6437 = vweird.f32 %v6289
    %vm6438 = vweird.f32 %v6431
    %vm6439 = vmor %vm6437, %vm6438
    %v6440 = vsel %vm6439, %v6431, %v6436
    %v6441 = vrsqrt.pop %v6290
    %v6442 = vmul.f32 %v6441, %v6290
    %v6443 = vmul.f32 %v6442, %v6441
    %v6444 = vmul.f32 0.5, %v6443
    %v6445 = vsub.f32 1.5, %v6444
    %v6446 = vmul.f32 %v6441, %v6445
    %vm6447 = vweird.f32 %v6290
    %vm6448 = vweird.f32 %v6441
    %vm6449 = vmor %vm6447, %vm6448
    %v6450 = vsel %vm6449, %v6441, %v6446
    %v6451 = vmul.f32 %v6195, %v6300
    %v6452 = vmul.f32 %v6196, %v6310
    %v6453 = vmul.f32 %v6197, %v6320
    %v6454 = vmul.f32 %v6198, %v6330
    %v6455 = vmul.f32 %v6199, %v6340
    %v6456 = vmul.f32 %v6200, %v6350
    %v6457 = vmul.f32 %v6201, %v6360
    %v6458 = vmul.f32 %v6202, %v6370
    %v6459 = vmul.f32 %v6203, %v6380
    %v6460 = vmul.f32 %v6204, %v6390
    %v6461 = vmul.f32 %v6205, %v6400
    %v6462 = vmul.f32 %v6206, %v6410
    %v6463 = vmul.f32 %v6207, %v6420
    %v6464 = vmul.f32 %v6208, %v6430
    %v6465 = vmul.f32 %v6209, %v6440
    %v6466 = vmul.f32 %v6210, %v6450
    %v6467 = vld [vmem:[#allocation12] sm:$0x1]
    %v6469 = vperm.slane %v6467, 0
    %v6471 = vmul.f32 %v6451, %v6469
    %v6472 = vmul.f32 %v6452, %v6469
    %v6473 = vmul.f32 %v6453, %v6469
    %v6474 = vmul.f32 %v6454, %v6469
    %v6475 = vmul.f32 %v6455, %v6469
    %v6476 = vmul.f32 %v6456, %v6469
    %v6477 = vmul.f32 %v6457, %v6469
    %v6478 = vmul.f32 %v6458, %v6469
    %v6479 = vmul.f32 %v6459, %v6469
    %v6480 = vmul.f32 %v6460, %v6469
    %v6481 = vmul.f32 %v6461, %v6469
    %v6482 = vmul.f32 %v6462, %v6469
    %v6483 = vmul.f32 %v6463, %v6469
    %v6484 = vmul.f32 %v6464, %v6469
    %v6485 = vmul.f32 %v6465, %v6469
    %v6486 = vmul.f32 %v6466, %v6469
    %v6487 = vld [vmem:[#allocation14] sm:$0x1]
    %v6489 = vperm.slane %v6487, 0
    %v6491 = vadd.f32 %v6471, %v6489
    %v6492 = vadd.f32 %v6472, %v6489
    %v6493 = vadd.f32 %v6473, %v6489
    %v6494 = vadd.f32 %v6474, %v6489
    %v6495 = vadd.f32 %v6475, %v6489
    %v6496 = vadd.f32 %v6476, %v6489
    %v6497 = vadd.f32 %v6477, %v6489
    %v6498 = vadd.f32 %v6478, %v6489
    %v6499 = vadd.f32 %v6479, %v6489
    %v6500 = vadd.f32 %v6480, %v6489
    %v6501 = vadd.f32 %v6481, %v6489
    %v6502 = vadd.f32 %v6482, %v6489
    %v6503 = vadd.f32 %v6483, %v6489
    %v6504 = vadd.f32 %v6484, %v6489
    %v6505 = vadd.f32 %v6485, %v6489
    %v6506 = vadd.f32 %v6486, %v6489
    %6507 = vst [vmem:[#allocation15] sm:$0xff] %v6491
    %6508 = vst [vmem:[#allocation15 + $0x8] sm:$0xff] %v6492
    %6509 = vst [vmem:[#allocation15 + $0x10] sm:$0xff] %v6493
    %6510 = vst [vmem:[#allocation15 + $0x18] sm:$0xff] %v6494
    %6511 = vst [vmem:[#allocation15 + $0x20] sm:$0xff] %v6495
    %6512 = vst [vmem:[#allocation15 + $0x28] sm:$0xff] %v6496
    %6513 = vst [vmem:[#allocation15 + $0x30] sm:$0xff] %v6497
    %6514 = vst [vmem:[#allocation15 + $0x38] sm:$0xff] %v6498
    %6515 = vst [vmem:[#allocation15 + $0x40] sm:$0xff] %v6499
    %6516 = vst [vmem:[#allocation15 + $0x48] sm:$0xff] %v6500
    %6517 = vst [vmem:[#allocation15 + $0x50] sm:$0xff] %v6501
    %6518 = vst [vmem:[#allocation15 + $0x58] sm:$0xff] %v6502
    %6519 = vst [vmem:[#allocation15 + $0x60] sm:$0xff] %v6503
    %6520 = vst [vmem:[#allocation15 + $0x68] sm:$0xff] %v6504
    %6521 = vst [vmem:[#allocation15 + $0x70] sm:$0xff] %v6505
    %6522 = vst [vmem:[#allocation15 + $0x78] sm:$0xff] %v6506
    // Predicated region
    $region58: #{tpu_custom_call.1} parent=1 // pred_check
      _
    $region59: #{tpu_custom_call.1} parent=1 // pred_check_branch
      %6524 = sbr.rel (0) target = $region61
    $region60: #{tpu_custom_call.1} parent=1 // pred_region
      %6526 = vsyncadd [#allocation5], 0
      %s6527 = sshll.u32 [#allocation15], 4
      %s6528 = int_to_ptr.vmem [resolvable:$true] %s6527
      %s6529 = sshll.u32 %s7, 4
      %s6530 = int_to_ptr.hbm [resolvable:$true] %s6529
      %6535 = dma.vmem_to_hbm [thread:$0]  %s6528, 2048, %s6530, [#allocation5], 128, 128, 8
    $region61: #{tpu_custom_call.1} parent=1 // pred_fallthru
      _
    // Predicated region
    $region62: #{tpu_custom_call.1} parent=1 // pred_check
      _
    $region63: #{tpu_custom_call.1} parent=1 // pred_check_branch
      %6537 = sbr.rel (0) target = $region65
    $region64: #{tpu_custom_call.1} parent=1 // pred_region
      %6539 = dma.done [#allocation5], 2048
    $region65: #{tpu_custom_call.1} parent=1 // pred_fallthru
      _
    %6540 = vsyncpa [#allocation4], 1
    %6541 = vsyncpa [#allocation7], 1
    %6542 = vsyncpa [#allocation10], 1
    %6543 = vsyncpa [#allocation13], 1
    %6544 = vsyncpa [#allocation5], 1

</llo_original>
